<compile_context>
chip_gen: v7x
topology: tpu7x:2x2x1
jax: 0.10.0
libtpu: 0.0.40
codegen_flags: <defaults>
</compile_context>

<pallas_src>
import functools

import jax
import jax.numpy as jnp
from jax import lax
from jax.experimental import pallas as pl
from jax.experimental.pallas import tpu as pltpu

FP8_MAX = 448.0                                  # float8_e4m3fn max magnitude
_E4M3_MIN_NORMAL = 2.0 ** -6
_E4M3_SUBNORMAL_MAGIC = 3.0 * 2.0 ** 13          # 24576.0: f32 ulp here is 2^-9


# --------------------------------------------------------------------------
# Reference-format parameters (FastLinearI4FP8): int4 packed 8-per-int32 + fp8
# per-group scales.  (Deterministic glue, mirrors the PyTorch storage format.)
# --------------------------------------------------------------------------
def pack_int4(w_int8):
    """Pack signed int4 values (int8 in [-8,7]) 8-per-int32, consecutive nibbles."""
    o, i = w_int8.shape
    nib = (w_int8.astype(jnp.uint32) & 0xF).reshape(o, i // 8, 8)
    shifts = jnp.arange(8, dtype=jnp.uint32) * 4
    packed = jnp.sum(nib << shifts, axis=-1, dtype=jnp.uint32)
    return lax.bitcast_convert_type(packed, jnp.int32)


def unpack_int4(packed_i32, in_features):
    """Inverse of pack_int4 (equivalent of triton_unpack_int32_to_int4)."""
    o = packed_i32.shape[0]
    u = lax.bitcast_convert_type(packed_i32, jnp.uint32)
    shifts = jnp.arange(8, dtype=jnp.uint32) * 4
    nib = (u[:, :, None] >> shifts) & 0xF
    vals = jnp.where(nib >= 8, nib.astype(jnp.int32) - 16, nib.astype(jnp.int32))
    return vals.reshape(o, in_features).astype(jnp.int8)


def make_linear_i4fp8(key, in_features, out_features, group_size):
    """FastLinearI4FP8: int4 weights packed into int32 + fp8 per-group scales."""
    k1, k2 = jax.random.split(key)
    w_int4 = jax.random.randint(k1, (out_features, in_features), -8, 8,
                                dtype=jnp.int32).astype(jnp.int8)
    weight_i4 = pack_int4(w_int4)                                   # (out, in//8) int32
    scale = jax.random.uniform(k2, (out_features, in_features // group_size),
                               minval=0.01, maxval=0.03, dtype=jnp.float32)
    weight_scale = scale.astype(jnp.float8_e4m3fn)                  # (out, in//G) fp8
    return weight_i4, weight_scale


# --------------------------------------------------------------------------
# One-time offline weight preprocessing for the kernels
# --------------------------------------------------------------------------
def repack_int4_kt(w_int8, tk):
    """Transposed nibble-plane repack.

    Output shape (in//8, out) uint32.  Within each K-block of size tk, nibble s
    of the word at row r holds W[o, kblock*tk + s*(tk//8) + r].  The in-kernel
    unpack is a per-lane shift/mask (lane axis = out) followed by a sublane
    concat; the per-group scale broadcast becomes a natural (1, TN) row
    broadcast on the transposed weight tile."""
    o, kdim = w_int8.shape
    assert kdim % tk == 0 and tk % 8 == 0
    tkp = tk // 8
    wt = jnp.transpose(w_int8)                              # (in, out)
    w4 = wt.reshape(kdim // tk, 8, tkp, o)                  # [kb, s, r, o]
    nib = w4.astype(jnp.uint32) & jnp.uint32(0xF)
    shifts = (jnp.arange(8, dtype=jnp.uint32) * 4).reshape(1, 8, 1, 1)
    packed = jnp.sum(nib << shifts, axis=1, dtype=jnp.uint32)   # (kb, tkp, o)
    return packed.reshape(kdim // 8, o)                          # uint32


def prepare_mlp_params(params, hidden, inter_size, group, tiles_gu, tiles_dn):
    """Offline prep: transposed nibble-plane int4 words + transposed group scales."""
    def prep(weight_i4, weight_scale, in_features, tk):
        w_int8 = unpack_int4(weight_i4, in_features)     # reference nibble order
        packed = repack_int4_kt(w_int8, tk)              # (in//8, out) uint32 kernel layout
        scale_t = weight_scale.astype(jnp.float32).T     # (in//G, out)
        return packed, scale_t

    gw, gs = prep(*params["gate"], hidden, tiles_gu[2])
    uw, us = prep(*params["up"], hidden, tiles_gu[2])
    dw, ds = prep(*params["down"], inter_size, tiles_dn[2])
    return {"gw": gw, "gs": gs, "uw": uw, "us": us, "dw": dw, "ds": ds}


# --------------------------------------------------------------------------
# Activation quantization (act_quant_fn) — per-token symmetric e4m3
# --------------------------------------------------------------------------
def act_quant(x2d):
    xf = x2d.astype(jnp.float32)
    amax = jnp.max(jnp.abs(xf), axis=-1, keepdims=True)
    scale = (jnp.maximum(amax, 1e-8) / FP8_MAX).astype(jnp.bfloat16).astype(jnp.float32)
    qx = (xf / scale).astype(jnp.float8_e4m3fn)
    # e4m3 values are exactly representable in bf16; the kernels consume them as
    # bf16 so the MXU runs at its bf16 rate with f32 accumulation.
    return qx.astype(jnp.bfloat16), scale


# --------------------------------------------------------------------------
# In-kernel helpers
# --------------------------------------------------------------------------
def _dequant_wt(packed_u32, scale_blk, tk, group):
    """Unpack a transposed nibble-plane packed weight block (tk//8, tn) uint32,
    fold the per-group fp8 scale (exact in bf16: <=7 significant bits), and
    return the dequantized transposed weight tile (tk, tn) bf16 ready for ONE
    depth-tk MXU matmul."""
    tkp = tk // 8
    planes = []
    for s in range(8):
        v = (packed_u32 >> jnp.uint32(4 * s)) & jnp.uint32(0xF)
        sv = ((v.astype(jnp.int32) ^ 8) - 8).astype(jnp.float32)     # int4 in [-8, 7]
        if group % tkp == 0:
            # whole nibble plane lies inside one scale group
            g = (s * tkp) // group
            planes.append((sv * scale_blk[g:g + 1, :]).astype(jnp.bfloat16))
        else:
            # plane spans tkp//group groups: scale static sub-slices
            sub = []
            for t in range(tkp // group):
                g = (s * tkp) // group + t
                sub.append((sv[t * group:(t + 1) * group, :]
                            * scale_blk[g:g + 1, :]).astype(jnp.bfloat16))
            planes.append(jnp.concatenate(sub, axis=0))
    return jnp.concatenate(planes, axis=0)                           # (tk, tn) bf16


def _round_to_e4m3_grid(x):
    """Exact float8_e4m3fn round-to-nearest-even of f32 x (|x| <= ~450), computed
    with f32/uint32 bit ops only (no fp8 dtype inside the kernel — portable to
    v5e where fp8 casts may lower poorly)."""
    bits = pltpu.bitcast(x, jnp.uint32)
    sign = bits & jnp.uint32(0x80000000)
    mag = bits & jnp.uint32(0x7FFFFFFF)
    # Normal range: RNE the f32 mantissa down to 3 bits (drop 20 bits).
    lsb = (mag >> jnp.uint32(20)) & jnp.uint32(1)
    rounded = (mag + jnp.uint32((1 << 19) - 1) + lsb) & jnp.uint32(0xFFF00000)
    normal = pltpu.bitcast(sign | rounded, jnp.float32)
    # Subnormal range (|x| < 2^-6): grid is multiples of 2^-9; magic-add RNE trick.
    sub = (x + _E4M3_SUBNORMAL_MAGIC) - _E4M3_SUBNORMAL_MAGIC
    return jnp.where(jnp.abs(x) >= _E4M3_MIN_NORMAL, normal, sub)


# --------------------------------------------------------------------------
# Tile selection + compiler params
# --------------------------------------------------------------------------
def _pick_tile(dim, cap, quantum):
    if dim <= cap:
        return dim
    t = (cap // quantum) * quantum
    while t >= quantum:
        if dim % t == 0:
            return t
        t -= quantum
    return dim


def pick_mlp_tiles(tokens, out_features, in_features, group,
                   tm_cap=256, tn_cap=1024, tk_cap=None):
    """Production defaults: tm=256, tn=1024 (drop tn to ~512 on v5e if VMEM-tight),
    tk = 8*group so nibble planes coincide with scale groups."""
    assert in_features % 8 == 0 and group % 8 == 0 and in_features % group == 0
    kq = 8 * group
    if tk_cap is None:
        tk_cap = kq
    tk_cap = max(tk_cap, kq)
    tm = _pick_tile(tokens, tm_cap, 8)
    tn = _pick_tile(out_features, tn_cap, 128)
    tk = in_features if in_features <= tk_cap else _pick_tile(in_features, tk_cap, kq)
    tkp = tk // 8
    assert (group % tkp == 0) or (tkp % group == 0), (tk, group)
    if tk != in_features:
        assert tk % kq == 0
    return tm, tn, tk


def _vmem_limit(est_bytes):
    # Raise v5e's 16 MiB scoped default; never exceed v7x's 64 MiB physical VMEM.
    return int(min(max(2 * est_bytes, 32 << 20), 64 << 20))


# --------------------------------------------------------------------------
# Pallas kernels
# --------------------------------------------------------------------------
def gate_up_call(qx, xscale, gw_p, gs_t, uw_p, us_t, group, tiles):
    """Fused GateProj(SiLU) + UpProj with in-kernel int4 unpack + scale fold.
    Also emits the per-token partial amax of the intermediate so the act-quant
    scale never requires re-reading the intermediate from HBM."""
    tokens, hidden = qx.shape
    inter_size = gw_p.shape[1]
    tm, tn, tk = tiles
    tkp, tkg = tk // 8, tk // group
    gi, gj, gk = tokens // tm, inter_size // tn, hidden // tk

    def kernel(qx_ref, xs_ref, gw_ref, gs_ref, uw_ref, us_ref,
               inter_ref, amax_ref, acc_g_ref, acc_u_ref):
        kk = pl.program_id(2)

        @pl.when(kk == 0)
        def _init():
            acc_g_ref[...] = jnp.zeros_like(acc_g_ref)
            acc_u_ref[...] = jnp.zeros_like(acc_u_ref)

        qx_blk = qx_ref[...]                                        # (tm, tk) bf16 fp8-vals
        gw_t = _dequant_wt(gw_ref[...], gs_ref[...], tk, group)     # (tk, tn) bf16
        uw_t = _dequant_wt(uw_ref[...], us_ref[...], tk, group)
        # one depth-tk MXU matmul per projection per grid step
        acc_g_ref[...] += jnp.dot(qx_blk, gw_t, preferred_element_type=jnp.float32)
        acc_u_ref[...] += jnp.dot(qx_blk, uw_t, preferred_element_type=jnp.float32)

        @pl.when(kk == pl.num_programs(2) - 1)
        def _finalize():
            xs = xs_ref[...]                                        # (tm, 1) f32 token scale
            gate = acc_g_ref[...] * xs
            up = acc_u_ref[...] * xs
            inter = up * (gate * jax.nn.sigmoid(gate))              # all f32
            inter_bf = inter.astype(jnp.bfloat16)
            inter_ref[...] = inter_bf
            amax_ref[...] = jnp.max(jnp.abs(inter_bf.astype(jnp.float32)),
                                    axis=-1, keepdims=True)[None]

    est = (2 * (tm * tk * 2 + tm * 4)
           + 2 * 2 * (tkp * tn * 4 + tkg * tn * 4)
           + 2 * (tm * tn * 2) + 2 * tm * 4
           + 2 * tm * tn * 4
           + 2 * tk * tn * (2 + 4))
    cost = pl.CostEstimate(
        flops=int(2 * 2 * tokens * inter_size * hidden),
        transcendentals=int(tokens * inter_size),
        bytes_accessed=int(tokens * hidden * 2
                           + 2 * (hidden * inter_size // 2
                                  + (hidden // group) * inter_size * 4)
                           + tokens * inter_size * 2))

    return pl.pallas_call(
        kernel,
        out_shape=(jax.ShapeDtypeStruct((tokens, inter_size), jnp.bfloat16),
                   jax.ShapeDtypeStruct((gj, tokens, 1), jnp.float32)),
        grid=(gi, gj, gk),
        in_specs=[
            pl.BlockSpec((tm, tk), lambda i, j, k: (i, k)),
            pl.BlockSpec((tm, 1), lambda i, j, k: (i, 0)),
            pl.BlockSpec((tkp, tn), lambda i, j, k: (k, j)),
            pl.BlockSpec((tkg, tn), lambda i, j, k: (k, j)),
            pl.BlockSpec((tkp, tn), lambda i, j, k: (k, j)),
            pl.BlockSpec((tkg, tn), lambda i, j, k: (k, j)),
        ],
        out_specs=[pl.BlockSpec((tm, tn), lambda i, j, k: (i, j)),
                   pl.BlockSpec((1, tm, 1), lambda i, j, k: (j, i, 0))],
        scratch_shapes=[pltpu.VMEM((tm, tn), jnp.float32),
                        pltpu.VMEM((tm, tn), jnp.float32)],
        compiler_params=pltpu.CompilerParams(
            dimension_semantics=("parallel", "parallel", "arbitrary"),
            vmem_limit_bytes=_vmem_limit(est)),
        cost_estimate=cost,
    )(qx, xscale, gw_p, gs_t, uw_p, us_t)


def down_call(inter, iscale, dw_p, ds_t, residual, group, tiles):
    """DownProj: in-kernel fp8 quant of the intermediate (computed once per
    (token-tile, k) and cached in VMEM across output tiles), int4 dequant matmul,
    per-token rescale and residual add."""
    tokens, inter_size = inter.shape
    hidden = dw_p.shape[1]
    tm, tn, tk = tiles
    tkp, tkg = tk // 8, tk // group
    gi, gj, gk = tokens // tm, hidden // tn, inter_size // tk

    def kernel(x_ref, isc_ref, dw_ref, ds_ref, res_ref, out_ref, acc_ref, q_cache):
        jj = pl.program_id(1)
        kk = pl.program_id(2)

        @pl.when(kk == 0)
        def _init():
            acc_ref[...] = jnp.zeros_like(acc_ref)

        @pl.when(jj == 0)
        def _quantize():
            # act_quant_fn(intermediate): e4m3 RNE fused here (so qi never
            # round-trips through HBM); hoisted (tm,1) reciprocal, no per-element
            # divide; cached so j > 0 output tiles reuse it.
            inv = 1.0 / isc_ref[...]
            x = x_ref[...].astype(jnp.float32)
            q_cache[kk] = _round_to_e4m3_grid(x * inv).astype(jnp.bfloat16)

        q = q_cache[kk]                                             # (tm, tk) bf16 fp8-vals
        wt = _dequant_wt(dw_ref[...], ds_ref[...], tk, group)       # (tk, tn) bf16
        acc_ref[...] += jnp.dot(q, wt, preferred_element_type=jnp.float32)

        @pl.when(kk == pl.num_programs(2) - 1)
        def _finalize():
            y = acc_ref[...] * isc_ref[...] + res_ref[...].astype(jnp.float32)
            out_ref[...] = y.astype(jnp.bfloat16)

    est = (2 * (tm * tk * 2 + tm * 4)
           + 2 * (tkp * tn * 4 + tkg * tn * 4)
           + 2 * (tm * tn * 2) * 2
           + tm * tn * 4
           + gk * tm * tk * 2
           + tk * tn * (2 + 4))
    cost = pl.CostEstimate(
        flops=int(2 * tokens * hidden * inter_size),
        transcendentals=0,
        bytes_accessed=int(tokens * inter_size * 2
                           + inter_size * hidden // 2
                           + (inter_size // group) * hidden * 4
                           + 2 * tokens * hidden * 2))

    return pl.pallas_call(
        kernel,
        out_shape=jax.ShapeDtypeStruct((tokens, hidden), jnp.bfloat16),
        grid=(gi, gj, gk),
        in_specs=[
            # inter is only consumed at j == 0 (then served from the VMEM cache);
            # map j > 0 back to block 0 so it is not re-DMAed per output tile.
            pl.BlockSpec((tm, tk), lambda i, j, k: (i, jnp.where(j == 0, k, 0))),
            pl.BlockSpec((tm, 1), lambda i, j, k: (i, 0)),
            pl.BlockSpec((tkp, tn), lambda i, j, k: (k, j)),
            pl.BlockSpec((tkg, tn), lambda i, j, k: (k, j)),
            pl.BlockSpec((tm, tn), lambda i, j, k: (i, j)),
        ],
        out_specs=pl.BlockSpec((tm, tn), lambda i, j, k: (i, j)),
        scratch_shapes=[pltpu.VMEM((tm, tn), jnp.float32),
                        pltpu.VMEM((gk, tm, tk), jnp.bfloat16)],
        compiler_params=pltpu.CompilerParams(
            # j must stay "arbitrary": the quantized-intermediate cache is filled
            # at j == 0 and reused for j > 0 (cross-j dependency => not megacore
            # splittable); token axis stays "parallel".
            dimension_semantics=("parallel", "arbitrary", "arbitrary"),
            vmem_limit_bytes=_vmem_limit(est)),
        cost_estimate=cost,
    )(inter, iscale, dw_p, ds_t, residual)


# --------------------------------------------------------------------------
# Module-equivalent forward
# --------------------------------------------------------------------------
def fused_llama_mlp_i4fp8(x, residual, prep, group, tiles_gu, tiles_dn):
    b, s, h = x.shape
    t = b * s
    xf = x.reshape(t, h)
    rf = residual.reshape(t, h)

    qx, xscale = act_quant(xf)                                   # tiny T x H glue

    inter, amax_part = gate_up_call(qx, xscale, prep["gw"], prep["gs"],
                                    prep["uw"], prep["us"], group, tiles_gu)

    # act_quant_fn(intermediate): the per-token amax comes from the gate/up
    # kernel (per-output-tile partials); only a tiny max over tiles stays in XLA.
    amax = jnp.max(amax_part, axis=0)                            # (t, 1) f32
    iscale = (jnp.maximum(amax, 1e-8) / FP8_MAX).astype(jnp.bfloat16).astype(jnp.float32)

    out = down_call(inter, iscale, prep["dw"], prep["ds"], rf, group, tiles_dn)
    return out.reshape(b, s, h)


# --------------------------------------------------------------------------
# Pure-JAX reference with the same semantics (self-check)
# --------------------------------------------------------------------------
def reference_forward(x, residual, params, hidden, inter_size, group):
    b, s, h = x.shape
    t = b * s
    xf = x.reshape(t, h)
    rf = residual.reshape(t, h)

    def deq(weight_i4, weight_scale, in_features):
        w = unpack_int4(weight_i4, in_features).astype(jnp.float32)
        sc = jnp.repeat(weight_scale.astype(jnp.float32), group, axis=1)
        return (w * sc).astype(jnp.bfloat16)                     # exact (<= 7 sig bits)

    gw = deq(*params["gate"], hidden)
    uw = deq(*params["up"], hidden)
    dw = deq(*params["down"], inter_size)

    qx, xs = act_quant(xf)
    g = jnp.dot(qx, gw.T, preferred_element_type=jnp.float32) * xs
    u = jnp.dot(qx, uw.T, preferred_element_type=jnp.float32) * xs
    inter = (u * (g * jax.nn.sigmoid(g))).astype(jnp.bfloat16)

    amax = jnp.max(jnp.abs(inter.astype(jnp.float32)), axis=-1, keepdims=True)
    iscale = (jnp.maximum(amax, 1e-8) / FP8_MAX).astype(jnp.bfloat16).astype(jnp.float32)
    qi = (inter.astype(jnp.float32) / iscale).astype(jnp.float8_e4m3fn).astype(jnp.bfloat16)

    y = jnp.dot(qi, dw.T, preferred_element_type=jnp.float32) * iscale + rf.astype(jnp.float32)
    return y.astype(jnp.bfloat16).reshape(b, s, h)


if __name__ == "__main__":
    B, S = 2, 16
    HIDDEN, INTER, GROUP = 1024, 2048, 64

    key = jax.random.PRNGKey(0)
    kx, kr, kg, ku, kd = jax.random.split(key, 5)
    x = jax.random.normal(kx, (B, S, HIDDEN), dtype=jnp.float32).astype(jnp.bfloat16)
    residual = jax.random.normal(kr, (B, S, HIDDEN), dtype=jnp.float32).astype(jnp.bfloat16)

    params = {
        "gate": make_linear_i4fp8(kg, HIDDEN, INTER, GROUP),
        "up": make_linear_i4fp8(ku, HIDDEN, INTER, GROUP),
        "down": make_linear_i4fp8(kd, INTER, HIDDEN, GROUP),
    }

    T = B * S
    # Demo-only small caps so the tiny shapes still exercise multi-step
    # (token, output, K) grids; production should use the defaults
    # (tm_cap=256, tn_cap=1024, tk=8*group).
    tiles_gu = pick_mlp_tiles(T, INTER, HIDDEN, GROUP, tm_cap=16, tn_cap=256)
    tiles_dn = pick_mlp_tiles(T, HIDDEN, INTER, GROUP, tm_cap=16, tn_cap=256)

    prep = prepare_mlp_params(params, HIDDEN, INTER, GROUP, tiles_gu, tiles_dn)

    fwd = jax.jit(functools.partial(fused_llama_mlp_i4fp8, group=GROUP,
                                    tiles_gu=tiles_gu, tiles_dn=tiles_dn))
    out = fwd(x, residual, prep)
    jax.block_until_ready(out)

    assert out.shape == (B, S, HIDDEN) and out.dtype == jnp.bfloat16

    ref = reference_forward(x, residual, params, HIDDEN, INTER, GROUP)
    diff = jnp.abs(out.astype(jnp.float32) - ref.astype(jnp.float32))
    max_err = float(jnp.max(diff))
    mean_err = float(jnp.mean(diff))
    assert max_err < 1.0 and mean_err < 5e-2, (max_err, mean_err)

    print("KERNEL_OK")
</pallas_src>

<mosaic_0001>
module attributes {stable_mosaic.version = 11 : i64} {
  func.func @kernel(%arg0: i32, %arg1: i32, %arg2: i32, %arg3: memref<16x512xbf16, #tpu.memory_space<vmem>>, %arg4: memref<16x1xf32, #tpu.memory_space<vmem>>, %arg5: memref<64x256xi32, #tpu.memory_space<vmem>>, %arg6: memref<8x256xf32, #tpu.memory_space<vmem>>, %arg7: memref<16x256xbf16, #tpu.memory_space<vmem>>, %arg8: memref<16x256xbf16, #tpu.memory_space<vmem>>, %arg9: memref<16x256xf32, #tpu.memory_space<vmem>>, %arg10: memref<4x16x512xbf16, #tpu.memory_space<vmem>>) attributes {dimension_semantics = [#tpu.dimension_semantics<parallel>, #tpu.dimension_semantics<arbitrary>, #tpu.dimension_semantics<arbitrary>], iteration_bounds = array<i64: 2, 4, 4>, scalar_prefetch = 0 : i64, scratch_operands = 2 : i64, tpu.core_type = #tpu.core_type<tc>, window_params = [{transform_indices = @transform_0, window_bounds = array<i64: 16, 512>}, {transform_indices = @transform_1, window_bounds = array<i64: 16, 1>}, {transform_indices = @transform_2, window_bounds = array<i64: 64, 256>}, {transform_indices = @transform_3, window_bounds = array<i64: 8, 256>}, {transform_indices = @transform_4, window_bounds = array<i64: 16, 256>}, {transform_indices = @transform_5, window_bounds = array<i64: 16, 256>}]} {
    %c0_i32 = arith.constant 0 : i32
    %0 = arith.cmpi eq, %arg2, %c0_i32 : i32
    %1 = arith.extui %0 : i1 to i32
    %c0_i32_0 = arith.constant 0 : i32
    %2 = arith.cmpi ne, %1, %c0_i32_0 : i32
    scf.if %2 {
      %cst_37 = arith.constant 0.000000e+00 : f32
      %123 = vector.broadcast %cst_37 : f32 to vector<16x256xf32>
      %c0_38 = arith.constant 0 : index
      %c0_39 = arith.constant 0 : index
      %124 = vector.load %arg9[%c0_38, %c0_39] : memref<16x256xf32, #tpu.memory_space<vmem>>, vector<16x256xf32>
      tpu.vector_store %arg9[%c0_38, %c0_39], %123 {strides = array<i32>} : memref<16x256xf32, #tpu.memory_space<vmem>>, vector<16x256xf32>,
    } else {
    }
    %c0_i32_1 = arith.constant 0 : i32
    %3 = arith.cmpi eq, %arg1, %c0_i32_1 : i32
    %4 = arith.extui %3 : i1 to i32
    %c0_i32_2 = arith.constant 0 : i32
    %5 = arith.cmpi ne, %4, %c0_i32_2 : i32
    scf.if %5 {
      %c0_37 = arith.constant 0 : index
      %c0_38 = arith.constant 0 : index
      %123 = vector.load %arg4[%c0_37, %c0_38] : memref<16x1xf32, #tpu.memory_space<vmem>>, vector<16x1xf32>
      %cst_39 = arith.constant 1.000000e+00 : f32
      %124 = vector.broadcast %cst_39 : f32 to vector<16x1xf32>
      %125 = arith.divf %124, %123 : vector<16x1xf32>
      %c0_40 = arith.constant 0 : index
      %c0_41 = arith.constant 0 : index
      %126 = vector.load %arg3[%c0_40, %c0_41] : memref<16x512xbf16, #tpu.memory_space<vmem>>, vector<16x512xbf16>
      %127 = arith.extf %126 : vector<16x512xbf16> to vector<16x512xf32>
      %128 = vector.broadcast %125 : vector<16x1xf32> to vector<16x512xf32>
      %129 = arith.mulf %127, %128 : vector<16x512xf32>
      %130 = tpu.bitcast %129 : vector<16x512xf32> -> vector<16x512xi32>
      %c-2147483648_i32 = arith.constant -2147483648 : i32
      %131 = vector.broadcast %c-2147483648_i32 : i32 to vector<16x512xi32>
      %132 = arith.andi %130, %131 : vector<16x512xi32>
      %c2147483647_i32 = arith.constant 2147483647 : i32
      %133 = vector.broadcast %c2147483647_i32 : i32 to vector<16x512xi32>
      %134 = arith.andi %130, %133 : vector<16x512xi32>
      %c20_i32_42 = arith.constant 20 : i32
      %135 = vector.broadcast %c20_i32_42 : i32 to vector<16x512xi32>
      %136 = arith.shrui %134, %135 : vector<16x512xi32>
      %c1_i32 = arith.constant 1 : i32
      %137 = vector.broadcast %c1_i32 : i32 to vector<16x512xi32>
      %138 = arith.andi %136, %137 : vector<16x512xi32>
      %c524287_i32 = arith.constant 524287 : i32
      %139 = vector.broadcast %c524287_i32 : i32 to vector<16x512xi32>
      %140 = arith.addi %134, %139 : vector<16x512xi32>
      %141 = arith.addi %140, %138 : vector<16x512xi32>
      %c-1048576_i32 = arith.constant -1048576 : i32
      %142 = vector.broadcast %c-1048576_i32 : i32 to vector<16x512xi32>
      %143 = arith.andi %141, %142 : vector<16x512xi32>
      %144 = arith.ori %132, %143 : vector<16x512xi32>
      %145 = tpu.bitcast %144 : vector<16x512xi32> -> vector<16x512xf32>
      %cst_43 = arith.constant 2.457600e+04 : f32
      %146 = vector.broadcast %cst_43 : f32 to vector<16x512xf32>
      %147 = arith.addf %129, %146 : vector<16x512xf32>
      %cst_44 = arith.constant 2.457600e+04 : f32
      %148 = vector.broadcast %cst_44 : f32 to vector<16x512xf32>
      %149 = arith.subf %147, %148 : vector<16x512xf32>
      %150 = math.absf %129 : vector<16x512xf32>
      %cst_45 = arith.constant 1.562500e-02 : f32
      %151 = vector.broadcast %cst_45 : f32 to vector<16x512xf32>
      %152 = arith.cmpf oge, %150, %151 : vector<16x512xf32>
      %153 = arith.select %152, %145, %149 : vector<16x512xi1>, vector<16x512xf32>
      %154 = arith.truncf %153 : vector<16x512xf32> to vector<16x512xbf16>
      %155 = arith.index_cast %arg2 : i32 to index
      %c0_46 = arith.constant 0 : index
      %c0_47 = arith.constant 0 : index
      %156 = vector.load %arg10[%155, %c0_46, %c0_47] : memref<4x16x512xbf16, #tpu.memory_space<vmem>>, vector<1x16x512xbf16>
      %157 = vector.shape_cast %156 : vector<1x16x512xbf16> to vector<16x512xbf16>
      %158 = vector.shape_cast %154 : vector<16x512xbf16> to vector<1x16x512xbf16>
      tpu.vector_store %arg10[%155, %c0_46, %c0_47], %158 {strides = array<i32>} : memref<4x16x512xbf16, #tpu.memory_space<vmem>>, vector<1x16x512xbf16>,
    } else {
    }
    %6 = arith.index_cast %arg2 : i32 to index
    %c0 = arith.constant 0 : index
    %c0_3 = arith.constant 0 : index
    %7 = vector.load %arg10[%6, %c0, %c0_3] : memref<4x16x512xbf16, #tpu.memory_space<vmem>>, vector<1x16x512xbf16>
    %8 = vector.shape_cast %7 : vector<1x16x512xbf16> to vector<16x512xbf16>
    %c0_4 = arith.constant 0 : index
    %c0_5 = arith.constant 0 : index
    %9 = vector.load %arg5[%c0_4, %c0_5] : memref<64x256xi32, #tpu.memory_space<vmem>>, vector<64x256xi32>
    %c0_6 = arith.constant 0 : index
    %c0_7 = arith.constant 0 : index
    %10 = vector.load %arg6[%c0_6, %c0_7] : memref<8x256xf32, #tpu.memory_space<vmem>>, vector<8x256xf32>
    %c0_i32_8 = arith.constant 0 : i32
    %11 = vector.broadcast %c0_i32_8 : i32 to vector<64x256xi32>
    %12 = arith.shrui %9, %11 : vector<64x256xi32>
    %c15_i32 = arith.constant 15 : i32
    %13 = vector.broadcast %c15_i32 : i32 to vector<64x256xi32>
    %14 = arith.andi %12, %13 : vector<64x256xi32>
    %c8_i32 = arith.constant 8 : i32
    %15 = vector.broadcast %c8_i32 : i32 to vector<64x256xi32>
    %16 = arith.xori %14, %15 : vector<64x256xi32>
    %c8_i32_9 = arith.constant 8 : i32
    %17 = vector.broadcast %c8_i32_9 : i32 to vector<64x256xi32>
    %18 = arith.subi %16, %17 : vector<64x256xi32>
    %19 = arith.sitofp %18 : vector<64x256xi32> to vector<64x256xf32>
    %20 = vector.extract_strided_slice %10 {offsets = [0, 0], sizes = [1, 256], strides = [1, 1]} : vector<8x256xf32> to vector<1x256xf32>
    %21 = vector.broadcast %20 : vector<1x256xf32> to vector<64x256xf32>
    %22 = arith.mulf %19, %21 : vector<64x256xf32>
    %23 = arith.truncf %22 : vector<64x256xf32> to vector<64x256xbf16>
    %c4_i32 = arith.constant 4 : i32
    %24 = vector.broadcast %c4_i32 : i32 to vector<64x256xi32>
    %25 = arith.shrui %9, %24 : vector<64x256xi32>
    %c15_i32_10 = arith.constant 15 : i32
    %26 = vector.broadcast %c15_i32_10 : i32 to vector<64x256xi32>
    %27 = arith.andi %25, %26 : vector<64x256xi32>
    %c8_i32_11 = arith.constant 8 : i32
    %28 = vector.broadcast %c8_i32_11 : i32 to vector<64x256xi32>
    %29 = arith.xori %27, %28 : vector<64x256xi32>
    %c8_i32_12 = arith.constant 8 : i32
    %30 = vector.broadcast %c8_i32_12 : i32 to vector<64x256xi32>
    %31 = arith.subi %29, %30 : vector<64x256xi32>
    %32 = arith.sitofp %31 : vector<64x256xi32> to vector<64x256xf32>
    %33 = vector.extract_strided_slice %10 {offsets = [1, 0], sizes = [1, 256], strides = [1, 1]} : vector<8x256xf32> to vector<1x256xf32>
    %34 = vector.broadcast %33 : vector<1x256xf32> to vector<64x256xf32>
    %35 = arith.mulf %32, %34 : vector<64x256xf32>
    %36 = arith.truncf %35 : vector<64x256xf32> to vector<64x256xbf16>
    %c8_i32_13 = arith.constant 8 : i32
    %37 = vector.broadcast %c8_i32_13 : i32 to vector<64x256xi32>
    %38 = arith.shrui %9, %37 : vector<64x256xi32>
    %c15_i32_14 = arith.constant 15 : i32
    %39 = vector.broadcast %c15_i32_14 : i32 to vector<64x256xi32>
    %40 = arith.andi %38, %39 : vector<64x256xi32>
    %c8_i32_15 = arith.constant 8 : i32
    %41 = vector.broadcast %c8_i32_15 : i32 to vector<64x256xi32>
    %42 = arith.xori %40, %41 : vector<64x256xi32>
    %c8_i32_16 = arith.constant 8 : i32
    %43 = vector.broadcast %c8_i32_16 : i32 to vector<64x256xi32>
    %44 = arith.subi %42, %43 : vector<64x256xi32>
    %45 = arith.sitofp %44 : vector<64x256xi32> to vector<64x256xf32>
    %46 = vector.extract_strided_slice %10 {offsets = [2, 0], sizes = [1, 256], strides = [1, 1]} : vector<8x256xf32> to vector<1x256xf32>
    %47 = vector.broadcast %46 : vector<1x256xf32> to vector<64x256xf32>
    %48 = arith.mulf %45, %47 : vector<64x256xf32>
    %49 = arith.truncf %48 : vector<64x256xf32> to vector<64x256xbf16>
    %c12_i32 = arith.constant 12 : i32
    %50 = vector.broadcast %c12_i32 : i32 to vector<64x256xi32>
    %51 = arith.shrui %9, %50 : vector<64x256xi32>
    %c15_i32_17 = arith.constant 15 : i32
    %52 = vector.broadcast %c15_i32_17 : i32 to vector<64x256xi32>
    %53 = arith.andi %51, %52 : vector<64x256xi32>
    %c8_i32_18 = arith.constant 8 : i32
    %54 = vector.broadcast %c8_i32_18 : i32 to vector<64x256xi32>
    %55 = arith.xori %53, %54 : vector<64x256xi32>
    %c8_i32_19 = arith.constant 8 : i32
    %56 = vector.broadcast %c8_i32_19 : i32 to vector<64x256xi32>
    %57 = arith.subi %55, %56 : vector<64x256xi32>
    %58 = arith.sitofp %57 : vector<64x256xi32> to vector<64x256xf32>
    %59 = vector.extract_strided_slice %10 {offsets = [3, 0], sizes = [1, 256], strides = [1, 1]} : vector<8x256xf32> to vector<1x256xf32>
    %60 = vector.broadcast %59 : vector<1x256xf32> to vector<64x256xf32>
    %61 = arith.mulf %58, %60 : vector<64x256xf32>
    %62 = arith.truncf %61 : vector<64x256xf32> to vector<64x256xbf16>
    %c16_i32 = arith.constant 16 : i32
    %63 = vector.broadcast %c16_i32 : i32 to vector<64x256xi32>
    %64 = arith.shrui %9, %63 : vector<64x256xi32>
    %c15_i32_20 = arith.constant 15 : i32
    %65 = vector.broadcast %c15_i32_20 : i32 to vector<64x256xi32>
    %66 = arith.andi %64, %65 : vector<64x256xi32>
    %c8_i32_21 = arith.constant 8 : i32
    %67 = vector.broadcast %c8_i32_21 : i32 to vector<64x256xi32>
    %68 = arith.xori %66, %67 : vector<64x256xi32>
    %c8_i32_22 = arith.constant 8 : i32
    %69 = vector.broadcast %c8_i32_22 : i32 to vector<64x256xi32>
    %70 = arith.subi %68, %69 : vector<64x256xi32>
    %71 = arith.sitofp %70 : vector<64x256xi32> to vector<64x256xf32>
    %72 = vector.extract_strided_slice %10 {offsets = [4, 0], sizes = [1, 256], strides = [1, 1]} : vector<8x256xf32> to vector<1x256xf32>
    %73 = vector.broadcast %72 : vector<1x256xf32> to vector<64x256xf32>
    %74 = arith.mulf %71, %73 : vector<64x256xf32>
    %75 = arith.truncf %74 : vector<64x256xf32> to vector<64x256xbf16>
    %c20_i32 = arith.constant 20 : i32
    %76 = vector.broadcast %c20_i32 : i32 to vector<64x256xi32>
    %77 = arith.shrui %9, %76 : vector<64x256xi32>
    %c15_i32_23 = arith.constant 15 : i32
    %78 = vector.broadcast %c15_i32_23 : i32 to vector<64x256xi32>
    %79 = arith.andi %77, %78 : vector<64x256xi32>
    %c8_i32_24 = arith.constant 8 : i32
    %80 = vector.broadcast %c8_i32_24 : i32 to vector<64x256xi32>
    %81 = arith.xori %79, %80 : vector<64x256xi32>
    %c8_i32_25 = arith.constant 8 : i32
    %82 = vector.broadcast %c8_i32_25 : i32 to vector<64x256xi32>
    %83 = arith.subi %81, %82 : vector<64x256xi32>
    %84 = arith.sitofp %83 : vector<64x256xi32> to vector<64x256xf32>
    %85 = vector.extract_strided_slice %10 {offsets = [5, 0], sizes = [1, 256], strides = [1, 1]} : vector<8x256xf32> to vector<1x256xf32>
    %86 = vector.broadcast %85 : vector<1x256xf32> to vector<64x256xf32>
    %87 = arith.mulf %84, %86 : vector<64x256xf32>
    %88 = arith.truncf %87 : vector<64x256xf32> to vector<64x256xbf16>
    %c24_i32 = arith.constant 24 : i32
    %89 = vector.broadcast %c24_i32 : i32 to vector<64x256xi32>
    %90 = arith.shrui %9, %89 : vector<64x256xi32>
    %c15_i32_26 = arith.constant 15 : i32
    %91 = vector.broadcast %c15_i32_26 : i32 to vector<64x256xi32>
    %92 = arith.andi %90, %91 : vector<64x256xi32>
    %c8_i32_27 = arith.constant 8 : i32
    %93 = vector.broadcast %c8_i32_27 : i32 to vector<64x256xi32>
    %94 = arith.xori %92, %93 : vector<64x256xi32>
    %c8_i32_28 = arith.constant 8 : i32
    %95 = vector.broadcast %c8_i32_28 : i32 to vector<64x256xi32>
    %96 = arith.subi %94, %95 : vector<64x256xi32>
    %97 = arith.sitofp %96 : vector<64x256xi32> to vector<64x256xf32>
    %98 = vector.extract_strided_slice %10 {offsets = [6, 0], sizes = [1, 256], strides = [1, 1]} : vector<8x256xf32> to vector<1x256xf32>
    %99 = vector.broadcast %98 : vector<1x256xf32> to vector<64x256xf32>
    %100 = arith.mulf %97, %99 : vector<64x256xf32>
    %101 = arith.truncf %100 : vector<64x256xf32> to vector<64x256xbf16>
    %c28_i32 = arith.constant 28 : i32
    %102 = vector.broadcast %c28_i32 : i32 to vector<64x256xi32>
    %103 = arith.shrui %9, %102 : vector<64x256xi32>
    %c15_i32_29 = arith.constant 15 : i32
    %104 = vector.broadcast %c15_i32_29 : i32 to vector<64x256xi32>
    %105 = arith.andi %103, %104 : vector<64x256xi32>
    %c8_i32_30 = arith.constant 8 : i32
    %106 = vector.broadcast %c8_i32_30 : i32 to vector<64x256xi32>
    %107 = arith.xori %105, %106 : vector<64x256xi32>
    %c8_i32_31 = arith.constant 8 : i32
    %108 = vector.broadcast %c8_i32_31 : i32 to vector<64x256xi32>
    %109 = arith.subi %107, %108 : vector<64x256xi32>
    %110 = arith.sitofp %109 : vector<64x256xi32> to vector<64x256xf32>
    %111 = vector.extract_strided_slice %10 {offsets = [7, 0], sizes = [1, 256], strides = [1, 1]} : vector<8x256xf32> to vector<1x256xf32>
    %112 = vector.broadcast %111 : vector<1x256xf32> to vector<64x256xf32>
    %113 = arith.mulf %110, %112 : vector<64x256xf32>
    %114 = arith.truncf %113 : vector<64x256xf32> to vector<64x256xbf16>
    %115 = tpu.concatenate %23, %36, %49, %62, %75, %88, %101, %114 in 0 : vector<64x256xbf16>, vector<64x256xbf16>, vector<64x256xbf16>, vector<64x256xbf16>, vector<64x256xbf16>, vector<64x256xbf16>, vector<64x256xbf16>, vector<64x256xbf16> -> vector<512x256xbf16>
    %c0_32 = arith.constant 0 : index
    %c0_33 = arith.constant 0 : index
    %116 = vector.load %arg9[%c0_32, %c0_33] : memref<16x256xf32, #tpu.memory_space<vmem>>, vector<16x256xf32>
    %cst = arith.constant dense<0.000000e+00> : vector<16x256xf32>
    %117 = tpu.matmul %8, %115, %cst {dimension_numbers = #tpu.dot_dimension_numbers<[1], [0], [0], [1], [0, 0, 1, 1], [], []>} : vector<16x512xbf16>, vector<512x256xbf16>, vector<16x256xf32> -> vector<16x256xf32>
    %118 = arith.addf %116, %117 : vector<16x256xf32>
    %c0_34 = arith.constant 0 : index
    %c0_35 = arith.constant 0 : index
    %119 = vector.load %arg9[%c0_34, %c0_35] : memref<16x256xf32, #tpu.memory_space<vmem>>, vector<16x256xf32>
    tpu.vector_store %arg9[%c0_34, %c0_35], %118 {strides = array<i32>} : memref<16x256xf32, #tpu.memory_space<vmem>>, vector<16x256xf32>,
    %c3_i32 = arith.constant 3 : i32
    %120 = arith.cmpi eq, %arg2, %c3_i32 : i32
    %121 = arith.extui %120 : i1 to i32
    %c0_i32_36 = arith.constant 0 : i32
    %122 = arith.cmpi ne, %121, %c0_i32_36 : i32
    scf.if %122 {
      %c0_37 = arith.constant 0 : index
      %c0_38 = arith.constant 0 : index
      %123 = vector.load %arg9[%c0_37, %c0_38] : memref<16x256xf32, #tpu.memory_space<vmem>>, vector<16x256xf32>
      %c0_39 = arith.constant 0 : index
      %c0_40 = arith.constant 0 : index
      %124 = vector.load %arg4[%c0_39, %c0_40] : memref<16x1xf32, #tpu.memory_space<vmem>>, vector<16x1xf32>
      %125 = vector.broadcast %124 : vector<16x1xf32> to vector<16x256xf32>
      %126 = arith.mulf %123, %125 : vector<16x256xf32>
      %c0_41 = arith.constant 0 : index
      %c0_42 = arith.constant 0 : index
      %127 = vector.load %arg7[%c0_41, %c0_42] : memref<16x256xbf16, #tpu.memory_space<vmem>>, vector<16x256xbf16>
      %128 = arith.extf %127 : vector<16x256xbf16> to vector<16x256xf32>
      %129 = arith.addf %126, %128 : vector<16x256xf32>
      %130 = arith.truncf %129 : vector<16x256xf32> to vector<16x256xbf16>
      %c0_43 = arith.constant 0 : index
      %c0_44 = arith.constant 0 : index
      %131 = vector.load %arg8[%c0_43, %c0_44] : memref<16x256xbf16, #tpu.memory_space<vmem>>, vector<16x256xbf16>
      tpu.vector_store %arg8[%c0_43, %c0_44], %130 {strides = array<i32>} : memref<16x256xbf16, #tpu.memory_space<vmem>>, vector<16x256xbf16>,
    } else {
    }
    return
  }
  func.func @transform_0(%arg0: i32, %arg1: i32, %arg2: i32) -> (i32, i32) {
    %c0_i32 = arith.constant 0 : i32
    %0 = arith.cmpi eq, %arg1, %c0_i32 : i32
    %c0_i32_0 = arith.constant 0 : i32
    %1 = arith.select %0, %arg2, %c0_i32_0 : i32
    %c0_i32_1 = arith.constant 0 : i32
    return %arg0, %1 : i32, i32
  }
  func.func @transform_1(%arg0: i32, %arg1: i32, %arg2: i32) -> (i32, i32) {
    %c0_i32 = arith.constant 0 : i32
    %c0_i32_0 = arith.constant 0 : i32
    return %arg0, %c0_i32 : i32, i32
  }
  func.func @transform_2(%arg0: i32, %arg1: i32, %arg2: i32) -> (i32, i32) {
    %c0_i32 = arith.constant 0 : i32
    return %arg2, %arg1 : i32, i32
  }
  func.func @transform_3(%arg0: i32, %arg1: i32, %arg2: i32) -> (i32, i32) {
    %c0_i32 = arith.constant 0 : i32
    return %arg2, %arg1 : i32, i32
  }
  func.func @transform_4(%arg0: i32, %arg1: i32, %arg2: i32) -> (i32, i32) {
    %c0_i32 = arith.constant 0 : i32
    return %arg0, %arg1 : i32, i32
  }
  func.func @transform_5(%arg0: i32, %arg1: i32, %arg2: i32) -> (i32, i32) {
    %c0_i32 = arith.constant 0 : i32
    return %arg0, %arg1 : i32, i32
  }
}

module attributes {stable_mosaic.version = 11 : i64} {
  func.func @kernel(%arg0: i32, %arg1: i32, %arg2: i32, %arg3: memref<16x512xbf16, #tpu.memory_space<vmem>>, %arg4: memref<16x1xf32, #tpu.memory_space<vmem>>, %arg5: memref<64x256xi32, #tpu.memory_space<vmem>>, %arg6: memref<8x256xf32, #tpu.memory_space<vmem>>, %arg7: memref<64x256xi32, #tpu.memory_space<vmem>>, %arg8: memref<8x256xf32, #tpu.memory_space<vmem>>, %arg9: memref<16x256xbf16, #tpu.memory_space<vmem>>, %arg10: memref<1x16x1xf32, #tpu.memory_space<vmem>>, %arg11: memref<16x256xf32, #tpu.memory_space<vmem>>, %arg12: memref<16x256xf32, #tpu.memory_space<vmem>>) attributes {dimension_semantics = [#tpu.dimension_semantics<parallel>, #tpu.dimension_semantics<parallel>, #tpu.dimension_semantics<arbitrary>], iteration_bounds = array<i64: 2, 8, 2>, scalar_prefetch = 0 : i64, scratch_operands = 2 : i64, tpu.core_type = #tpu.core_type<tc>, window_params = [{transform_indices = @transform_0, window_bounds = array<i64: 16, 512>}, {transform_indices = @transform_1, window_bounds = array<i64: 16, 1>}, {transform_indices = @transform_2, window_bounds = array<i64: 64, 256>}, {transform_indices = @transform_3, window_bounds = array<i64: 8, 256>}, {transform_indices = @transform_4, window_bounds = array<i64: 64, 256>}, {transform_indices = @transform_5, window_bounds = array<i64: 8, 256>}, {transform_indices = @transform_6, window_bounds = array<i64: 16, 256>}, {transform_indices = @transform_7, window_bounds = array<i64: 1, 16, 1>}]} {
    %c0_i32 = arith.constant 0 : i32
    %0 = arith.cmpi eq, %arg2, %c0_i32 : i32
    %1 = arith.extui %0 : i1 to i32
    %c0_i32_0 = arith.constant 0 : i32
    %2 = arith.cmpi ne, %1, %c0_i32_0 : i32
    scf.if %2 {
      %cst_76 = arith.constant 0.000000e+00 : f32
      %229 = vector.broadcast %cst_76 : f32 to vector<16x256xf32>
      %c0_77 = arith.constant 0 : index
      %c0_78 = arith.constant 0 : index
      %230 = vector.load %arg11[%c0_77, %c0_78] : memref<16x256xf32, #tpu.memory_space<vmem>>, vector<16x256xf32>
      tpu.vector_store %arg11[%c0_77, %c0_78], %229 {strides = array<i32>} : memref<16x256xf32, #tpu.memory_space<vmem>>, vector<16x256xf32>,
      %cst_79 = arith.constant 0.000000e+00 : f32
      %231 = vector.broadcast %cst_79 : f32 to vector<16x256xf32>
      %c0_80 = arith.constant 0 : index
      %c0_81 = arith.constant 0 : index
      %232 = vector.load %arg12[%c0_80, %c0_81] : memref<16x256xf32, #tpu.memory_space<vmem>>, vector<16x256xf32>
      tpu.vector_store %arg12[%c0_80, %c0_81], %231 {strides = array<i32>} : memref<16x256xf32, #tpu.memory_space<vmem>>, vector<16x256xf32>,
    } else {
    }
    %c0 = arith.constant 0 : index
    %c0_1 = arith.constant 0 : index
    %3 = vector.load %arg3[%c0, %c0_1] : memref<16x512xbf16, #tpu.memory_space<vmem>>, vector<16x512xbf16>
    %c0_2 = arith.constant 0 : index
    %c0_3 = arith.constant 0 : index
    %4 = vector.load %arg5[%c0_2, %c0_3] : memref<64x256xi32, #tpu.memory_space<vmem>>, vector<64x256xi32>
    %c0_4 = arith.constant 0 : index
    %c0_5 = arith.constant 0 : index
    %5 = vector.load %arg6[%c0_4, %c0_5] : memref<8x256xf32, #tpu.memory_space<vmem>>, vector<8x256xf32>
    %c0_i32_6 = arith.constant 0 : i32
    %6 = vector.broadcast %c0_i32_6 : i32 to vector<64x256xi32>
    %7 = arith.shrui %4, %6 : vector<64x256xi32>
    %c15_i32 = arith.constant 15 : i32
    %8 = vector.broadcast %c15_i32 : i32 to vector<64x256xi32>
    %9 = arith.andi %7, %8 : vector<64x256xi32>
    %c8_i32 = arith.constant 8 : i32
    %10 = vector.broadcast %c8_i32 : i32 to vector<64x256xi32>
    %11 = arith.xori %9, %10 : vector<64x256xi32>
    %c8_i32_7 = arith.constant 8 : i32
    %12 = vector.broadcast %c8_i32_7 : i32 to vector<64x256xi32>
    %13 = arith.subi %11, %12 : vector<64x256xi32>
    %14 = arith.sitofp %13 : vector<64x256xi32> to vector<64x256xf32>
    %15 = vector.extract_strided_slice %5 {offsets = [0, 0], sizes = [1, 256], strides = [1, 1]} : vector<8x256xf32> to vector<1x256xf32>
    %16 = vector.broadcast %15 : vector<1x256xf32> to vector<64x256xf32>
    %17 = arith.mulf %14, %16 : vector<64x256xf32>
    %18 = arith.truncf %17 : vector<64x256xf32> to vector<64x256xbf16>
    %c4_i32 = arith.constant 4 : i32
    %19 = vector.broadcast %c4_i32 : i32 to vector<64x256xi32>
    %20 = arith.shrui %4, %19 : vector<64x256xi32>
    %c15_i32_8 = arith.constant 15 : i32
    %21 = vector.broadcast %c15_i32_8 : i32 to vector<64x256xi32>
    %22 = arith.andi %20, %21 : vector<64x256xi32>
    %c8_i32_9 = arith.constant 8 : i32
    %23 = vector.broadcast %c8_i32_9 : i32 to vector<64x256xi32>
    %24 = arith.xori %22, %23 : vector<64x256xi32>
    %c8_i32_10 = arith.constant 8 : i32
    %25 = vector.broadcast %c8_i32_10 : i32 to vector<64x256xi32>
    %26 = arith.subi %24, %25 : vector<64x256xi32>
    %27 = arith.sitofp %26 : vector<64x256xi32> to vector<64x256xf32>
    %28 = vector.extract_strided_slice %5 {offsets = [1, 0], sizes = [1, 256], strides = [1, 1]} : vector<8x256xf32> to vector<1x256xf32>
    %29 = vector.broadcast %28 : vector<1x256xf32> to vector<64x256xf32>
    %30 = arith.mulf %27, %29 : vector<64x256xf32>
    %31 = arith.truncf %30 : vector<64x256xf32> to vector<64x256xbf16>
    %c8_i32_11 = arith.constant 8 : i32
    %32 = vector.broadcast %c8_i32_11 : i32 to vector<64x256xi32>
    %33 = arith.shrui %4, %32 : vector<64x256xi32>
    %c15_i32_12 = arith.constant 15 : i32
    %34 = vector.broadcast %c15_i32_12 : i32 to vector<64x256xi32>
    %35 = arith.andi %33, %34 : vector<64x256xi32>
    %c8_i32_13 = arith.constant 8 : i32
    %36 = vector.broadcast %c8_i32_13 : i32 to vector<64x256xi32>
    %37 = arith.xori %35, %36 : vector<64x256xi32>
    %c8_i32_14 = arith.constant 8 : i32
    %38 = vector.broadcast %c8_i32_14 : i32 to vector<64x256xi32>
    %39 = arith.subi %37, %38 : vector<64x256xi32>
    %40 = arith.sitofp %39 : vector<64x256xi32> to vector<64x256xf32>
    %41 = vector.extract_strided_slice %5 {offsets = [2, 0], sizes = [1, 256], strides = [1, 1]} : vector<8x256xf32> to vector<1x256xf32>
    %42 = vector.broadcast %41 : vector<1x256xf32> to vector<64x256xf32>
    %43 = arith.mulf %40, %42 : vector<64x256xf32>
    %44 = arith.truncf %43 : vector<64x256xf32> to vector<64x256xbf16>
    %c12_i32 = arith.constant 12 : i32
    %45 = vector.broadcast %c12_i32 : i32 to vector<64x256xi32>
    %46 = arith.shrui %4, %45 : vector<64x256xi32>
    %c15_i32_15 = arith.constant 15 : i32
    %47 = vector.broadcast %c15_i32_15 : i32 to vector<64x256xi32>
    %48 = arith.andi %46, %47 : vector<64x256xi32>
    %c8_i32_16 = arith.constant 8 : i32
    %49 = vector.broadcast %c8_i32_16 : i32 to vector<64x256xi32>
    %50 = arith.xori %48, %49 : vector<64x256xi32>
    %c8_i32_17 = arith.constant 8 : i32
    %51 = vector.broadcast %c8_i32_17 : i32 to vector<64x256xi32>
    %52 = arith.subi %50, %51 : vector<64x256xi32>
    %53 = arith.sitofp %52 : vector<64x256xi32> to vector<64x256xf32>
    %54 = vector.extract_strided_slice %5 {offsets = [3, 0], sizes = [1, 256], strides = [1, 1]} : vector<8x256xf32> to vector<1x256xf32>
    %55 = vector.broadcast %54 : vector<1x256xf32> to vector<64x256xf32>
    %56 = arith.mulf %53, %55 : vector<64x256xf32>
    %57 = arith.truncf %56 : vector<64x256xf32> to vector<64x256xbf16>
    %c16_i32 = arith.constant 16 : i32
    %58 = vector.broadcast %c16_i32 : i32 to vector<64x256xi32>
    %59 = arith.shrui %4, %58 : vector<64x256xi32>
    %c15_i32_18 = arith.constant 15 : i32
    %60 = vector.broadcast %c15_i32_18 : i32 to vector<64x256xi32>
    %61 = arith.andi %59, %60 : vector<64x256xi32>
    %c8_i32_19 = arith.constant 8 : i32
    %62 = vector.broadcast %c8_i32_19 : i32 to vector<64x256xi32>
    %63 = arith.xori %61, %62 : vector<64x256xi32>
    %c8_i32_20 = arith.constant 8 : i32
    %64 = vector.broadcast %c8_i32_20 : i32 to vector<64x256xi32>
    %65 = arith.subi %63, %64 : vector<64x256xi32>
    %66 = arith.sitofp %65 : vector<64x256xi32> to vector<64x256xf32>
    %67 = vector.extract_strided_slice %5 {offsets = [4, 0], sizes = [1, 256], strides = [1, 1]} : vector<8x256xf32> to vector<1x256xf32>
    %68 = vector.broadcast %67 : vector<1x256xf32> to vector<64x256xf32>
    %69 = arith.mulf %66, %68 : vector<64x256xf32>
    %70 = arith.truncf %69 : vector<64x256xf32> to vector<64x256xbf16>
    %c20_i32 = arith.constant 20 : i32
    %71 = vector.broadcast %c20_i32 : i32 to vector<64x256xi32>
    %72 = arith.shrui %4, %71 : vector<64x256xi32>
    %c15_i32_21 = arith.constant 15 : i32
    %73 = vector.broadcast %c15_i32_21 : i32 to vector<64x256xi32>
    %74 = arith.andi %72, %73 : vector<64x256xi32>
    %c8_i32_22 = arith.constant 8 : i32
    %75 = vector.broadcast %c8_i32_22 : i32 to vector<64x256xi32>
    %76 = arith.xori %74, %75 : vector<64x256xi32>
    %c8_i32_23 = arith.constant 8 : i32
    %77 = vector.broadcast %c8_i32_23 : i32 to vector<64x256xi32>
    %78 = arith.subi %76, %77 : vector<64x256xi32>
    %79 = arith.sitofp %78 : vector<64x256xi32> to vector<64x256xf32>
    %80 = vector.extract_strided_slice %5 {offsets = [5, 0], sizes = [1, 256], strides = [1, 1]} : vector<8x256xf32> to vector<1x256xf32>
    %81 = vector.broadcast %80 : vector<1x256xf32> to vector<64x256xf32>
    %82 = arith.mulf %79, %81 : vector<64x256xf32>
    %83 = arith.truncf %82 : vector<64x256xf32> to vector<64x256xbf16>
    %c24_i32 = arith.constant 24 : i32
    %84 = vector.broadcast %c24_i32 : i32 to vector<64x256xi32>
    %85 = arith.shrui %4, %84 : vector<64x256xi32>
    %c15_i32_24 = arith.constant 15 : i32
    %86 = vector.broadcast %c15_i32_24 : i32 to vector<64x256xi32>
    %87 = arith.andi %85, %86 : vector<64x256xi32>
    %c8_i32_25 = arith.constant 8 : i32
    %88 = vector.broadcast %c8_i32_25 : i32 to vector<64x256xi32>
    %89 = arith.xori %87, %88 : vector<64x256xi32>
    %c8_i32_26 = arith.constant 8 : i32
    %90 = vector.broadcast %c8_i32_26 : i32 to vector<64x256xi32>
    %91 = arith.subi %89, %90 : vector<64x256xi32>
    %92 = arith.sitofp %91 : vector<64x256xi32> to vector<64x256xf32>
    %93 = vector.extract_strided_slice %5 {offsets = [6, 0], sizes = [1, 256], strides = [1, 1]} : vector<8x256xf32> to vector<1x256xf32>
    %94 = vector.broadcast %93 : vector<1x256xf32> to vector<64x256xf32>
    %95 = arith.mulf %92, %94 : vector<64x256xf32>
    %96 = arith.truncf %95 : vector<64x256xf32> to vector<64x256xbf16>
    %c28_i32 = arith.constant 28 : i32
    %97 = vector.broadcast %c28_i32 : i32 to vector<64x256xi32>
    %98 = arith.shrui %4, %97 : vector<64x256xi32>
    %c15_i32_27 = arith.constant 15 : i32
    %99 = vector.broadcast %c15_i32_27 : i32 to vector<64x256xi32>
    %100 = arith.andi %98, %99 : vector<64x256xi32>
    %c8_i32_28 = arith.constant 8 : i32
    %101 = vector.broadcast %c8_i32_28 : i32 to vector<64x256xi32>
    %102 = arith.xori %100, %101 : vector<64x256xi32>
    %c8_i32_29 = arith.constant 8 : i32
    %103 = vector.broadcast %c8_i32_29 : i32 to vector<64x256xi32>
    %104 = arith.subi %102, %103 : vector<64x256xi32>
    %105 = arith.sitofp %104 : vector<64x256xi32> to vector<64x256xf32>
    %106 = vector.extract_strided_slice %5 {offsets = [7, 0], sizes = [1, 256], strides = [1, 1]} : vector<8x256xf32> to vector<1x256xf32>
    %107 = vector.broadcast %106 : vector<1x256xf32> to vector<64x256xf32>
    %108 = arith.mulf %105, %107 : vector<64x256xf32>
    %109 = arith.truncf %108 : vector<64x256xf32> to vector<64x256xbf16>
    %110 = tpu.concatenate %18, %31, %44, %57, %70, %83, %96, %109 in 0 : vector<64x256xbf16>, vector<64x256xbf16>, vector<64x256xbf16>, vector<64x256xbf16>, vector<64x256xbf16>, vector<64x256xbf16>, vector<64x256xbf16>, vector<64x256xbf16> -> vector<512x256xbf16>
    %c0_30 = arith.constant 0 : index
    %c0_31 = arith.constant 0 : index
    %111 = vector.load %arg7[%c0_30, %c0_31] : memref<64x256xi32, #tpu.memory_space<vmem>>, vector<64x256xi32>
    %c0_32 = arith.constant 0 : index
    %c0_33 = arith.constant 0 : index
    %112 = vector.load %arg8[%c0_32, %c0_33] : memref<8x256xf32, #tpu.memory_space<vmem>>, vector<8x256xf32>
    %c0_i32_34 = arith.constant 0 : i32
    %113 = vector.broadcast %c0_i32_34 : i32 to vector<64x256xi32>
    %114 = arith.shrui %111, %113 : vector<64x256xi32>
    %c15_i32_35 = arith.constant 15 : i32
    %115 = vector.broadcast %c15_i32_35 : i32 to vector<64x256xi32>
    %116 = arith.andi %114, %115 : vector<64x256xi32>
    %c8_i32_36 = arith.constant 8 : i32
    %117 = vector.broadcast %c8_i32_36 : i32 to vector<64x256xi32>
    %118 = arith.xori %116, %117 : vector<64x256xi32>
    %c8_i32_37 = arith.constant 8 : i32
    %119 = vector.broadcast %c8_i32_37 : i32 to vector<64x256xi32>
    %120 = arith.subi %118, %119 : vector<64x256xi32>
    %121 = arith.sitofp %120 : vector<64x256xi32> to vector<64x256xf32>
    %122 = vector.extract_strided_slice %112 {offsets = [0, 0], sizes = [1, 256], strides = [1, 1]} : vector<8x256xf32> to vector<1x256xf32>
    %123 = vector.broadcast %122 : vector<1x256xf32> to vector<64x256xf32>
    %124 = arith.mulf %121, %123 : vector<64x256xf32>
    %125 = arith.truncf %124 : vector<64x256xf32> to vector<64x256xbf16>
    %c4_i32_38 = arith.constant 4 : i32
    %126 = vector.broadcast %c4_i32_38 : i32 to vector<64x256xi32>
    %127 = arith.shrui %111, %126 : vector<64x256xi32>
    %c15_i32_39 = arith.constant 15 : i32
    %128 = vector.broadcast %c15_i32_39 : i32 to vector<64x256xi32>
    %129 = arith.andi %127, %128 : vector<64x256xi32>
    %c8_i32_40 = arith.constant 8 : i32
    %130 = vector.broadcast %c8_i32_40 : i32 to vector<64x256xi32>
    %131 = arith.xori %129, %130 : vector<64x256xi32>
    %c8_i32_41 = arith.constant 8 : i32
    %132 = vector.broadcast %c8_i32_41 : i32 to vector<64x256xi32>
    %133 = arith.subi %131, %132 : vector<64x256xi32>
    %134 = arith.sitofp %133 : vector<64x256xi32> to vector<64x256xf32>
    %135 = vector.extract_strided_slice %112 {offsets = [1, 0], sizes = [1, 256], strides = [1, 1]} : vector<8x256xf32> to vector<1x256xf32>
    %136 = vector.broadcast %135 : vector<1x256xf32> to vector<64x256xf32>
    %137 = arith.mulf %134, %136 : vector<64x256xf32>
    %138 = arith.truncf %137 : vector<64x256xf32> to vector<64x256xbf16>
    %c8_i32_42 = arith.constant 8 : i32
    %139 = vector.broadcast %c8_i32_42 : i32 to vector<64x256xi32>
    %140 = arith.shrui %111, %139 : vector<64x256xi32>
    %c15_i32_43 = arith.constant 15 : i32
    %141 = vector.broadcast %c15_i32_43 : i32 to vector<64x256xi32>
    %142 = arith.andi %140, %141 : vector<64x256xi32>
    %c8_i32_44 = arith.constant 8 : i32
    %143 = vector.broadcast %c8_i32_44 : i32 to vector<64x256xi32>
    %144 = arith.xori %142, %143 : vector<64x256xi32>
    %c8_i32_45 = arith.constant 8 : i32
    %145 = vector.broadcast %c8_i32_45 : i32 to vector<64x256xi32>
    %146 = arith.subi %144, %145 : vector<64x256xi32>
    %147 = arith.sitofp %146 : vector<64x256xi32> to vector<64x256xf32>
    %148 = vector.extract_strided_slice %112 {offsets = [2, 0], sizes = [1, 256], strides = [1, 1]} : vector<8x256xf32> to vector<1x256xf32>
    %149 = vector.broadcast %148 : vector<1x256xf32> to vector<64x256xf32>
    %150 = arith.mulf %147, %149 : vector<64x256xf32>
    %151 = arith.truncf %150 : vector<64x256xf32> to vector<64x256xbf16>
    %c12_i32_46 = arith.constant 12 : i32
    %152 = vector.broadcast %c12_i32_46 : i32 to vector<64x256xi32>
    %153 = arith.shrui %111, %152 : vector<64x256xi32>
    %c15_i32_47 = arith.constant 15 : i32
    %154 = vector.broadcast %c15_i32_47 : i32 to vector<64x256xi32>
    %155 = arith.andi %153, %154 : vector<64x256xi32>
    %c8_i32_48 = arith.constant 8 : i32
    %156 = vector.broadcast %c8_i32_48 : i32 to vector<64x256xi32>
    %157 = arith.xori %155, %156 : vector<64x256xi32>
    %c8_i32_49 = arith.constant 8 : i32
    %158 = vector.broadcast %c8_i32_49 : i32 to vector<64x256xi32>
    %159 = arith.subi %157, %158 : vector<64x256xi32>
    %160 = arith.sitofp %159 : vector<64x256xi32> to vector<64x256xf32>
    %161 = vector.extract_strided_slice %112 {offsets = [3, 0], sizes = [1, 256], strides = [1, 1]} : vector<8x256xf32> to vector<1x256xf32>
    %162 = vector.broadcast %161 : vector<1x256xf32> to vector<64x256xf32>
    %163 = arith.mulf %160, %162 : vector<64x256xf32>
    %164 = arith.truncf %163 : vector<64x256xf32> to vector<64x256xbf16>
    %c16_i32_50 = arith.constant 16 : i32
    %165 = vector.broadcast %c16_i32_50 : i32 to vector<64x256xi32>
    %166 = arith.shrui %111, %165 : vector<64x256xi32>
    %c15_i32_51 = arith.constant 15 : i32
    %167 = vector.broadcast %c15_i32_51 : i32 to vector<64x256xi32>
    %168 = arith.andi %166, %167 : vector<64x256xi32>
    %c8_i32_52 = arith.constant 8 : i32
    %169 = vector.broadcast %c8_i32_52 : i32 to vector<64x256xi32>
    %170 = arith.xori %168, %169 : vector<64x256xi32>
    %c8_i32_53 = arith.constant 8 : i32
    %171 = vector.broadcast %c8_i32_53 : i32 to vector<64x256xi32>
    %172 = arith.subi %170, %171 : vector<64x256xi32>
    %173 = arith.sitofp %172 : vector<64x256xi32> to vector<64x256xf32>
    %174 = vector.extract_strided_slice %112 {offsets = [4, 0], sizes = [1, 256], strides = [1, 1]} : vector<8x256xf32> to vector<1x256xf32>
    %175 = vector.broadcast %174 : vector<1x256xf32> to vector<64x256xf32>
    %176 = arith.mulf %173, %175 : vector<64x256xf32>
    %177 = arith.truncf %176 : vector<64x256xf32> to vector<64x256xbf16>
    %c20_i32_54 = arith.constant 20 : i32
    %178 = vector.broadcast %c20_i32_54 : i32 to vector<64x256xi32>
    %179 = arith.shrui %111, %178 : vector<64x256xi32>
    %c15_i32_55 = arith.constant 15 : i32
    %180 = vector.broadcast %c15_i32_55 : i32 to vector<64x256xi32>
    %181 = arith.andi %179, %180 : vector<64x256xi32>
    %c8_i32_56 = arith.constant 8 : i32
    %182 = vector.broadcast %c8_i32_56 : i32 to vector<64x256xi32>
    %183 = arith.xori %181, %182 : vector<64x256xi32>
    %c8_i32_57 = arith.constant 8 : i32
    %184 = vector.broadcast %c8_i32_57 : i32 to vector<64x256xi32>
    %185 = arith.subi %183, %184 : vector<64x256xi32>
    %186 = arith.sitofp %185 : vector<64x256xi32> to vector<64x256xf32>
    %187 = vector.extract_strided_slice %112 {offsets = [5, 0], sizes = [1, 256], strides = [1, 1]} : vector<8x256xf32> to vector<1x256xf32>
    %188 = vector.broadcast %187 : vector<1x256xf32> to vector<64x256xf32>
    %189 = arith.mulf %186, %188 : vector<64x256xf32>
    %190 = arith.truncf %189 : vector<64x256xf32> to vector<64x256xbf16>
    %c24_i32_58 = arith.constant 24 : i32
    %191 = vector.broadcast %c24_i32_58 : i32 to vector<64x256xi32>
    %192 = arith.shrui %111, %191 : vector<64x256xi32>
    %c15_i32_59 = arith.constant 15 : i32
    %193 = vector.broadcast %c15_i32_59 : i32 to vector<64x256xi32>
    %194 = arith.andi %192, %193 : vector<64x256xi32>
    %c8_i32_60 = arith.constant 8 : i32
    %195 = vector.broadcast %c8_i32_60 : i32 to vector<64x256xi32>
    %196 = arith.xori %194, %195 : vector<64x256xi32>
    %c8_i32_61 = arith.constant 8 : i32
    %197 = vector.broadcast %c8_i32_61 : i32 to vector<64x256xi32>
    %198 = arith.subi %196, %197 : vector<64x256xi32>
    %199 = arith.sitofp %198 : vector<64x256xi32> to vector<64x256xf32>
    %200 = vector.extract_strided_slice %112 {offsets = [6, 0], sizes = [1, 256], strides = [1, 1]} : vector<8x256xf32> to vector<1x256xf32>
    %201 = vector.broadcast %200 : vector<1x256xf32> to vector<64x256xf32>
    %202 = arith.mulf %199, %201 : vector<64x256xf32>
    %203 = arith.truncf %202 : vector<64x256xf32> to vector<64x256xbf16>
    %c28_i32_62 = arith.constant 28 : i32
    %204 = vector.broadcast %c28_i32_62 : i32 to vector<64x256xi32>
    %205 = arith.shrui %111, %204 : vector<64x256xi32>
    %c15_i32_63 = arith.constant 15 : i32
    %206 = vector.broadcast %c15_i32_63 : i32 to vector<64x256xi32>
    %207 = arith.andi %205, %206 : vector<64x256xi32>
    %c8_i32_64 = arith.constant 8 : i32
    %208 = vector.broadcast %c8_i32_64 : i32 to vector<64x256xi32>
    %209 = arith.xori %207, %208 : vector<64x256xi32>
    %c8_i32_65 = arith.constant 8 : i32
    %210 = vector.broadcast %c8_i32_65 : i32 to vector<64x256xi32>
    %211 = arith.subi %209, %210 : vector<64x256xi32>
    %212 = arith.sitofp %211 : vector<64x256xi32> to vector<64x256xf32>
    %213 = vector.extract_strided_slice %112 {offsets = [7, 0], sizes = [1, 256], strides = [1, 1]} : vector<8x256xf32> to vector<1x256xf32>
    %214 = vector.broadcast %213 : vector<1x256xf32> to vector<64x256xf32>
    %215 = arith.mulf %212, %214 : vector<64x256xf32>
    %216 = arith.truncf %215 : vector<64x256xf32> to vector<64x256xbf16>
    %217 = tpu.concatenate %125, %138, %151, %164, %177, %190, %203, %216 in 0 : vector<64x256xbf16>, vector<64x256xbf16>, vector<64x256xbf16>, vector<64x256xbf16>, vector<64x256xbf16>, vector<64x256xbf16>, vector<64x256xbf16>, vector<64x256xbf16> -> vector<512x256xbf16>
    %c0_66 = arith.constant 0 : index
    %c0_67 = arith.constant 0 : index
    %218 = vector.load %arg11[%c0_66, %c0_67] : memref<16x256xf32, #tpu.memory_space<vmem>>, vector<16x256xf32>
    %cst = arith.constant dense<0.000000e+00> : vector<16x256xf32>
    %219 = tpu.matmul %3, %110, %cst {dimension_numbers = #tpu.dot_dimension_numbers<[1], [0], [0], [1], [0, 0, 1, 1], [], []>} : vector<16x512xbf16>, vector<512x256xbf16>, vector<16x256xf32> -> vector<16x256xf32>
    %220 = arith.addf %218, %219 : vector<16x256xf32>
    %c0_68 = arith.constant 0 : index
    %c0_69 = arith.constant 0 : index
    %221 = vector.load %arg11[%c0_68, %c0_69] : memref<16x256xf32, #tpu.memory_space<vmem>>, vector<16x256xf32>
    tpu.vector_store %arg11[%c0_68, %c0_69], %220 {strides = array<i32>} : memref<16x256xf32, #tpu.memory_space<vmem>>, vector<16x256xf32>,
    %c0_70 = arith.constant 0 : index
    %c0_71 = arith.constant 0 : index
    %222 = vector.load %arg12[%c0_70, %c0_71] : memref<16x256xf32, #tpu.memory_space<vmem>>, vector<16x256xf32>
    %cst_72 = arith.constant dense<0.000000e+00> : vector<16x256xf32>
    %223 = tpu.matmul %3, %217, %cst_72 {dimension_numbers = #tpu.dot_dimension_numbers<[1], [0], [0], [1], [0, 0, 1, 1], [], []>} : vector<16x512xbf16>, vector<512x256xbf16>, vector<16x256xf32> -> vector<16x256xf32>
    %224 = arith.addf %222, %223 : vector<16x256xf32>
    %c0_73 = arith.constant 0 : index
    %c0_74 = arith.constant 0 : index
    %225 = vector.load %arg12[%c0_73, %c0_74] : memref<16x256xf32, #tpu.memory_space<vmem>>, vector<16x256xf32>
    tpu.vector_store %arg12[%c0_73, %c0_74], %224 {strides = array<i32>} : memref<16x256xf32, #tpu.memory_space<vmem>>, vector<16x256xf32>,
    %c1_i32 = arith.constant 1 : i32
    %226 = arith.cmpi eq, %arg2, %c1_i32 : i32
    %227 = arith.extui %226 : i1 to i32
    %c0_i32_75 = arith.constant 0 : i32
    %228 = arith.cmpi ne, %227, %c0_i32_75 : i32
    scf.if %228 {
      %c0_76 = arith.constant 0 : index
      %c0_77 = arith.constant 0 : index
      %229 = vector.load %arg4[%c0_76, %c0_77] : memref<16x1xf32, #tpu.memory_space<vmem>>, vector<16x1xf32>
      %c0_78 = arith.constant 0 : index
      %c0_79 = arith.constant 0 : index
      %230 = vector.load %arg11[%c0_78, %c0_79] : memref<16x256xf32, #tpu.memory_space<vmem>>, vector<16x256xf32>
      %231 = vector.broadcast %229 : vector<16x1xf32> to vector<16x256xf32>
      %232 = arith.mulf %230, %231 : vector<16x256xf32>
      %c0_80 = arith.constant 0 : index
      %c0_81 = arith.constant 0 : index
      %233 = vector.load %arg12[%c0_80, %c0_81] : memref<16x256xf32, #tpu.memory_space<vmem>>, vector<16x256xf32>
      %234 = vector.broadcast %229 : vector<16x1xf32> to vector<16x256xf32>
      %235 = arith.mulf %233, %234 : vector<16x256xf32>
      %236 = arith.negf %232 : vector<16x256xf32>
      %237 = math.exp %236 : vector<16x256xf32>
      %cst_82 = arith.constant 1.000000e+00 : f32
      %238 = vector.broadcast %cst_82 : f32 to vector<16x256xf32>
      %239 = arith.addf %238, %237 : vector<16x256xf32>
      %240 = arith.divf %238, %239 : vector<16x256xf32>
      %241 = arith.mulf %232, %240 : vector<16x256xf32>
      %242 = arith.mulf %235, %241 : vector<16x256xf32>
      %243 = arith.truncf %242 : vector<16x256xf32> to vector<16x256xbf16>
      %c0_83 = arith.constant 0 : index
      %c0_84 = arith.constant 0 : index
      %244 = vector.load %arg9[%c0_83, %c0_84] : memref<16x256xbf16, #tpu.memory_space<vmem>>, vector<16x256xbf16>
      tpu.vector_store %arg9[%c0_83, %c0_84], %243 {strides = array<i32>} : memref<16x256xbf16, #tpu.memory_space<vmem>>, vector<16x256xbf16>,
      %245 = arith.extf %243 : vector<16x256xbf16> to vector<16x256xf32>
      %246 = math.absf %245 : vector<16x256xf32>
      %cst_85 = arith.constant dense<0xFF800000> : vector<16xf32>
      %247 = vector.multi_reduction <maximumf>, %246, %cst_85 [1] : vector<16x256xf32> to vector<16xf32>
      %248 = vector.shape_cast %247 : vector<16xf32> to vector<16x1xf32>
      %249 = vector.shape_cast %248 : vector<16x1xf32> to vector<1x16x1xf32>
      %c0_86 = arith.constant 0 : index
      %c0_87 = arith.constant 0 : index
      %c0_88 = arith.constant 0 : index
      %250 = vector.load %arg10[%c0_86, %c0_87, %c0_88] : memref<1x16x1xf32, #tpu.memory_space<vmem>>, vector<1x16x1xf32>
      tpu.vector_store %arg10[%c0_86, %c0_87, %c0_88], %249 {strides = array<i32>} : memref<1x16x1xf32, #tpu.memory_space<vmem>>, vector<1x16x1xf32>,
    } else {
    }
    return
  }
  func.func @transform_0(%arg0: i32, %arg1: i32, %arg2: i32) -> (i32, i32) {
    %c0_i32 = arith.constant 0 : i32
    return %arg0, %arg2 : i32, i32
  }
  func.func @transform_1(%arg0: i32, %arg1: i32, %arg2: i32) -> (i32, i32) {
    %c0_i32 = arith.constant 0 : i32
    %c0_i32_0 = arith.constant 0 : i32
    return %arg0, %c0_i32 : i32, i32
  }
  func.func @transform_2(%arg0: i32, %arg1: i32, %arg2: i32) -> (i32, i32) {
    %c0_i32 = arith.constant 0 : i32
    return %arg2, %arg1 : i32, i32
  }
  func.func @transform_3(%arg0: i32, %arg1: i32, %arg2: i32) -> (i32, i32) {
    %c0_i32 = arith.constant 0 : i32
    return %arg2, %arg1 : i32, i32
  }
  func.func @transform_4(%arg0: i32, %arg1: i32, %arg2: i32) -> (i32, i32) {
    %c0_i32 = arith.constant 0 : i32
    return %arg2, %arg1 : i32, i32
  }
  func.func @transform_5(%arg0: i32, %arg1: i32, %arg2: i32) -> (i32, i32) {
    %c0_i32 = arith.constant 0 : i32
    return %arg2, %arg1 : i32, i32
  }
  func.func @transform_6(%arg0: i32, %arg1: i32, %arg2: i32) -> (i32, i32) {
    %c0_i32 = arith.constant 0 : i32
    return %arg0, %arg1 : i32, i32
  }
  func.func @transform_7(%arg0: i32, %arg1: i32, %arg2: i32) -> (i32, i32, i32) {
    %c0_i32 = arith.constant 0 : i32
    %c0_i32_0 = arith.constant 0 : i32
    return %arg1, %arg0, %c0_i32 : i32, i32, i32
  }
}

</mosaic_0001>

<llo_original>
// kernel: fused_llama_mlp_i4fp8.3
$region0: #{fused_llama_mlp_i4fp8.3}
  #allocation0 [shape = 'u32[]', space=smem, size = 0x4, offset = 0x4, fixed_abs, tag = 'smem constant byte address 0x4 - core index']
  #allocation1 [shape = 'u32[144,128]{1,0:T(1,128)}', space=vmem, size = 0x12000, scoped, tag = 'internal scratch']
  #allocation2 [shape = 'f32[16,256]{1,0:T(8,128)}', space=vmem, size = 0x4000, scoped, tag = 'scratch operand']
  #allocation3 [shape = 'bf16[4,16,512]{2,1,0:T(16,128)(2,1)}', space=vmem, size = 0x10000, scoped, tag = 'scratch operand']
  %s0 = inlined_call_operand.vmem [shape: bf16[32,2048], index: 0, kind: input, shape index: {}]
  %s1 = inlined_call_operand.vmem [shape: f32[32,1], index: 1, kind: input, shape index: {}]
  %s2 = inlined_call_operand.vmem [shape: u32[256,1024], index: 2, kind: input, shape index: {}]
  %s3 = inlined_call_operand.vmem [shape: f32[32,1024], index: 3, kind: input, shape index: {}]
  %s4 = inlined_call_operand.vmem [shape: bf16[32,1024], index: 4, kind: input, shape index: {}]
  %s5 = inlined_call_operand.hbm [shape: bf16[32,1024], index: 5, kind: output, shape index: {}]
  %s6 = sld [smem:[#allocation0]]
  $region149: #{fused_llama_mlp_i4fp8.3} parent=0
    _
  %s8 = ssub.s32 1, %s6
  %s9 = scalar_select 0, %s8, %s6
  $region1: #{fused_llama_mlp_i4fp8.3} parent=0
    #allocation4 [shape = 'u8[32768]{0}', space=vmem, size = 0x8000, scoped, tag = 'input window, operand 0']
    #allocation5 [shape = 'u8[131072]{0}', space=vmem, size = 0x20000, scoped, tag = 'input window, operand 2']
    #allocation6 [shape = 'u8[16384]{0}', space=vmem, size = 0x4000, scoped, tag = 'input window, operand 4']
    #allocation7 [shape = 'u8[16384]{0}', space=vmem, size = 0x4000, scoped, tag = 'output window, operand 0']
    #allocation8 [shape = 's32[2]{0}', space=sflag, size = 0x8, scoped, tag = 'scoped memory for fused_llama_mlp_i4fp8.3']
    %10 = vsyncpa [#allocation8], 0
    %s11 = scalar_lea.sflag [#allocation8], 1
    %12 = vsyncpa %s11, 0
    loop: start=0, step=1, limit=34
    $region2: #{fused_llama_mlp_i4fp8.3} parent=1 // loop_pre_header
      _
    $region3: #{fused_llama_mlp_i4fp8.3} parent=1 // loop_header
      %s14 = sphi 0, %s18
      %p15 = scmp.ge.s32.totalorder %s14, 34
      %s21 = sphi 0, %s40
      %s22 = sphi 0, %s36
      %s23 = sphi 0, %s32
      %s24 = sphi 0, %s21
      %s25 = sphi 0, %s22
      %s26 = sphi 0, %s23
      %s27 = sphi 0, %s24
      %s28 = sphi 0, %s25
      %s29 = sphi 0, %s26
      %s49 = sphi 0, %s51
      %s52 = sphi 0, %s49
      %s53 = sphi 0, %s52
      %s69 = sphi 0, %s53
      %s75 = sphi 0, %s77
      %s78 = sphi 0, %s75
      %s79 = sphi 0, %s78
      %s95 = sphi 0, %s79
      %s103 = sphi 0, %s105
      %s106 = sphi 0, %s103
      %s107 = sphi 0, %s106
      %s123 = sphi 0, %s107
      %s131 = sphi 0, %s133
      %s134 = sphi 0, %s131
      %s135 = sphi 0, %s134
      %s151 = sphi 0, %s135
      %s159 = sphi 0, %s161
      %s162 = sphi 0, %s159
      %s163 = sphi 0, %s162
      %s179 = sphi 0, %s163
      %s187 = sphi 0, %s189
      %s190 = sphi 0, %s187
      %s191 = sphi 0, %s190
      %s207 = sphi 0, %s191
    $region4: #{fused_llama_mlp_i4fp8.3} parent=1 // loop_header_branch
      %17 = sbr.rel (%p15) target = $region8
    $region5: #{fused_llama_mlp_i4fp8.3} parent=1 // loop_body
      %s19 = ssub.s32 %s14, 1
      %s20 = ssub.s32 %s14, 2
      %s30 = sadd.s32 1, %s23
      %p31 = scmp.ge.s32.totalorder %s30, 4
      %s32 = scalar_select %p31, 0, %s30
      %s33 = sadd.s32 1, %s22
      %s34 = scalar_select %p31, %s33, %s22
      %p35 = scmp.ge.s32.totalorder %s34, 4
      %s36 = scalar_select %p35, 0, %s34
      %s37 = sadd.s32 1, %s21
      %s38 = scalar_select %p35, %s37, %s21
      %p39 = scmp.ge.s32.totalorder %s38, 2
      %s40 = scalar_select %p39, 0, %s38
      %p41 = scmp.eq.s32.totalorder %s22, 0
      %s42 = scalar_select %p41, %s23, 0
      %p43 = scmp.eq.s32.totalorder %s36, 0
      %s44 = scalar_select %p43, %s32, 0
      %s45 = ssub.s32 %s21, %s40
      %s46 = ssub.s32 %s42, %s44
      %s47 = sor.u32 %s45, %s46
      %p48 = scmp.eq.s32.totalorder %s47, 0
      %s50 = sadd.s32 %s49, 1
      %s51 = scalar_select %p48, %s49, %s50
      %p54 = pneg %p48
      %p55 = scmp.eq.s32.totalorder %s14, 31
      %p56 = por %p54, %p55
      %p57 = scmp.ne.s32.totalorder %s49, %s52
      %p58 = scmp.eq.s32.totalorder %s14, 0
      %p59 = por %p57, %p58
      %p60 = scmp.ne.s32.totalorder %s49, %s52
      %p61 = scmp.eq.s32.totalorder %s19, 31
      %p62 = por %p60, %p61
      %p63 = scmp.ne.s32.totalorder %s52, %s53
      %p64 = scmp.eq.s32.totalorder %s19, 0
      %p65 = por %p63, %p64
      %p66 = scmp.ne.s32.totalorder %s52, %s53
      %p67 = scmp.eq.s32.totalorder %s20, 31
      %p68 = por %p66, %p67
      %p70 = scmp.ne.s32.totalorder %s53, %s69
      %p71 = scmp.eq.s32.totalorder %s20, 0
      %p72 = por %p70, %p71
      %s73 = ssub.s32 %s21, %s40
      %p74 = scmp.eq.s32.totalorder %s73, 0
      %s76 = sadd.s32 %s75, 1
      %s77 = scalar_select %p74, %s75, %s76
      %p80 = pneg %p74
      %p81 = scmp.eq.s32.totalorder %s14, 31
      %p82 = por %p80, %p81
      %p83 = scmp.ne.s32.totalorder %s75, %s78
      %p84 = scmp.eq.s32.totalorder %s14, 0
      %p85 = por %p83, %p84
      %p86 = scmp.ne.s32.totalorder %s75, %s78
      %p87 = scmp.eq.s32.totalorder %s19, 31
      %p88 = por %p86, %p87
      %p89 = scmp.ne.s32.totalorder %s78, %s79
      %p90 = scmp.eq.s32.totalorder %s19, 0
      %p91 = por %p89, %p90
      %p92 = scmp.ne.s32.totalorder %s78, %s79
      %p93 = scmp.eq.s32.totalorder %s20, 31
      %p94 = por %p92, %p93
      %p96 = scmp.ne.s32.totalorder %s79, %s95
      %p97 = scmp.eq.s32.totalorder %s20, 0
      %p98 = por %p96, %p97
      %s99 = ssub.s32 %s23, %s32
      %s100 = ssub.s32 %s22, %s36
      %s101 = sor.u32 %s99, %s100
      %p102 = scmp.eq.s32.totalorder %s101, 0
      %s104 = sadd.s32 %s103, 1
      %s105 = scalar_select %p102, %s103, %s104
      %p108 = pneg %p102
      %p109 = scmp.eq.s32.totalorder %s14, 31
      %p110 = por %p108, %p109
      %p111 = scmp.ne.s32.totalorder %s103, %s106
      %p112 = scmp.eq.s32.totalorder %s14, 0
      %p113 = por %p111, %p112
      %p114 = scmp.ne.s32.totalorder %s103, %s106
      %p115 = scmp.eq.s32.totalorder %s19, 31
      %p116 = por %p114, %p115
      %p117 = scmp.ne.s32.totalorder %s106, %s107
      %p118 = scmp.eq.s32.totalorder %s19, 0
      %p119 = por %p117, %p118
      %p120 = scmp.ne.s32.totalorder %s106, %s107
      %p121 = scmp.eq.s32.totalorder %s20, 31
      %p122 = por %p120, %p121
      %p124 = scmp.ne.s32.totalorder %s107, %s123
      %p125 = scmp.eq.s32.totalorder %s20, 0
      %p126 = por %p124, %p125
      %s127 = ssub.s32 %s23, %s32
      %s128 = ssub.s32 %s22, %s36
      %s129 = sor.u32 %s127, %s128
      %p130 = scmp.eq.s32.totalorder %s129, 0
      %s132 = sadd.s32 %s131, 1
      %s133 = scalar_select %p130, %s131, %s132
      %p136 = pneg %p130
      %p137 = scmp.eq.s32.totalorder %s14, 31
      %p138 = por %p136, %p137
      %p139 = scmp.ne.s32.totalorder %s131, %s134
      %p140 = scmp.eq.s32.totalorder %s14, 0
      %p141 = por %p139, %p140
      %p142 = scmp.ne.s32.totalorder %s131, %s134
      %p143 = scmp.eq.s32.totalorder %s19, 31
      %p144 = por %p142, %p143
      %p145 = scmp.ne.s32.totalorder %s134, %s135
      %p146 = scmp.eq.s32.totalorder %s19, 0
      %p147 = por %p145, %p146
      %p148 = scmp.ne.s32.totalorder %s134, %s135
      %p149 = scmp.eq.s32.totalorder %s20, 31
      %p150 = por %p148, %p149
      %p152 = scmp.ne.s32.totalorder %s135, %s151
      %p153 = scmp.eq.s32.totalorder %s20, 0
      %p154 = por %p152, %p153
      %s155 = ssub.s32 %s21, %s40
      %s156 = ssub.s32 %s22, %s36
      %s157 = sor.u32 %s155, %s156
      %p158 = scmp.eq.s32.totalorder %s157, 0
      %s160 = sadd.s32 %s159, 1
      %s161 = scalar_select %p158, %s159, %s160
      %p164 = pneg %p158
      %p165 = scmp.eq.s32.totalorder %s14, 31
      %p166 = por %p164, %p165
      %p167 = scmp.ne.s32.totalorder %s159, %s162
      %p168 = scmp.eq.s32.totalorder %s14, 0
      %p169 = por %p167, %p168
      %p170 = scmp.ne.s32.totalorder %s159, %s162
      %p171 = scmp.eq.s32.totalorder %s19, 31
      %p172 = por %p170, %p171
      %p173 = scmp.ne.s32.totalorder %s162, %s163
      %p174 = scmp.eq.s32.totalorder %s19, 0
      %p175 = por %p173, %p174
      %p176 = scmp.ne.s32.totalorder %s162, %s163
      %p177 = scmp.eq.s32.totalorder %s20, 31
      %p178 = por %p176, %p177
      %p180 = scmp.ne.s32.totalorder %s163, %s179
      %p181 = scmp.eq.s32.totalorder %s20, 0
      %p182 = por %p180, %p181
      %s183 = ssub.s32 %s21, %s40
      %s184 = ssub.s32 %s22, %s36
      %s185 = sor.u32 %s183, %s184
      %p186 = scmp.eq.s32.totalorder %s185, 0
      %s188 = sadd.s32 %s187, 1
      %s189 = scalar_select %p186, %s187, %s188
      %p192 = pneg %p186
      %p193 = scmp.eq.s32.totalorder %s14, 31
      %p194 = por %p192, %p193
      %p195 = scmp.ne.s32.totalorder %s187, %s190
      %p196 = scmp.eq.s32.totalorder %s14, 0
      %p197 = por %p195, %p196
      %p198 = scmp.ne.s32.totalorder %s187, %s190
      %p199 = scmp.eq.s32.totalorder %s19, 31
      %p200 = por %p198, %p199
      %p201 = scmp.ne.s32.totalorder %s190, %s191
      %p202 = scmp.eq.s32.totalorder %s19, 0
      %p203 = por %p201, %p202
      %p204 = scmp.ne.s32.totalorder %s190, %s191
      %p205 = scmp.eq.s32.totalorder %s20, 31
      %p206 = por %p204, %p205
      %p208 = scmp.ne.s32.totalorder %s191, %s207
      %p209 = scmp.eq.s32.totalorder %s20, 0
      %p210 = por %p208, %p209
      %p211 = scmp.le.s32.totalorder 1, %s14
      %p212 = scmp.lt.s32.totalorder %s14, 33
      %p213 = pnand %p211, %p212
      %p214 = pneg %p213
      // Predicated region
      $region9: #{fused_llama_mlp_i4fp8.3} parent=5 // pred_check
        _
      $region10: #{fused_llama_mlp_i4fp8.3} parent=5 // pred_check_branch
        %216 = sbr.rel (%p213) target = $region12
      $region11: #{fused_llama_mlp_i4fp8.3} parent=5 // pred_region
        %s217 = ssub.s32 %s14, 1
      $region12: #{fused_llama_mlp_i4fp8.3} parent=5 // pred_fallthru
        _
      %p218 = scmp.lt.s32.totalorder %s14, 32
      // Predicated region
      $region13: #{fused_llama_mlp_i4fp8.3} parent=5 // pred_check
        %p219 = pneg %p218
      $region14: #{fused_llama_mlp_i4fp8.3} parent=5 // pred_check_branch
        %221 = sbr.rel (%p219) target = $region16
      $region15: #{fused_llama_mlp_i4fp8.3} parent=5 // pred_region
        // Predicated region
        $region17: #{fused_llama_mlp_i4fp8.3} parent=15 // pred_check
          %p222 = pneg %p59
        $region18: #{fused_llama_mlp_i4fp8.3} parent=15 // pred_check_branch
          %224 = sbr.rel (%p222) target = $region20
        $region19: #{fused_llama_mlp_i4fp8.3} parent=15 // pred_region
          %s225 = sand.u32 %s49, 1
          %s226 = sand.u32 %s49, 1
          %s227 = smul.addr %s226, 32
          %s228 = scalar_lea.vmem [#allocation4], %s227
          %p229 = scmp.eq.s32.totalorder %s22, 0
          %s230 = scalar_select %p229, %s23, 0
          %s231 = smul.u32 2, %s21
          %s232 = smul.u32 4, %s230
          %s233 = smul.addr %s231, 16
          %s234 = sadd.s32 %s232, %s233
          %s235 = smul.addr %s234, 4
          %s236 = scalar_lea.vmem %s0, %s235
          // Predicated region
          $region21: #{fused_llama_mlp_i4fp8.3} parent=19 // pred_check
            _
          $region22: #{fused_llama_mlp_i4fp8.3} parent=19 // pred_check_branch
            %238 = sbr.rel (0) target = $region24
          $region23: #{fused_llama_mlp_i4fp8.3} parent=19 // pred_region
            // Predicated region
            $region25: #{fused_llama_mlp_i4fp8.3} parent=23 // pred_check
              _
            $region26: #{fused_llama_mlp_i4fp8.3} parent=23 // pred_check_branch
              %240 = sbr.rel (0) target = $region28
            $region27: #{fused_llama_mlp_i4fp8.3} parent=23 // pred_region
              loop: start=0, step=1, limit=1
              $region29: #{fused_llama_mlp_i4fp8.3} parent=27 // loop_pre_header
                _
              $region30: #{fused_llama_mlp_i4fp8.3} parent=27 // loop_header
                %s242 = sphi 0, %s246
                %p243 = scmp.ge.s32.totalorder %s242, 1
                %s247 = sphi %s236, %s236
                %s248 = sphi %s228, %s228
              $region31: #{fused_llama_mlp_i4fp8.3} parent=27 // loop_header_branch
                %245 = sbr.rel (%p243) target = $region35
              $region32: #{fused_llama_mlp_i4fp8.3} parent=27 // loop_body
                %v249 = vld [vmem:[%s247] sm:$0xff]
                %250 = vst [vmem:[%s248] sm:$0xff] %v249
                %v251 = vld [vmem:[%s247 + $0x8] sm:$0xff]
                %252 = vst [vmem:[%s248 + $0x8] sm:$0xff] %v251
                %v253 = vld [vmem:[%s247 + $0x40] sm:$0xff]
                %254 = vst [vmem:[%s248 + $0x10] sm:$0xff] %v253
                %v255 = vld [vmem:[%s247 + $0x48] sm:$0xff]
                %256 = vst [vmem:[%s248 + $0x18] sm:$0xff] %v255
              $region33: #{fused_llama_mlp_i4fp8.3} parent=27 // loop_footer
                %s246 = sadd.s32 1, %s242
              $region34: #{fused_llama_mlp_i4fp8.3} parent=27 // loop_footer_branch
                %241 = sbr.rel target = $region30
              $region35: #{fused_llama_mlp_i4fp8.3} parent=27 // loop_exit
                _
            $region28: #{fused_llama_mlp_i4fp8.3} parent=23 // pred_fallthru
              _
            // Predicated region
            $region36: #{fused_llama_mlp_i4fp8.3} parent=23 // pred_check
              _
            $region37: #{fused_llama_mlp_i4fp8.3} parent=23 // pred_check_branch
              %258 = sbr.rel target = $region39
            $region38: #{fused_llama_mlp_i4fp8.3} parent=23 // pred_region
              _
            $region39: #{fused_llama_mlp_i4fp8.3} parent=23 // pred_fallthru
              _
          $region24: #{fused_llama_mlp_i4fp8.3} parent=19 // pred_fallthru
            _
          %259 = vnop
        $region20: #{fused_llama_mlp_i4fp8.3} parent=15 // pred_fallthru
          _
        // Predicated region
        $region40: #{fused_llama_mlp_i4fp8.3} parent=15 // pred_check
          %p260 = pneg %p85
        $region41: #{fused_llama_mlp_i4fp8.3} parent=15 // pred_check_branch
          %262 = sbr.rel (%p260) target = $region43
        $region42: #{fused_llama_mlp_i4fp8.3} parent=15 // pred_region
          %s263 = smul.u32 2, %s21
          %p264 = scmp.lt.s32.totalorder %s263, 3
          %s265 = scalar_select %p264, %s263, 3
          %s266 = smul.addr %s265, 8
          %s267 = scalar_lea.vmem %s1, %s266
          %s268 = smul.u32 2, %s21
        $region43: #{fused_llama_mlp_i4fp8.3} parent=15 // pred_fallthru
          _
        // Predicated region
        $region44: #{fused_llama_mlp_i4fp8.3} parent=15 // pred_check
          %p269 = pneg %p113
        $region45: #{fused_llama_mlp_i4fp8.3} parent=15 // pred_check_branch
          %271 = sbr.rel (%p269) target = $region47
        $region46: #{fused_llama_mlp_i4fp8.3} parent=15 // pred_region
          %s272 = sand.u32 %s103, 1
          %s273 = sand.u32 %s103, 1
          %s274 = smul.addr %s273, 128
          %s275 = scalar_lea.vmem [#allocation5], %s274
          %s276 = smul.u32 8, %s23
          %s277 = smul.u32 2, %s22
          %s278 = smul.addr %s276, 8
          %s279 = sadd.s32 %s277, %s278
          %s280 = smul.addr %s279, 8
          %s281 = scalar_lea.vmem %s2, %s280
          // Predicated region
          $region48: #{fused_llama_mlp_i4fp8.3} parent=46 // pred_check
            _
          $region49: #{fused_llama_mlp_i4fp8.3} parent=46 // pred_check_branch
            %283 = sbr.rel (0) target = $region51
          $region50: #{fused_llama_mlp_i4fp8.3} parent=46 // pred_region
            // Predicated region
            $region52: #{fused_llama_mlp_i4fp8.3} parent=50 // pred_check
              _
            $region53: #{fused_llama_mlp_i4fp8.3} parent=50 // pred_check_branch
              %285 = sbr.rel (0) target = $region55
            $region54: #{fused_llama_mlp_i4fp8.3} parent=50 // pred_region
              loop: start=0, step=1, limit=1
              $region56: #{fused_llama_mlp_i4fp8.3} parent=54 // loop_pre_header
                _
              $region57: #{fused_llama_mlp_i4fp8.3} parent=54 // loop_header
                %s287 = sphi 0, %s291
                %p288 = scmp.ge.s32.totalorder %s287, 1
                %s292 = sphi %s281, %s281
                %s293 = sphi %s275, %s275
              $region58: #{fused_llama_mlp_i4fp8.3} parent=54 // loop_header_branch
                %290 = sbr.rel (%p288) target = $region62
              $region59: #{fused_llama_mlp_i4fp8.3} parent=54 // loop_body
                %v294 = vld [vmem:[%s292] sm:$0xff]
                %295 = vst [vmem:[%s293] sm:$0xff] %v294
                %v296 = vld [vmem:[%s292 + $0x8] sm:$0xff]
                %297 = vst [vmem:[%s293 + $0x8] sm:$0xff] %v296
                %v298 = vld [vmem:[%s292 + $0x40] sm:$0xff]
                %299 = vst [vmem:[%s293 + $0x10] sm:$0xff] %v298
                %v300 = vld [vmem:[%s292 + $0x48] sm:$0xff]
                %301 = vst [vmem:[%s293 + $0x18] sm:$0xff] %v300
                %v302 = vld [vmem:[%s292 + $0x80] sm:$0xff]
                %303 = vst [vmem:[%s293 + $0x20] sm:$0xff] %v302
                %v304 = vld [vmem:[%s292 + $0x88] sm:$0xff]
                %305 = vst [vmem:[%s293 + $0x28] sm:$0xff] %v304
                %v306 = vld [vmem:[%s292 + $0xc0] sm:$0xff]
                %307 = vst [vmem:[%s293 + $0x30] sm:$0xff] %v306
                %v308 = vld [vmem:[%s292 + $0xc8] sm:$0xff]
                %309 = vst [vmem:[%s293 + $0x38] sm:$0xff] %v308
                %v310 = vld [vmem:[%s292 + $0x100] sm:$0xff]
                %311 = vst [vmem:[%s293 + $0x40] sm:$0xff] %v310
                %v312 = vld [vmem:[%s292 + $0x108] sm:$0xff]
                %313 = vst [vmem:[%s293 + $0x48] sm:$0xff] %v312
                %v314 = vld [vmem:[%s292 + $0x140] sm:$0xff]
                %315 = vst [vmem:[%s293 + $0x50] sm:$0xff] %v314
                %v316 = vld [vmem:[%s292 + $0x148] sm:$0xff]
                %317 = vst [vmem:[%s293 + $0x58] sm:$0xff] %v316
                %v318 = vld [vmem:[%s292 + $0x180] sm:$0xff]
                %319 = vst [vmem:[%s293 + $0x60] sm:$0xff] %v318
                %v320 = vld [vmem:[%s292 + $0x188] sm:$0xff]
                %321 = vst [vmem:[%s293 + $0x68] sm:$0xff] %v320
                %v322 = vld [vmem:[%s292 + $0x1c0] sm:$0xff]
                %323 = vst [vmem:[%s293 + $0x70] sm:$0xff] %v322
                %v324 = vld [vmem:[%s292 + $0x1c8] sm:$0xff]
                %325 = vst [vmem:[%s293 + $0x78] sm:$0xff] %v324
              $region60: #{fused_llama_mlp_i4fp8.3} parent=54 // loop_footer
                %s291 = sadd.s32 1, %s287
              $region61: #{fused_llama_mlp_i4fp8.3} parent=54 // loop_footer_branch
                %286 = sbr.rel target = $region57
              $region62: #{fused_llama_mlp_i4fp8.3} parent=54 // loop_exit
                _
            $region55: #{fused_llama_mlp_i4fp8.3} parent=50 // pred_fallthru
              _
            // Predicated region
            $region63: #{fused_llama_mlp_i4fp8.3} parent=50 // pred_check
              _
            $region64: #{fused_llama_mlp_i4fp8.3} parent=50 // pred_check_branch
              %327 = sbr.rel target = $region66
            $region65: #{fused_llama_mlp_i4fp8.3} parent=50 // pred_region
              _
            $region66: #{fused_llama_mlp_i4fp8.3} parent=50 // pred_fallthru
              _
          $region51: #{fused_llama_mlp_i4fp8.3} parent=46 // pred_fallthru
            _
          %328 = vnop
        $region47: #{fused_llama_mlp_i4fp8.3} parent=15 // pred_fallthru
          _
        // Predicated region
        $region67: #{fused_llama_mlp_i4fp8.3} parent=15 // pred_check
          %p329 = pneg %p141
        $region68: #{fused_llama_mlp_i4fp8.3} parent=15 // pred_check_branch
          %331 = sbr.rel (%p329) target = $region70
        $region69: #{fused_llama_mlp_i4fp8.3} parent=15 // pred_region
          %s332 = smul.u32 2, %s22
          %p333 = scmp.lt.s32.totalorder %s23, 3
          %s334 = scalar_select %p333, %s23, 3
          %p335 = scmp.lt.s32.totalorder %s332, 7
          %s336 = scalar_select %p335, %s332, 7
          %s337 = smul.addr %s334, 8
          %s338 = sadd.s32 %s336, %s337
          %s339 = smul.addr %s338, 8
          %s340 = scalar_lea.vmem %s3, %s339
          %s341 = smul.u32 2, %s22
        $region70: #{fused_llama_mlp_i4fp8.3} parent=15 // pred_fallthru
          _
        // Predicated region
        $region71: #{fused_llama_mlp_i4fp8.3} parent=15 // pred_check
          %p342 = pneg %p169
        $region72: #{fused_llama_mlp_i4fp8.3} parent=15 // pred_check_branch
          %344 = sbr.rel (%p342) target = $region74
        $region73: #{fused_llama_mlp_i4fp8.3} parent=15 // pred_region
          %s345 = sand.u32 %s159, 1
          %s346 = sand.u32 %s159, 1
          %s347 = smul.addr %s346, 16
          %s348 = scalar_lea.vmem [#allocation6], %s347
          %s349 = smul.u32 2, %s21
          %s350 = smul.u32 2, %s22
          %s351 = smul.addr %s349, 8
          %s352 = sadd.s32 %s350, %s351
          %s353 = smul.addr %s352, 4
          %s354 = scalar_lea.vmem %s4, %s353
          // Predicated region
          $region75: #{fused_llama_mlp_i4fp8.3} parent=73 // pred_check
            _
          $region76: #{fused_llama_mlp_i4fp8.3} parent=73 // pred_check_branch
            %356 = sbr.rel (0) target = $region78
          $region77: #{fused_llama_mlp_i4fp8.3} parent=73 // pred_region
            // Predicated region
            $region79: #{fused_llama_mlp_i4fp8.3} parent=77 // pred_check
              _
            $region80: #{fused_llama_mlp_i4fp8.3} parent=77 // pred_check_branch
              %358 = sbr.rel (0) target = $region82
            $region81: #{fused_llama_mlp_i4fp8.3} parent=77 // pred_region
              // Predicated region
              $region94: #{fused_llama_mlp_i4fp8.3} parent=81 // pred_check
                _
              $region95: #{fused_llama_mlp_i4fp8.3} parent=81 // pred_check_branch
                %375 = sbr.rel (0) target = $region97
              $region96: #{fused_llama_mlp_i4fp8.3} parent=81 // pred_region
                loop: start=0, step=1, limit=1
                $region98: #{fused_llama_mlp_i4fp8.3} parent=96 // loop_pre_header
                  _
                $region99: #{fused_llama_mlp_i4fp8.3} parent=96 // loop_header
                  %s377 = sphi 0, %s381
                  %p378 = scmp.ge.s32.totalorder %s377, 1
                  %s382 = sphi %s354, %s354
                  %s383 = sphi %s348, %s348
                $region100: #{fused_llama_mlp_i4fp8.3} parent=96 // loop_header_branch
                  %380 = sbr.rel (%p378) target = $region104
                $region101: #{fused_llama_mlp_i4fp8.3} parent=96 // loop_body
                  %v384 = vld [vmem:[%s382] sm:$0xff]
                  %385 = vst [vmem:[%s383] sm:$0xff] %v384
                  %v386 = vld [vmem:[%s382 + $0x20] sm:$0xff]
                  %387 = vst [vmem:[%s383 + $0x8] sm:$0xff] %v386
                $region102: #{fused_llama_mlp_i4fp8.3} parent=96 // loop_footer
                  %s381 = sadd.s32 1, %s377
                $region103: #{fused_llama_mlp_i4fp8.3} parent=96 // loop_footer_branch
                  %376 = sbr.rel target = $region99
                $region104: #{fused_llama_mlp_i4fp8.3} parent=96 // loop_exit
                  _
              $region97: #{fused_llama_mlp_i4fp8.3} parent=81 // pred_fallthru
                _
              // Predicated region
              $region105: #{fused_llama_mlp_i4fp8.3} parent=81 // pred_check
                _
              $region106: #{fused_llama_mlp_i4fp8.3} parent=81 // pred_check_branch
                %389 = sbr.rel target = $region108
              $region107: #{fused_llama_mlp_i4fp8.3} parent=81 // pred_region
                _
              $region108: #{fused_llama_mlp_i4fp8.3} parent=81 // pred_fallthru
                _
            $region82: #{fused_llama_mlp_i4fp8.3} parent=77 // pred_fallthru
              _
            // Predicated region
            $region83: #{fused_llama_mlp_i4fp8.3} parent=77 // pred_check
              _
            $region84: #{fused_llama_mlp_i4fp8.3} parent=77 // pred_check_branch
              %360 = sbr.rel target = $region86
            $region85: #{fused_llama_mlp_i4fp8.3} parent=77 // pred_region
              loop: start=0, step=1, limit=1
              $region87: #{fused_llama_mlp_i4fp8.3} parent=85 // loop_pre_header
                _
              $region88: #{fused_llama_mlp_i4fp8.3} parent=85 // loop_header
                %s363 = sphi 0, %s367
                %p364 = scmp.ge.s32.totalorder %s363, 1
                %s368 = sphi %s354, %s354
                %s369 = sphi %s348, %s348
              $region89: #{fused_llama_mlp_i4fp8.3} parent=85 // loop_header_branch
                %366 = sbr.rel (%p364) target = $region93
              $region90: #{fused_llama_mlp_i4fp8.3} parent=85 // loop_body
                %v370 = vld [vmem:[%s368] sm:$0xff]
                %371 = vst [vmem:[%s369] sm:$0xff] %v370
                %v372 = vld [vmem:[%s368 + $0x20] sm:$0xff]
                %373 = vst [vmem:[%s369 + $0x8] sm:$0xff] %v372
              $region91: #{fused_llama_mlp_i4fp8.3} parent=85 // loop_footer
                %s367 = sadd.s32 1, %s363
              $region92: #{fused_llama_mlp_i4fp8.3} parent=85 // loop_footer_branch
                %362 = sbr.rel target = $region88
              $region93: #{fused_llama_mlp_i4fp8.3} parent=85 // loop_exit
                _
            $region86: #{fused_llama_mlp_i4fp8.3} parent=77 // pred_fallthru
              _
          $region78: #{fused_llama_mlp_i4fp8.3} parent=73 // pred_fallthru
            _
          %390 = vnop
        $region74: #{fused_llama_mlp_i4fp8.3} parent=15 // pred_fallthru
          _
      $region16: #{fused_llama_mlp_i4fp8.3} parent=5 // pred_fallthru
        _
      %p391 = scmp.le.s32.totalorder 1, %s14
      %p392 = scmp.lt.s32.totalorder %s14, 33
      %p393 = pnand %p391, %p392
      %p394 = pneg %p393
      // Predicated region
      $region109: #{fused_llama_mlp_i4fp8.3} parent=5 // pred_check
        _
      $region110: #{fused_llama_mlp_i4fp8.3} parent=5 // pred_check_branch
        %396 = sbr.rel (%p393) target = $region112
      $region111: #{fused_llama_mlp_i4fp8.3} parent=5 // pred_region
        %s397 = ssub.s32 %s14, 1
        %s398 = sand.u32 %s52, 1
        %s399 = sand.u32 %s52, 1
        %s400 = smul.addr %s399, 32
        %s401 = scalar_lea.vmem [#allocation4], %s400
        // Predicated region
        $region113: #{fused_llama_mlp_i4fp8.3} parent=111 // pred_check
          %p402 = pneg %p65
        $region114: #{fused_llama_mlp_i4fp8.3} parent=111 // pred_check_branch
          %404 = sbr.rel (%p402) target = $region116
        $region115: #{fused_llama_mlp_i4fp8.3} parent=111 // pred_region
          _
        $region116: #{fused_llama_mlp_i4fp8.3} parent=111 // pred_fallthru
          _
        %s405 = sand.u32 %s106, 1
        %s406 = sand.u32 %s106, 1
        %s407 = smul.addr %s406, 128
        %s408 = scalar_lea.vmem [#allocation5], %s407
        // Predicated region
        $region117: #{fused_llama_mlp_i4fp8.3} parent=111 // pred_check
          %p409 = pneg %p119
        $region118: #{fused_llama_mlp_i4fp8.3} parent=111 // pred_check_branch
          %411 = sbr.rel (%p409) target = $region120
        $region119: #{fused_llama_mlp_i4fp8.3} parent=111 // pred_region
          _
        $region120: #{fused_llama_mlp_i4fp8.3} parent=111 // pred_fallthru
          _
        %s412 = sand.u32 %s162, 1
        %s413 = sand.u32 %s162, 1
        %s414 = smul.addr %s413, 16
        %s415 = scalar_lea.vmem [#allocation6], %s414
        // Predicated region
        $region121: #{fused_llama_mlp_i4fp8.3} parent=111 // pred_check
          %p416 = pneg %p175
        $region122: #{fused_llama_mlp_i4fp8.3} parent=111 // pred_check_branch
          %418 = sbr.rel (%p416) target = $region124
        $region123: #{fused_llama_mlp_i4fp8.3} parent=111 // pred_region
          _
        $region124: #{fused_llama_mlp_i4fp8.3} parent=111 // pred_fallthru
          _
        %s419 = sand.u32 %s52, 1
        %s420 = sand.u32 %s52, 1
        %s421 = smul.addr %s420, 32
        %s422 = scalar_lea.vmem [#allocation4], %s421
        %p423 = pneg %p65
        %p424 = pneg %p62
        %s425 = smul.u32 2, %s24
        %p426 = scmp.lt.s32.totalorder %s425, 3
        %s427 = scalar_select %p426, %s425, 3
        %s428 = smul.addr %s427, 8
        %s429 = scalar_lea.vmem %s1, %s428
        %p430 = pneg %p91
        %p431 = pneg %p88
        %s432 = sand.u32 %s106, 1
        %s433 = sand.u32 %s106, 1
        %s434 = smul.addr %s433, 128
        %s435 = scalar_lea.vmem [#allocation5], %s434
        %p436 = pneg %p119
        %p437 = pneg %p116
        %s438 = smul.u32 2, %s25
        %p439 = scmp.lt.s32.totalorder %s26, 3
        %s440 = scalar_select %p439, %s26, 3
        %p441 = scmp.lt.s32.totalorder %s438, 7
        %s442 = scalar_select %p441, %s438, 7
        %s443 = smul.addr %s440, 8
        %s444 = sadd.s32 %s442, %s443
        %s445 = smul.addr %s444, 8
        %s446 = scalar_lea.vmem %s3, %s445
        %p447 = pneg %p147
        %p448 = pneg %p144
        %s449 = sand.u32 %s162, 1
        %s450 = sand.u32 %s162, 1
        %s451 = smul.addr %s450, 16
        %s452 = scalar_lea.vmem [#allocation6], %s451
        %p453 = pneg %p175
        %p454 = pneg %p172
        %p455 = pneg %p203
        %p456 = pneg %p200
        %s457 = sand.u32 %s190, 1
        %s458 = scalar_lea.sflag [#allocation8], %s457
        %s459 = sand.u32 %s190, 1
        %s460 = smul.addr %s459, 16
        %s461 = scalar_lea.vmem [#allocation7], %s460
        %p462 = scmp.eq.s32.totalorder %s25, 0
        %s463 = scalar_select %p462, %s26, 0
        %s464 = smul.u32 2, %s24
        %s465 = smul.u32 4, %s463
        %s466 = smul.u32 2, %s24
        %p467 = scmp.lt.s32.totalorder %s466, 3
        %s468 = scalar_select %p467, %s466, 3
        %s469 = smul.addr %s468, 8
        %s470 = scalar_lea.vmem %s1, %s469
        %s471 = smul.u32 2, %s24
        %s472 = smul.u32 8, %s26
        %s473 = smul.u32 2, %s25
        %s474 = smul.u32 2, %s25
        %p475 = scmp.lt.s32.totalorder %s26, 3
        %s476 = scalar_select %p475, %s26, 3
        %p477 = scmp.lt.s32.totalorder %s474, 7
        %s478 = scalar_select %p477, %s474, 7
        %s479 = smul.addr %s476, 8
        %s480 = sadd.s32 %s478, %s479
        %s481 = smul.addr %s480, 8
        %s482 = scalar_lea.vmem %s3, %s481
        %s483 = smul.u32 2, %s25
        %s484 = smul.u32 2, %s24
        %s485 = smul.u32 2, %s25
        %s486 = smul.u32 2, %s24
        %s487 = smul.u32 2, %s25
        %p488 = scmp.eq.s32.totalorder %s26, 0
        // Predicated region
        $region125: #{fused_llama_mlp_i4fp8.3} parent=111 // pred_check
          %p489 = pneg %p488
        $region126: #{fused_llama_mlp_i4fp8.3} parent=111 // pred_check_branch
          %491 = sbr.rel (%p489) target = $region128
        $region127: #{fused_llama_mlp_i4fp8.3} parent=111 // pred_region
          %492 = vst [vmem:[#allocation2] sm:$0xff] 0.0
          %493 = vst [vmem:[#allocation2 + $0x8] sm:$0xff] 0.0
          %494 = vst [vmem:[#allocation2 + $0x10] sm:$0xff] 0.0
          %495 = vst [vmem:[#allocation2 + $0x18] sm:$0xff] 0.0
        $region128: #{fused_llama_mlp_i4fp8.3} parent=111 // pred_fallthru
          _
        %p496 = scmp.eq.s32.totalorder %s25, 0
        // Predicated region
        $region129: #{fused_llama_mlp_i4fp8.3} parent=111 // pred_check
          %p497 = pneg %p496
        $region130: #{fused_llama_mlp_i4fp8.3} parent=111 // pred_check_branch
          %499 = sbr.rel (%p497) target = $region132
        $region131: #{fused_llama_mlp_i4fp8.3} parent=111 // pred_region
          %v500 = vld [vmem:[%s470] sm:$0xff]
          %v501 = vld [vmem:[%s470 + $0x8] sm:$0xff]
          %v502 = vrcp.pop %v500
          %v503 = vmul.f32 1.0, %v502
          %v504 = vrcp.pop %v501
          %v505 = vmul.f32 1.0, %v504
          %v506 = vld [vmem:[%s401] sm:$0xff]
          %v507 = vld [vmem:[%s401 + $0x8] sm:$0xff]
          %v508 = vld [vmem:[%s401 + $0x10] sm:$0xff]
          %v509 = vld [vmem:[%s401 + $0x18] sm:$0xff]
          %v510 = vunpack.c.l.bf16 %v506
          %v511 = vunpack.c.h.bf16 %v506
          %v512 = vunpack.c.l.bf16 %v507
          %v513 = vunpack.c.h.bf16 %v507
          %v514 = vunpack.c.l.bf16 %v508
          %v515 = vunpack.c.h.bf16 %v508
          %v516 = vunpack.c.l.bf16 %v509
          %v517 = vunpack.c.h.bf16 %v509
          %519 = vset.pattern.permute.xlu0 0
          %520 = vperm.xlu0 %519, %v503
          %v521 = vpop.permute.xlu0 %520
          %524 = vset.pattern.permute.xlu0 0
          %525 = vperm.xlu0 %524, %v505
          %v526 = vpop.permute.xlu0 %525
          %v528 = vmul.f32 %v510, %v521
          %v529 = vmul.f32 %v511, %v521
          %v530 = vmul.f32 %v512, %v521
          %v531 = vmul.f32 %v513, %v521
          %v532 = vmul.f32 %v514, %v526
          %v533 = vmul.f32 %v515, %v526
          %v534 = vmul.f32 %v516, %v526
          %v535 = vmul.f32 %v517, %v526
          %v544 = vand.u32 %v528, 2147483648
          %v545 = vand.u32 %v529, 2147483648
          %v546 = vand.u32 %v530, 2147483648
          %v547 = vand.u32 %v531, 2147483648
          %v548 = vand.u32 %v532, 2147483648
          %v549 = vand.u32 %v533, 2147483648
          %v550 = vand.u32 %v534, 2147483648
          %v551 = vand.u32 %v535, 2147483648
          %v552 = vand.u32 %v528, 2147483647
          %v553 = vand.u32 %v529, 2147483647
          %v554 = vand.u32 %v530, 2147483647
          %v555 = vand.u32 %v531, 2147483647
          %v556 = vand.u32 %v532, 2147483647
          %v557 = vand.u32 %v533, 2147483647
          %v558 = vand.u32 %v534, 2147483647
          %v559 = vand.u32 %v535, 2147483647
          %v560 = vshrl.u32 %v552, 20
          %v561 = vshrl.u32 %v553, 20
          %v562 = vshrl.u32 %v554, 20
          %v563 = vshrl.u32 %v555, 20
          %v564 = vshrl.u32 %v556, 20
          %v565 = vshrl.u32 %v557, 20
          %v566 = vshrl.u32 %v558, 20
          %v567 = vshrl.u32 %v559, 20
          %v568 = vand.u32 %v560, 1
          %v569 = vand.u32 %v561, 1
          %v570 = vand.u32 %v562, 1
          %v571 = vand.u32 %v563, 1
          %v572 = vand.u32 %v564, 1
          %v573 = vand.u32 %v565, 1
          %v574 = vand.u32 %v566, 1
          %v575 = vand.u32 %v567, 1
          %v576 = vadd.s32 %v552, 524287
          %v577 = vadd.s32 %v553, 524287
          %v578 = vadd.s32 %v554, 524287
          %v579 = vadd.s32 %v555, 524287
          %v580 = vadd.s32 %v556, 524287
          %v581 = vadd.s32 %v557, 524287
          %v582 = vadd.s32 %v558, 524287
          %v583 = vadd.s32 %v559, 524287
          %v584 = vadd.s32 %v576, %v568
          %v585 = vadd.s32 %v577, %v569
          %v586 = vadd.s32 %v578, %v570
          %v587 = vadd.s32 %v579, %v571
          %v588 = vadd.s32 %v580, %v572
          %v589 = vadd.s32 %v581, %v573
          %v590 = vadd.s32 %v582, %v574
          %v591 = vadd.s32 %v583, %v575
          %v592 = vand.u32 %v584, 4293918720
          %v593 = vand.u32 %v585, 4293918720
          %v594 = vand.u32 %v586, 4293918720
          %v595 = vand.u32 %v587, 4293918720
          %v596 = vand.u32 %v588, 4293918720
          %v597 = vand.u32 %v589, 4293918720
          %v598 = vand.u32 %v590, 4293918720
          %v599 = vand.u32 %v591, 4293918720
          %v600 = vor.u32 %v544, %v592
          %v601 = vor.u32 %v545, %v593
          %v602 = vor.u32 %v546, %v594
          %v603 = vor.u32 %v547, %v595
          %v604 = vor.u32 %v548, %v596
          %v605 = vor.u32 %v549, %v597
          %v606 = vor.u32 %v550, %v598
          %v607 = vor.u32 %v551, %v599
          %v616 = vadd.f32 %v528, 24576.0
          %v617 = vadd.f32 %v529, 24576.0
          %v618 = vadd.f32 %v530, 24576.0
          %v619 = vadd.f32 %v531, 24576.0
          %v620 = vadd.f32 %v532, 24576.0
          %v621 = vadd.f32 %v533, 24576.0
          %v622 = vadd.f32 %v534, 24576.0
          %v623 = vadd.f32 %v535, 24576.0
          %v624 = vsub.f32 %v616, 24576.0
          %v625 = vsub.f32 %v617, 24576.0
          %v626 = vsub.f32 %v618, 24576.0
          %v627 = vsub.f32 %v619, 24576.0
          %v628 = vsub.f32 %v620, 24576.0
          %v629 = vsub.f32 %v621, 24576.0
          %v630 = vsub.f32 %v622, 24576.0
          %v631 = vsub.f32 %v623, 24576.0
          %v632 = vand.u32 2147483647, %v528
          %v633 = vand.u32 2147483647, %v529
          %v634 = vand.u32 2147483647, %v530
          %v635 = vand.u32 2147483647, %v531
          %v636 = vand.u32 2147483647, %v532
          %v637 = vand.u32 2147483647, %v533
          %v638 = vand.u32 2147483647, %v534
          %v639 = vand.u32 2147483647, %v535
          %vm640 = vcmp.ge.f32.partialorder %v632, 0.015625
          %vm641 = vcmp.ge.f32.partialorder %v633, 0.015625
          %vm642 = vcmp.ge.f32.partialorder %v634, 0.015625
          %vm643 = vcmp.ge.f32.partialorder %v635, 0.015625
          %vm644 = vcmp.ge.f32.partialorder %v636, 0.015625
          %vm645 = vcmp.ge.f32.partialorder %v637, 0.015625
          %vm646 = vcmp.ge.f32.partialorder %v638, 0.015625
          %vm647 = vcmp.ge.f32.partialorder %v639, 0.015625
          %v648 = vsel %vm640, %v600, %v624
          %v649 = vsel %vm641, %v601, %v625
          %v650 = vsel %vm642, %v602, %v626
          %v651 = vsel %vm643, %v603, %v627
          %v652 = vsel %vm644, %v604, %v628
          %v653 = vsel %vm645, %v605, %v629
          %v654 = vsel %vm646, %v606, %v630
          %v655 = vsel %vm647, %v607, %v631
          %v656 = vpack.c.bf16 %v652, %v648
          %v657 = vpack.c.bf16 %v653, %v649
          %v658 = vpack.c.bf16 %v654, %v650
          %v659 = vpack.c.bf16 %v655, %v651
          %s660 = smul.u32 %s26, 4
          %s661 = smul.addr %s660, 8
          %s662 = scalar_lea.vmem [#allocation3], %s661
          %663 = vst [vmem:[%s662] sm:$0xff] %v656
          %664 = vst [vmem:[%s662 + $0x8] sm:$0xff] %v657
          %665 = vst [vmem:[%s662 + $0x10] sm:$0xff] %v658
          %666 = vst [vmem:[%s662 + $0x18] sm:$0xff] %v659
        $region132: #{fused_llama_mlp_i4fp8.3} parent=111 // pred_fallthru
          _
        %s667 = smul.u32 %s26, 4
        %s668 = smul.addr %s667, 8
        %s669 = scalar_lea.vmem [#allocation3], %s668
        %v670 = vld [vmem:[%s669] sm:$0xff]
        %v671 = vld [vmem:[%s669 + $0x8] sm:$0xff]
        %v672 = vld [vmem:[%s669 + $0x10] sm:$0xff]
        %v673 = vld [vmem:[%s669 + $0x18] sm:$0xff]
        %v674 = vld [vmem:[%s408] sm:$0xff]
        %v675 = vld [vmem:[%s408 + $0x8] sm:$0xff]
        %v676 = vld [vmem:[%s408 + $0x10] sm:$0xff]
        %v677 = vld [vmem:[%s408 + $0x18] sm:$0xff]
        %v678 = vld [vmem:[%s408 + $0x20] sm:$0xff]
        %v679 = vld [vmem:[%s408 + $0x28] sm:$0xff]
        %v680 = vld [vmem:[%s408 + $0x30] sm:$0xff]
        %v681 = vld [vmem:[%s408 + $0x38] sm:$0xff]
        %v682 = vld [vmem:[%s408 + $0x40] sm:$0xff]
        %v683 = vld [vmem:[%s408 + $0x48] sm:$0xff]
        %v684 = vld [vmem:[%s408 + $0x50] sm:$0xff]
        %v685 = vld [vmem:[%s408 + $0x58] sm:$0xff]
        %v686 = vld [vmem:[%s408 + $0x60] sm:$0xff]
        %v687 = vld [vmem:[%s408 + $0x68] sm:$0xff]
        %v688 = vld [vmem:[%s408 + $0x70] sm:$0xff]
        %v689 = vld [vmem:[%s408 + $0x78] sm:$0xff]
        %v690 = vld [vmem:[%s482] sm:$0xff]
        %v691 = vld [vmem:[%s482 + $0x8] sm:$0xff]
        %v692 = vand.u32 %v674, 15
        %v693 = vand.u32 %v675, 15
        %v694 = vand.u32 %v676, 15
        %v695 = vand.u32 %v677, 15
        %v696 = vand.u32 %v678, 15
        %v697 = vand.u32 %v679, 15
        %v698 = vand.u32 %v680, 15
        %v699 = vand.u32 %v681, 15
        %v700 = vand.u32 %v682, 15
        %v701 = vand.u32 %v683, 15
        %v702 = vand.u32 %v684, 15
        %v703 = vand.u32 %v685, 15
        %v704 = vand.u32 %v686, 15
        %v705 = vand.u32 %v687, 15
        %v706 = vand.u32 %v688, 15
        %v707 = vand.u32 %v689, 15
        %v708 = vxor.u32 %v692, 8
        %v709 = vxor.u32 %v693, 8
        %v710 = vxor.u32 %v694, 8
        %v711 = vxor.u32 %v695, 8
        %v712 = vxor.u32 %v696, 8
        %v713 = vxor.u32 %v697, 8
        %v714 = vxor.u32 %v698, 8
        %v715 = vxor.u32 %v699, 8
        %v716 = vxor.u32 %v700, 8
        %v717 = vxor.u32 %v701, 8
        %v718 = vxor.u32 %v702, 8
        %v719 = vxor.u32 %v703, 8
        %v720 = vxor.u32 %v704, 8
        %v721 = vxor.u32 %v705, 8
        %v722 = vxor.u32 %v706, 8
        %v723 = vxor.u32 %v707, 8
        %v724 = vsub.s32 %v708, 8
        %v725 = vsub.s32 %v709, 8
        %v726 = vsub.s32 %v710, 8
        %v727 = vsub.s32 %v711, 8
        %v728 = vsub.s32 %v712, 8
        %v729 = vsub.s32 %v713, 8
        %v730 = vsub.s32 %v714, 8
        %v731 = vsub.s32 %v715, 8
        %v732 = vsub.s32 %v716, 8
        %v733 = vsub.s32 %v717, 8
        %v734 = vsub.s32 %v718, 8
        %v735 = vsub.s32 %v719, 8
        %v736 = vsub.s32 %v720, 8
        %v737 = vsub.s32 %v721, 8
        %v738 = vsub.s32 %v722, 8
        %v739 = vsub.s32 %v723, 8
        %v740 = vcvt.s32.f32 %v724
        %v741 = vcvt.s32.f32 %v725
        %v742 = vcvt.s32.f32 %v726
        %v743 = vcvt.s32.f32 %v727
        %v744 = vcvt.s32.f32 %v728
        %v745 = vcvt.s32.f32 %v729
        %v746 = vcvt.s32.f32 %v730
        %v747 = vcvt.s32.f32 %v731
        %v748 = vcvt.s32.f32 %v732
        %v749 = vcvt.s32.f32 %v733
        %v750 = vcvt.s32.f32 %v734
        %v751 = vcvt.s32.f32 %v735
        %v752 = vcvt.s32.f32 %v736
        %v753 = vcvt.s32.f32 %v737
        %v754 = vcvt.s32.f32 %v738
        %v755 = vcvt.s32.f32 %v739
        %v756 = vlaneseq
        %v757 = vshrl.u32 %v756, 7
        %v758 = vsub.s32 0, %v757
        %v759 = vrot.slane %v690, %v758
        %v760 = vlaneseq
        %v761 = vshrl.u32 %v760, 7
        %v762 = vsub.s32 0, %v761
        %v763 = vrot.slane %v691, %v762
        %v764 = vmul.f32 %v740, %v759
        %v765 = vmul.f32 %v741, %v763
        %v766 = vmul.f32 %v742, %v759
        %v767 = vmul.f32 %v743, %v763
        %v768 = vmul.f32 %v744, %v759
        %v769 = vmul.f32 %v745, %v763
        %v770 = vmul.f32 %v746, %v759
        %v771 = vmul.f32 %v747, %v763
        %v772 = vmul.f32 %v748, %v759
        %v773 = vmul.f32 %v749, %v763
        %v774 = vmul.f32 %v750, %v759
        %v775 = vmul.f32 %v751, %v763
        %v776 = vmul.f32 %v752, %v759
        %v777 = vmul.f32 %v753, %v763
        %v778 = vmul.f32 %v754, %v759
        %v779 = vmul.f32 %v755, %v763
        %v780 = vpack.c.bf16 %v766, %v764
        %v781 = vpack.c.bf16 %v767, %v765
        %v782 = vpack.c.bf16 %v770, %v768
        %v783 = vpack.c.bf16 %v771, %v769
        %v784 = vpack.c.bf16 %v774, %v772
        %v785 = vpack.c.bf16 %v775, %v773
        %v786 = vpack.c.bf16 %v778, %v776
        %v787 = vpack.c.bf16 %v779, %v777
        %v788 = vshrl.u32 %v674, 4
        %v789 = vshrl.u32 %v675, 4
        %v790 = vshrl.u32 %v676, 4
        %v791 = vshrl.u32 %v677, 4
        %v792 = vshrl.u32 %v678, 4
        %v793 = vshrl.u32 %v679, 4
        %v794 = vshrl.u32 %v680, 4
        %v795 = vshrl.u32 %v681, 4
        %v796 = vshrl.u32 %v682, 4
        %v797 = vshrl.u32 %v683, 4
        %v798 = vshrl.u32 %v684, 4
        %v799 = vshrl.u32 %v685, 4
        %v800 = vshrl.u32 %v686, 4
        %v801 = vshrl.u32 %v687, 4
        %v802 = vshrl.u32 %v688, 4
        %v803 = vshrl.u32 %v689, 4
        %v804 = vand.u32 %v788, 15
        %v805 = vand.u32 %v789, 15
        %v806 = vand.u32 %v790, 15
        %v807 = vand.u32 %v791, 15
        %v808 = vand.u32 %v792, 15
        %v809 = vand.u32 %v793, 15
        %v810 = vand.u32 %v794, 15
        %v811 = vand.u32 %v795, 15
        %v812 = vand.u32 %v796, 15
        %v813 = vand.u32 %v797, 15
        %v814 = vand.u32 %v798, 15
        %v815 = vand.u32 %v799, 15
        %v816 = vand.u32 %v800, 15
        %v817 = vand.u32 %v801, 15
        %v818 = vand.u32 %v802, 15
        %v819 = vand.u32 %v803, 15
        %v820 = vxor.u32 %v804, 8
        %v821 = vxor.u32 %v805, 8
        %v822 = vxor.u32 %v806, 8
        %v823 = vxor.u32 %v807, 8
        %v824 = vxor.u32 %v808, 8
        %v825 = vxor.u32 %v809, 8
        %v826 = vxor.u32 %v810, 8
        %v827 = vxor.u32 %v811, 8
        %v828 = vxor.u32 %v812, 8
        %v829 = vxor.u32 %v813, 8
        %v830 = vxor.u32 %v814, 8
        %v831 = vxor.u32 %v815, 8
        %v832 = vxor.u32 %v816, 8
        %v833 = vxor.u32 %v817, 8
        %v834 = vxor.u32 %v818, 8
        %v835 = vxor.u32 %v819, 8
        %v836 = vsub.s32 %v820, 8
        %v837 = vsub.s32 %v821, 8
        %v838 = vsub.s32 %v822, 8
        %v839 = vsub.s32 %v823, 8
        %v840 = vsub.s32 %v824, 8
        %v841 = vsub.s32 %v825, 8
        %v842 = vsub.s32 %v826, 8
        %v843 = vsub.s32 %v827, 8
        %v844 = vsub.s32 %v828, 8
        %v845 = vsub.s32 %v829, 8
        %v846 = vsub.s32 %v830, 8
        %v847 = vsub.s32 %v831, 8
        %v848 = vsub.s32 %v832, 8
        %v849 = vsub.s32 %v833, 8
        %v850 = vsub.s32 %v834, 8
        %v851 = vsub.s32 %v835, 8
        %v852 = vcvt.s32.f32 %v836
        %v853 = vcvt.s32.f32 %v837
        %v854 = vcvt.s32.f32 %v838
        %v855 = vcvt.s32.f32 %v839
        %v856 = vcvt.s32.f32 %v840
        %v857 = vcvt.s32.f32 %v841
        %v858 = vcvt.s32.f32 %v842
        %v859 = vcvt.s32.f32 %v843
        %v860 = vcvt.s32.f32 %v844
        %v861 = vcvt.s32.f32 %v845
        %v862 = vcvt.s32.f32 %v846
        %v863 = vcvt.s32.f32 %v847
        %v864 = vcvt.s32.f32 %v848
        %v865 = vcvt.s32.f32 %v849
        %v866 = vcvt.s32.f32 %v850
        %v867 = vcvt.s32.f32 %v851
        %v868 = vlaneseq
        %v869 = vshrl.u32 %v868, 7
        %v870 = vsub.s32 1, %v869
        %v871 = vrot.slane %v690, %v870
        %v872 = vlaneseq
        %v873 = vshrl.u32 %v872, 7
        %v874 = vsub.s32 1, %v873
        %v875 = vrot.slane %v691, %v874
        %v876 = vmul.f32 %v852, %v871
        %v877 = vmul.f32 %v853, %v875
        %v878 = vmul.f32 %v854, %v871
        %v879 = vmul.f32 %v855, %v875
        %v880 = vmul.f32 %v856, %v871
        %v881 = vmul.f32 %v857, %v875
        %v882 = vmul.f32 %v858, %v871
        %v883 = vmul.f32 %v859, %v875
        %v884 = vmul.f32 %v860, %v871
        %v885 = vmul.f32 %v861, %v875
        %v886 = vmul.f32 %v862, %v871
        %v887 = vmul.f32 %v863, %v875
        %v888 = vmul.f32 %v864, %v871
        %v889 = vmul.f32 %v865, %v875
        %v890 = vmul.f32 %v866, %v871
        %v891 = vmul.f32 %v867, %v875
        %v892 = vpack.c.bf16 %v878, %v876
        %v893 = vpack.c.bf16 %v879, %v877
        %v894 = vpack.c.bf16 %v882, %v880
        %v895 = vpack.c.bf16 %v883, %v881
        %v896 = vpack.c.bf16 %v886, %v884
        %v897 = vpack.c.bf16 %v887, %v885
        %v898 = vpack.c.bf16 %v890, %v888
        %v899 = vpack.c.bf16 %v891, %v889
        %v900 = vshrl.u32 %v674, 8
        %v901 = vshrl.u32 %v675, 8
        %v902 = vshrl.u32 %v676, 8
        %v903 = vshrl.u32 %v677, 8
        %v904 = vshrl.u32 %v678, 8
        %v905 = vshrl.u32 %v679, 8
        %v906 = vshrl.u32 %v680, 8
        %v907 = vshrl.u32 %v681, 8
        %v908 = vshrl.u32 %v682, 8
        %v909 = vshrl.u32 %v683, 8
        %v910 = vshrl.u32 %v684, 8
        %v911 = vshrl.u32 %v685, 8
        %v912 = vshrl.u32 %v686, 8
        %v913 = vshrl.u32 %v687, 8
        %v914 = vshrl.u32 %v688, 8
        %v915 = vshrl.u32 %v689, 8
        %v916 = vand.u32 %v900, 15
        %v917 = vand.u32 %v901, 15
        %v918 = vand.u32 %v902, 15
        %v919 = vand.u32 %v903, 15
        %v920 = vand.u32 %v904, 15
        %v921 = vand.u32 %v905, 15
        %v922 = vand.u32 %v906, 15
        %v923 = vand.u32 %v907, 15
        %v924 = vand.u32 %v908, 15
        %v925 = vand.u32 %v909, 15
        %v926 = vand.u32 %v910, 15
        %v927 = vand.u32 %v911, 15
        %v928 = vand.u32 %v912, 15
        %v929 = vand.u32 %v913, 15
        %v930 = vand.u32 %v914, 15
        %v931 = vand.u32 %v915, 15
        %v932 = vxor.u32 %v916, 8
        %v933 = vxor.u32 %v917, 8
        %v934 = vxor.u32 %v918, 8
        %v935 = vxor.u32 %v919, 8
        %v936 = vxor.u32 %v920, 8
        %v937 = vxor.u32 %v921, 8
        %v938 = vxor.u32 %v922, 8
        %v939 = vxor.u32 %v923, 8
        %v940 = vxor.u32 %v924, 8
        %v941 = vxor.u32 %v925, 8
        %v942 = vxor.u32 %v926, 8
        %v943 = vxor.u32 %v927, 8
        %v944 = vxor.u32 %v928, 8
        %v945 = vxor.u32 %v929, 8
        %v946 = vxor.u32 %v930, 8
        %v947 = vxor.u32 %v931, 8
        %v948 = vsub.s32 %v932, 8
        %v949 = vsub.s32 %v933, 8
        %v950 = vsub.s32 %v934, 8
        %v951 = vsub.s32 %v935, 8
        %v952 = vsub.s32 %v936, 8
        %v953 = vsub.s32 %v937, 8
        %v954 = vsub.s32 %v938, 8
        %v955 = vsub.s32 %v939, 8
        %v956 = vsub.s32 %v940, 8
        %v957 = vsub.s32 %v941, 8
        %v958 = vsub.s32 %v942, 8
        %v959 = vsub.s32 %v943, 8
        %v960 = vsub.s32 %v944, 8
        %v961 = vsub.s32 %v945, 8
        %v962 = vsub.s32 %v946, 8
        %v963 = vsub.s32 %v947, 8
        %v964 = vcvt.s32.f32 %v948
        %v965 = vcvt.s32.f32 %v949
        %v966 = vcvt.s32.f32 %v950
        %v967 = vcvt.s32.f32 %v951
        %v968 = vcvt.s32.f32 %v952
        %v969 = vcvt.s32.f32 %v953
        %v970 = vcvt.s32.f32 %v954
        %v971 = vcvt.s32.f32 %v955
        %v972 = vcvt.s32.f32 %v956
        %v973 = vcvt.s32.f32 %v957
        %v974 = vcvt.s32.f32 %v958
        %v975 = vcvt.s32.f32 %v959
        %v976 = vcvt.s32.f32 %v960
        %v977 = vcvt.s32.f32 %v961
        %v978 = vcvt.s32.f32 %v962
        %v979 = vcvt.s32.f32 %v963
        %v980 = vlaneseq
        %v981 = vshrl.u32 %v980, 7
        %v982 = vsub.s32 2, %v981
        %v983 = vrot.slane %v690, %v982
        %v984 = vlaneseq
        %v985 = vshrl.u32 %v984, 7
        %v986 = vsub.s32 2, %v985
        %v987 = vrot.slane %v691, %v986
        %v988 = vmul.f32 %v964, %v983
        %v989 = vmul.f32 %v965, %v987
        %v990 = vmul.f32 %v966, %v983
        %v991 = vmul.f32 %v967, %v987
        %v992 = vmul.f32 %v968, %v983
        %v993 = vmul.f32 %v969, %v987
        %v994 = vmul.f32 %v970, %v983
        %v995 = vmul.f32 %v971, %v987
        %v996 = vmul.f32 %v972, %v983
        %v997 = vmul.f32 %v973, %v987
        %v998 = vmul.f32 %v974, %v983
        %v999 = vmul.f32 %v975, %v987
        %v1000 = vmul.f32 %v976, %v983
        %v1001 = vmul.f32 %v977, %v987
        %v1002 = vmul.f32 %v978, %v983
        %v1003 = vmul.f32 %v979, %v987
        %v1004 = vpack.c.bf16 %v990, %v988
        %v1005 = vpack.c.bf16 %v991, %v989
        %v1006 = vpack.c.bf16 %v994, %v992
        %v1007 = vpack.c.bf16 %v995, %v993
        %v1008 = vpack.c.bf16 %v998, %v996
        %v1009 = vpack.c.bf16 %v999, %v997
        %v1010 = vpack.c.bf16 %v1002, %v1000
        %v1011 = vpack.c.bf16 %v1003, %v1001
        %v1012 = vshrl.u32 %v674, 12
        %v1013 = vshrl.u32 %v675, 12
        %v1014 = vshrl.u32 %v676, 12
        %v1015 = vshrl.u32 %v677, 12
        %v1016 = vshrl.u32 %v678, 12
        %v1017 = vshrl.u32 %v679, 12
        %v1018 = vshrl.u32 %v680, 12
        %v1019 = vshrl.u32 %v681, 12
        %v1020 = vshrl.u32 %v682, 12
        %v1021 = vshrl.u32 %v683, 12
        %v1022 = vshrl.u32 %v684, 12
        %v1023 = vshrl.u32 %v685, 12
        %v1024 = vshrl.u32 %v686, 12
        %v1025 = vshrl.u32 %v687, 12
        %v1026 = vshrl.u32 %v688, 12
        %v1027 = vshrl.u32 %v689, 12
        %v1028 = vand.u32 %v1012, 15
        %v1029 = vand.u32 %v1013, 15
        %v1030 = vand.u32 %v1014, 15
        %v1031 = vand.u32 %v1015, 15
        %v1032 = vand.u32 %v1016, 15
        %v1033 = vand.u32 %v1017, 15
        %v1034 = vand.u32 %v1018, 15
        %v1035 = vand.u32 %v1019, 15
        %v1036 = vand.u32 %v1020, 15
        %v1037 = vand.u32 %v1021, 15
        %v1038 = vand.u32 %v1022, 15
        %v1039 = vand.u32 %v1023, 15
        %v1040 = vand.u32 %v1024, 15
        %v1041 = vand.u32 %v1025, 15
        %v1042 = vand.u32 %v1026, 15
        %v1043 = vand.u32 %v1027, 15
        %v1044 = vxor.u32 %v1028, 8
        %v1045 = vxor.u32 %v1029, 8
        %v1046 = vxor.u32 %v1030, 8
        %v1047 = vxor.u32 %v1031, 8
        %v1048 = vxor.u32 %v1032, 8
        %v1049 = vxor.u32 %v1033, 8
        %v1050 = vxor.u32 %v1034, 8
        %v1051 = vxor.u32 %v1035, 8
        %v1052 = vxor.u32 %v1036, 8
        %v1053 = vxor.u32 %v1037, 8
        %v1054 = vxor.u32 %v1038, 8
        %v1055 = vxor.u32 %v1039, 8
        %v1056 = vxor.u32 %v1040, 8
        %v1057 = vxor.u32 %v1041, 8
        %v1058 = vxor.u32 %v1042, 8
        %v1059 = vxor.u32 %v1043, 8
        %v1060 = vsub.s32 %v1044, 8
        %v1061 = vsub.s32 %v1045, 8
        %v1062 = vsub.s32 %v1046, 8
        %v1063 = vsub.s32 %v1047, 8
        %v1064 = vsub.s32 %v1048, 8
        %v1065 = vsub.s32 %v1049, 8
        %v1066 = vsub.s32 %v1050, 8
        %v1067 = vsub.s32 %v1051, 8
        %v1068 = vsub.s32 %v1052, 8
        %v1069 = vsub.s32 %v1053, 8
        %v1070 = vsub.s32 %v1054, 8
        %v1071 = vsub.s32 %v1055, 8
        %v1072 = vsub.s32 %v1056, 8
        %v1073 = vsub.s32 %v1057, 8
        %v1074 = vsub.s32 %v1058, 8
        %v1075 = vsub.s32 %v1059, 8
        %v1076 = vcvt.s32.f32 %v1060
        %v1077 = vcvt.s32.f32 %v1061
        %v1078 = vcvt.s32.f32 %v1062
        %v1079 = vcvt.s32.f32 %v1063
        %v1080 = vcvt.s32.f32 %v1064
        %v1081 = vcvt.s32.f32 %v1065
        %v1082 = vcvt.s32.f32 %v1066
        %v1083 = vcvt.s32.f32 %v1067
        %v1084 = vcvt.s32.f32 %v1068
        %v1085 = vcvt.s32.f32 %v1069
        %v1086 = vcvt.s32.f32 %v1070
        %v1087 = vcvt.s32.f32 %v1071
        %v1088 = vcvt.s32.f32 %v1072
        %v1089 = vcvt.s32.f32 %v1073
        %v1090 = vcvt.s32.f32 %v1074
        %v1091 = vcvt.s32.f32 %v1075
        %v1092 = vlaneseq
        %v1093 = vshrl.u32 %v1092, 7
        %v1094 = vsub.s32 3, %v1093
        %v1095 = vrot.slane %v690, %v1094
        %v1096 = vlaneseq
        %v1097 = vshrl.u32 %v1096, 7
        %v1098 = vsub.s32 3, %v1097
        %v1099 = vrot.slane %v691, %v1098
        %v1100 = vmul.f32 %v1076, %v1095
        %v1101 = vmul.f32 %v1077, %v1099
        %v1102 = vmul.f32 %v1078, %v1095
        %v1103 = vmul.f32 %v1079, %v1099
        %v1104 = vmul.f32 %v1080, %v1095
        %v1105 = vmul.f32 %v1081, %v1099
        %v1106 = vmul.f32 %v1082, %v1095
        %v1107 = vmul.f32 %v1083, %v1099
        %v1108 = vmul.f32 %v1084, %v1095
        %v1109 = vmul.f32 %v1085, %v1099
        %v1110 = vmul.f32 %v1086, %v1095
        %v1111 = vmul.f32 %v1087, %v1099
        %v1112 = vmul.f32 %v1088, %v1095
        %v1113 = vmul.f32 %v1089, %v1099
        %v1114 = vmul.f32 %v1090, %v1095
        %v1115 = vmul.f32 %v1091, %v1099
        %v1116 = vpack.c.bf16 %v1102, %v1100
        %v1117 = vpack.c.bf16 %v1103, %v1101
        %v1118 = vpack.c.bf16 %v1106, %v1104
        %v1119 = vpack.c.bf16 %v1107, %v1105
        %v1120 = vpack.c.bf16 %v1110, %v1108
        %v1121 = vpack.c.bf16 %v1111, %v1109
        %v1122 = vpack.c.bf16 %v1114, %v1112
        %v1123 = vpack.c.bf16 %v1115, %v1113
        %v1124 = vshrl.u32 %v674, 16
        %v1125 = vshrl.u32 %v675, 16
        %v1126 = vshrl.u32 %v676, 16
        %v1127 = vshrl.u32 %v677, 16
        %v1128 = vshrl.u32 %v678, 16
        %v1129 = vshrl.u32 %v679, 16
        %v1130 = vshrl.u32 %v680, 16
        %v1131 = vshrl.u32 %v681, 16
        %v1132 = vshrl.u32 %v682, 16
        %v1133 = vshrl.u32 %v683, 16
        %v1134 = vshrl.u32 %v684, 16
        %v1135 = vshrl.u32 %v685, 16
        %v1136 = vshrl.u32 %v686, 16
        %v1137 = vshrl.u32 %v687, 16
        %v1138 = vshrl.u32 %v688, 16
        %v1139 = vshrl.u32 %v689, 16
        %v1140 = vand.u32 %v1124, 15
        %v1141 = vand.u32 %v1125, 15
        %v1142 = vand.u32 %v1126, 15
        %v1143 = vand.u32 %v1127, 15
        %v1144 = vand.u32 %v1128, 15
        %v1145 = vand.u32 %v1129, 15
        %v1146 = vand.u32 %v1130, 15
        %v1147 = vand.u32 %v1131, 15
        %v1148 = vand.u32 %v1132, 15
        %v1149 = vand.u32 %v1133, 15
        %v1150 = vand.u32 %v1134, 15
        %v1151 = vand.u32 %v1135, 15
        %v1152 = vand.u32 %v1136, 15
        %v1153 = vand.u32 %v1137, 15
        %v1154 = vand.u32 %v1138, 15
        %v1155 = vand.u32 %v1139, 15
        %v1156 = vxor.u32 %v1140, 8
        %v1157 = vxor.u32 %v1141, 8
        %v1158 = vxor.u32 %v1142, 8
        %v1159 = vxor.u32 %v1143, 8
        %v1160 = vxor.u32 %v1144, 8
        %v1161 = vxor.u32 %v1145, 8
        %v1162 = vxor.u32 %v1146, 8
        %v1163 = vxor.u32 %v1147, 8
        %v1164 = vxor.u32 %v1148, 8
        %v1165 = vxor.u32 %v1149, 8
        %v1166 = vxor.u32 %v1150, 8
        %v1167 = vxor.u32 %v1151, 8
        %v1168 = vxor.u32 %v1152, 8
        %v1169 = vxor.u32 %v1153, 8
        %v1170 = vxor.u32 %v1154, 8
        %v1171 = vxor.u32 %v1155, 8
        %v1172 = vsub.s32 %v1156, 8
        %v1173 = vsub.s32 %v1157, 8
        %v1174 = vsub.s32 %v1158, 8
        %v1175 = vsub.s32 %v1159, 8
        %v1176 = vsub.s32 %v1160, 8
        %v1177 = vsub.s32 %v1161, 8
        %v1178 = vsub.s32 %v1162, 8
        %v1179 = vsub.s32 %v1163, 8
        %v1180 = vsub.s32 %v1164, 8
        %v1181 = vsub.s32 %v1165, 8
        %v1182 = vsub.s32 %v1166, 8
        %v1183 = vsub.s32 %v1167, 8
        %v1184 = vsub.s32 %v1168, 8
        %v1185 = vsub.s32 %v1169, 8
        %v1186 = vsub.s32 %v1170, 8
        %v1187 = vsub.s32 %v1171, 8
        %v1188 = vcvt.s32.f32 %v1172
        %v1189 = vcvt.s32.f32 %v1173
        %v1190 = vcvt.s32.f32 %v1174
        %v1191 = vcvt.s32.f32 %v1175
        %v1192 = vcvt.s32.f32 %v1176
        %v1193 = vcvt.s32.f32 %v1177
        %v1194 = vcvt.s32.f32 %v1178
        %v1195 = vcvt.s32.f32 %v1179
        %v1196 = vcvt.s32.f32 %v1180
        %v1197 = vcvt.s32.f32 %v1181
        %v1198 = vcvt.s32.f32 %v1182
        %v1199 = vcvt.s32.f32 %v1183
        %v1200 = vcvt.s32.f32 %v1184
        %v1201 = vcvt.s32.f32 %v1185
        %v1202 = vcvt.s32.f32 %v1186
        %v1203 = vcvt.s32.f32 %v1187
        %v1204 = vlaneseq
        %v1205 = vshrl.u32 %v1204, 7
        %v1206 = vsub.s32 4, %v1205
        %v1207 = vrot.slane %v690, %v1206
        %v1208 = vlaneseq
        %v1209 = vshrl.u32 %v1208, 7
        %v1210 = vsub.s32 4, %v1209
        %v1211 = vrot.slane %v691, %v1210
        %v1212 = vmul.f32 %v1188, %v1207
        %v1213 = vmul.f32 %v1189, %v1211
        %v1214 = vmul.f32 %v1190, %v1207
        %v1215 = vmul.f32 %v1191, %v1211
        %v1216 = vmul.f32 %v1192, %v1207
        %v1217 = vmul.f32 %v1193, %v1211
        %v1218 = vmul.f32 %v1194, %v1207
        %v1219 = vmul.f32 %v1195, %v1211
        %v1220 = vmul.f32 %v1196, %v1207
        %v1221 = vmul.f32 %v1197, %v1211
        %v1222 = vmul.f32 %v1198, %v1207
        %v1223 = vmul.f32 %v1199, %v1211
        %v1224 = vmul.f32 %v1200, %v1207
        %v1225 = vmul.f32 %v1201, %v1211
        %v1226 = vmul.f32 %v1202, %v1207
        %v1227 = vmul.f32 %v1203, %v1211
        %v1228 = vpack.c.bf16 %v1214, %v1212
        %v1229 = vpack.c.bf16 %v1215, %v1213
        %v1230 = vpack.c.bf16 %v1218, %v1216
        %v1231 = vpack.c.bf16 %v1219, %v1217
        %v1232 = vpack.c.bf16 %v1222, %v1220
        %v1233 = vpack.c.bf16 %v1223, %v1221
        %v1234 = vpack.c.bf16 %v1226, %v1224
        %v1235 = vpack.c.bf16 %v1227, %v1225
        %v1236 = vshrl.u32 %v674, 20
        %v1237 = vshrl.u32 %v675, 20
        %v1238 = vshrl.u32 %v676, 20
        %v1239 = vshrl.u32 %v677, 20
        %v1240 = vshrl.u32 %v678, 20
        %v1241 = vshrl.u32 %v679, 20
        %v1242 = vshrl.u32 %v680, 20
        %v1243 = vshrl.u32 %v681, 20
        %v1244 = vshrl.u32 %v682, 20
        %v1245 = vshrl.u32 %v683, 20
        %v1246 = vshrl.u32 %v684, 20
        %v1247 = vshrl.u32 %v685, 20
        %v1248 = vshrl.u32 %v686, 20
        %v1249 = vshrl.u32 %v687, 20
        %v1250 = vshrl.u32 %v688, 20
        %v1251 = vshrl.u32 %v689, 20
        %v1252 = vand.u32 %v1236, 15
        %v1253 = vand.u32 %v1237, 15
        %v1254 = vand.u32 %v1238, 15
        %v1255 = vand.u32 %v1239, 15
        %v1256 = vand.u32 %v1240, 15
        %v1257 = vand.u32 %v1241, 15
        %v1258 = vand.u32 %v1242, 15
        %v1259 = vand.u32 %v1243, 15
        %v1260 = vand.u32 %v1244, 15
        %v1261 = vand.u32 %v1245, 15
        %v1262 = vand.u32 %v1246, 15
        %v1263 = vand.u32 %v1247, 15
        %v1264 = vand.u32 %v1248, 15
        %v1265 = vand.u32 %v1249, 15
        %v1266 = vand.u32 %v1250, 15
        %v1267 = vand.u32 %v1251, 15
        %v1268 = vxor.u32 %v1252, 8
        %v1269 = vxor.u32 %v1253, 8
        %v1270 = vxor.u32 %v1254, 8
        %v1271 = vxor.u32 %v1255, 8
        %v1272 = vxor.u32 %v1256, 8
        %v1273 = vxor.u32 %v1257, 8
        %v1274 = vxor.u32 %v1258, 8
        %v1275 = vxor.u32 %v1259, 8
        %v1276 = vxor.u32 %v1260, 8
        %v1277 = vxor.u32 %v1261, 8
        %v1278 = vxor.u32 %v1262, 8
        %v1279 = vxor.u32 %v1263, 8
        %v1280 = vxor.u32 %v1264, 8
        %v1281 = vxor.u32 %v1265, 8
        %v1282 = vxor.u32 %v1266, 8
        %v1283 = vxor.u32 %v1267, 8
        %v1284 = vsub.s32 %v1268, 8
        %v1285 = vsub.s32 %v1269, 8
        %v1286 = vsub.s32 %v1270, 8
        %v1287 = vsub.s32 %v1271, 8
        %v1288 = vsub.s32 %v1272, 8
        %v1289 = vsub.s32 %v1273, 8
        %v1290 = vsub.s32 %v1274, 8
        %v1291 = vsub.s32 %v1275, 8
        %v1292 = vsub.s32 %v1276, 8
        %v1293 = vsub.s32 %v1277, 8
        %v1294 = vsub.s32 %v1278, 8
        %v1295 = vsub.s32 %v1279, 8
        %v1296 = vsub.s32 %v1280, 8
        %v1297 = vsub.s32 %v1281, 8
        %v1298 = vsub.s32 %v1282, 8
        %v1299 = vsub.s32 %v1283, 8
        %v1300 = vcvt.s32.f32 %v1284
        %v1301 = vcvt.s32.f32 %v1285
        %v1302 = vcvt.s32.f32 %v1286
        %v1303 = vcvt.s32.f32 %v1287
        %v1304 = vcvt.s32.f32 %v1288
        %v1305 = vcvt.s32.f32 %v1289
        %v1306 = vcvt.s32.f32 %v1290
        %v1307 = vcvt.s32.f32 %v1291
        %v1308 = vcvt.s32.f32 %v1292
        %v1309 = vcvt.s32.f32 %v1293
        %v1310 = vcvt.s32.f32 %v1294
        %v1311 = vcvt.s32.f32 %v1295
        %v1312 = vcvt.s32.f32 %v1296
        %v1313 = vcvt.s32.f32 %v1297
        %v1314 = vcvt.s32.f32 %v1298
        %v1315 = vcvt.s32.f32 %v1299
        %v1316 = vlaneseq
        %v1317 = vshrl.u32 %v1316, 7
        %v1318 = vsub.s32 5, %v1317
        %v1319 = vrot.slane %v690, %v1318
        %v1320 = vlaneseq
        %v1321 = vshrl.u32 %v1320, 7
        %v1322 = vsub.s32 5, %v1321
        %v1323 = vrot.slane %v691, %v1322
        %v1324 = vmul.f32 %v1300, %v1319
        %v1325 = vmul.f32 %v1301, %v1323
        %v1326 = vmul.f32 %v1302, %v1319
        %v1327 = vmul.f32 %v1303, %v1323
        %v1328 = vmul.f32 %v1304, %v1319
        %v1329 = vmul.f32 %v1305, %v1323
        %v1330 = vmul.f32 %v1306, %v1319
        %v1331 = vmul.f32 %v1307, %v1323
        %v1332 = vmul.f32 %v1308, %v1319
        %v1333 = vmul.f32 %v1309, %v1323
        %v1334 = vmul.f32 %v1310, %v1319
        %v1335 = vmul.f32 %v1311, %v1323
        %v1336 = vmul.f32 %v1312, %v1319
        %v1337 = vmul.f32 %v1313, %v1323
        %v1338 = vmul.f32 %v1314, %v1319
        %v1339 = vmul.f32 %v1315, %v1323
        %v1340 = vpack.c.bf16 %v1326, %v1324
        %v1341 = vpack.c.bf16 %v1327, %v1325
        %v1342 = vpack.c.bf16 %v1330, %v1328
        %v1343 = vpack.c.bf16 %v1331, %v1329
        %v1344 = vpack.c.bf16 %v1334, %v1332
        %v1345 = vpack.c.bf16 %v1335, %v1333
        %v1346 = vpack.c.bf16 %v1338, %v1336
        %v1347 = vpack.c.bf16 %v1339, %v1337
        %v1348 = vshrl.u32 %v674, 24
        %v1349 = vshrl.u32 %v675, 24
        %v1350 = vshrl.u32 %v676, 24
        %v1351 = vshrl.u32 %v677, 24
        %v1352 = vshrl.u32 %v678, 24
        %v1353 = vshrl.u32 %v679, 24
        %v1354 = vshrl.u32 %v680, 24
        %v1355 = vshrl.u32 %v681, 24
        %v1356 = vshrl.u32 %v682, 24
        %v1357 = vshrl.u32 %v683, 24
        %v1358 = vshrl.u32 %v684, 24
        %v1359 = vshrl.u32 %v685, 24
        %v1360 = vshrl.u32 %v686, 24
        %v1361 = vshrl.u32 %v687, 24
        %v1362 = vshrl.u32 %v688, 24
        %v1363 = vshrl.u32 %v689, 24
        %v1364 = vand.u32 %v1348, 15
        %v1365 = vand.u32 %v1349, 15
        %v1366 = vand.u32 %v1350, 15
        %v1367 = vand.u32 %v1351, 15
        %v1368 = vand.u32 %v1352, 15
        %v1369 = vand.u32 %v1353, 15
        %v1370 = vand.u32 %v1354, 15
        %v1371 = vand.u32 %v1355, 15
        %v1372 = vand.u32 %v1356, 15
        %v1373 = vand.u32 %v1357, 15
        %v1374 = vand.u32 %v1358, 15
        %v1375 = vand.u32 %v1359, 15
        %v1376 = vand.u32 %v1360, 15
        %v1377 = vand.u32 %v1361, 15
        %v1378 = vand.u32 %v1362, 15
        %v1379 = vand.u32 %v1363, 15
        %v1380 = vxor.u32 %v1364, 8
        %v1381 = vxor.u32 %v1365, 8
        %v1382 = vxor.u32 %v1366, 8
        %v1383 = vxor.u32 %v1367, 8
        %v1384 = vxor.u32 %v1368, 8
        %v1385 = vxor.u32 %v1369, 8
        %v1386 = vxor.u32 %v1370, 8
        %v1387 = vxor.u32 %v1371, 8
        %v1388 = vxor.u32 %v1372, 8
        %v1389 = vxor.u32 %v1373, 8
        %v1390 = vxor.u32 %v1374, 8
        %v1391 = vxor.u32 %v1375, 8
        %v1392 = vxor.u32 %v1376, 8
        %v1393 = vxor.u32 %v1377, 8
        %v1394 = vxor.u32 %v1378, 8
        %v1395 = vxor.u32 %v1379, 8
        %v1396 = vsub.s32 %v1380, 8
        %v1397 = vsub.s32 %v1381, 8
        %v1398 = vsub.s32 %v1382, 8
        %v1399 = vsub.s32 %v1383, 8
        %v1400 = vsub.s32 %v1384, 8
        %v1401 = vsub.s32 %v1385, 8
        %v1402 = vsub.s32 %v1386, 8
        %v1403 = vsub.s32 %v1387, 8
        %v1404 = vsub.s32 %v1388, 8
        %v1405 = vsub.s32 %v1389, 8
        %v1406 = vsub.s32 %v1390, 8
        %v1407 = vsub.s32 %v1391, 8
        %v1408 = vsub.s32 %v1392, 8
        %v1409 = vsub.s32 %v1393, 8
        %v1410 = vsub.s32 %v1394, 8
        %v1411 = vsub.s32 %v1395, 8
        %v1412 = vcvt.s32.f32 %v1396
        %v1413 = vcvt.s32.f32 %v1397
        %v1414 = vcvt.s32.f32 %v1398
        %v1415 = vcvt.s32.f32 %v1399
        %v1416 = vcvt.s32.f32 %v1400
        %v1417 = vcvt.s32.f32 %v1401
        %v1418 = vcvt.s32.f32 %v1402
        %v1419 = vcvt.s32.f32 %v1403
        %v1420 = vcvt.s32.f32 %v1404
        %v1421 = vcvt.s32.f32 %v1405
        %v1422 = vcvt.s32.f32 %v1406
        %v1423 = vcvt.s32.f32 %v1407
        %v1424 = vcvt.s32.f32 %v1408
        %v1425 = vcvt.s32.f32 %v1409
        %v1426 = vcvt.s32.f32 %v1410
        %v1427 = vcvt.s32.f32 %v1411
        %v1428 = vlaneseq
        %v1429 = vshrl.u32 %v1428, 7
        %v1430 = vsub.s32 6, %v1429
        %v1431 = vrot.slane %v690, %v1430
        %v1432 = vlaneseq
        %v1433 = vshrl.u32 %v1432, 7
        %v1434 = vsub.s32 6, %v1433
        %v1435 = vrot.slane %v691, %v1434
        %v1436 = vmul.f32 %v1412, %v1431
        %v1437 = vmul.f32 %v1413, %v1435
        %v1438 = vmul.f32 %v1414, %v1431
        %v1439 = vmul.f32 %v1415, %v1435
        %v1440 = vmul.f32 %v1416, %v1431
        %v1441 = vmul.f32 %v1417, %v1435
        %v1442 = vmul.f32 %v1418, %v1431
        %v1443 = vmul.f32 %v1419, %v1435
        %v1444 = vmul.f32 %v1420, %v1431
        %v1445 = vmul.f32 %v1421, %v1435
        %v1446 = vmul.f32 %v1422, %v1431
        %v1447 = vmul.f32 %v1423, %v1435
        %v1448 = vmul.f32 %v1424, %v1431
        %v1449 = vmul.f32 %v1425, %v1435
        %v1450 = vmul.f32 %v1426, %v1431
        %v1451 = vmul.f32 %v1427, %v1435
        %v1452 = vpack.c.bf16 %v1438, %v1436
        %v1453 = vpack.c.bf16 %v1439, %v1437
        %v1454 = vpack.c.bf16 %v1442, %v1440
        %v1455 = vpack.c.bf16 %v1443, %v1441
        %v1456 = vpack.c.bf16 %v1446, %v1444
        %v1457 = vpack.c.bf16 %v1447, %v1445
        %v1458 = vpack.c.bf16 %v1450, %v1448
        %v1459 = vpack.c.bf16 %v1451, %v1449
        %v1460 = vshrl.u32 %v674, 28
        %v1461 = vshrl.u32 %v675, 28
        %v1462 = vshrl.u32 %v676, 28
        %v1463 = vshrl.u32 %v677, 28
        %v1464 = vshrl.u32 %v678, 28
        %v1465 = vshrl.u32 %v679, 28
        %v1466 = vshrl.u32 %v680, 28
        %v1467 = vshrl.u32 %v681, 28
        %v1468 = vshrl.u32 %v682, 28
        %v1469 = vshrl.u32 %v683, 28
        %v1470 = vshrl.u32 %v684, 28
        %v1471 = vshrl.u32 %v685, 28
        %v1472 = vshrl.u32 %v686, 28
        %v1473 = vshrl.u32 %v687, 28
        %v1474 = vshrl.u32 %v688, 28
        %v1475 = vshrl.u32 %v689, 28
        %v1476 = vand.u32 %v1460, 15
        %v1477 = vand.u32 %v1461, 15
        %v1478 = vand.u32 %v1462, 15
        %v1479 = vand.u32 %v1463, 15
        %v1480 = vand.u32 %v1464, 15
        %v1481 = vand.u32 %v1465, 15
        %v1482 = vand.u32 %v1466, 15
        %v1483 = vand.u32 %v1467, 15
        %v1484 = vand.u32 %v1468, 15
        %v1485 = vand.u32 %v1469, 15
        %v1486 = vand.u32 %v1470, 15
        %v1487 = vand.u32 %v1471, 15
        %v1488 = vand.u32 %v1472, 15
        %v1489 = vand.u32 %v1473, 15
        %v1490 = vand.u32 %v1474, 15
        %v1491 = vand.u32 %v1475, 15
        %v1492 = vxor.u32 %v1476, 8
        %v1493 = vxor.u32 %v1477, 8
        %v1494 = vxor.u32 %v1478, 8
        %v1495 = vxor.u32 %v1479, 8
        %v1496 = vxor.u32 %v1480, 8
        %v1497 = vxor.u32 %v1481, 8
        %v1498 = vxor.u32 %v1482, 8
        %v1499 = vxor.u32 %v1483, 8
        %v1500 = vxor.u32 %v1484, 8
        %v1501 = vxor.u32 %v1485, 8
        %v1502 = vxor.u32 %v1486, 8
        %v1503 = vxor.u32 %v1487, 8
        %v1504 = vxor.u32 %v1488, 8
        %v1505 = vxor.u32 %v1489, 8
        %v1506 = vxor.u32 %v1490, 8
        %v1507 = vxor.u32 %v1491, 8
        %v1508 = vsub.s32 %v1492, 8
        %v1509 = vsub.s32 %v1493, 8
        %v1510 = vsub.s32 %v1494, 8
        %v1511 = vsub.s32 %v1495, 8
        %v1512 = vsub.s32 %v1496, 8
        %v1513 = vsub.s32 %v1497, 8
        %v1514 = vsub.s32 %v1498, 8
        %v1515 = vsub.s32 %v1499, 8
        %v1516 = vsub.s32 %v1500, 8
        %v1517 = vsub.s32 %v1501, 8
        %v1518 = vsub.s32 %v1502, 8
        %v1519 = vsub.s32 %v1503, 8
        %v1520 = vsub.s32 %v1504, 8
        %v1521 = vsub.s32 %v1505, 8
        %v1522 = vsub.s32 %v1506, 8
        %v1523 = vsub.s32 %v1507, 8
        %v1524 = vcvt.s32.f32 %v1508
        %v1525 = vcvt.s32.f32 %v1509
        %v1526 = vcvt.s32.f32 %v1510
        %v1527 = vcvt.s32.f32 %v1511
        %v1528 = vcvt.s32.f32 %v1512
        %v1529 = vcvt.s32.f32 %v1513
        %v1530 = vcvt.s32.f32 %v1514
        %v1531 = vcvt.s32.f32 %v1515
        %v1532 = vcvt.s32.f32 %v1516
        %v1533 = vcvt.s32.f32 %v1517
        %v1534 = vcvt.s32.f32 %v1518
        %v1535 = vcvt.s32.f32 %v1519
        %v1536 = vcvt.s32.f32 %v1520
        %v1537 = vcvt.s32.f32 %v1521
        %v1538 = vcvt.s32.f32 %v1522
        %v1539 = vcvt.s32.f32 %v1523
        %v1540 = vlaneseq
        %v1541 = vshrl.u32 %v1540, 7
        %v1542 = vsub.s32 7, %v1541
        %v1543 = vrot.slane %v690, %v1542
        %v1544 = vlaneseq
        %v1545 = vshrl.u32 %v1544, 7
        %v1546 = vsub.s32 7, %v1545
        %v1547 = vrot.slane %v691, %v1546
        %v1548 = vmul.f32 %v1524, %v1543
        %v1549 = vmul.f32 %v1525, %v1547
        %v1550 = vmul.f32 %v1526, %v1543
        %v1551 = vmul.f32 %v1527, %v1547
        %v1552 = vmul.f32 %v1528, %v1543
        %v1553 = vmul.f32 %v1529, %v1547
        %v1554 = vmul.f32 %v1530, %v1543
        %v1555 = vmul.f32 %v1531, %v1547
        %v1556 = vmul.f32 %v1532, %v1543
        %v1557 = vmul.f32 %v1533, %v1547
        %v1558 = vmul.f32 %v1534, %v1543
        %v1559 = vmul.f32 %v1535, %v1547
        %v1560 = vmul.f32 %v1536, %v1543
        %v1561 = vmul.f32 %v1537, %v1547
        %v1562 = vmul.f32 %v1538, %v1543
        %v1563 = vmul.f32 %v1539, %v1547
        %v1564 = vpack.c.bf16 %v1550, %v1548
        %v1565 = vpack.c.bf16 %v1551, %v1549
        %v1566 = vpack.c.bf16 %v1554, %v1552
        %v1567 = vpack.c.bf16 %v1555, %v1553
        %v1568 = vpack.c.bf16 %v1558, %v1556
        %v1569 = vpack.c.bf16 %v1559, %v1557
        %v1570 = vpack.c.bf16 %v1562, %v1560
        %v1571 = vpack.c.bf16 %v1563, %v1561
        %v1572 = vld [vmem:[#allocation2] sm:$0xff]
        %v1573 = vld [vmem:[#allocation2 + $0x8] sm:$0xff]
        %v1574 = vld [vmem:[#allocation2 + $0x10] sm:$0xff]
        %v1575 = vld [vmem:[#allocation2 + $0x18] sm:$0xff]
        %1576 = vmatprep.subr.bf16.mxu0 %v781
        %1577 = vmatpush1.bf16.msra.mxu0 %v780
        %1578 = vmatprep.subr.bf16.mxu0 %v783
        %1579 = vmatpush1.bf16.msra.mxu0 %v782
        %1580 = vmatprep.subr.bf16.mxu0 %v785
        %1581 = vmatpush1.bf16.msra.mxu0 %v784
        %1582 = vmatprep.subr.bf16.mxu0 %v787
        %1583 = vmatpush1.bf16.msra.mxu0 %v786
        %1584 = vmatprep.subr.bf16.mxu0 %v893
        %1585 = vmatpush1.bf16.msra.mxu0 %v892
        %1586 = vmatprep.subr.bf16.mxu0 %v895
        %1587 = vmatpush1.bf16.msra.mxu0 %v894
        %1588 = vmatprep.subr.bf16.mxu0 %v897
        %1589 = vmatpush1.bf16.msra.mxu0 %v896
        %1590 = vmatprep.subr.bf16.mxu0 %v899
        %1591 = vmatpush1.bf16.msra.mxu0 %v898
        %1592 = vmatprep.subr.bf16.mxu0 %v1005
        %1593 = vmatpush1.bf16.msra.mxu0 %v1004
        %1594 = vmatprep.subr.bf16.mxu0 %v1007
        %1595 = vmatpush1.bf16.msra.mxu0 %v1006
        %1596 = vmatprep.subr.bf16.mxu0 %v1009
        %1597 = vmatpush1.bf16.msra.mxu0 %v1008
        %1598 = vmatprep.subr.bf16.mxu0 %v1011
        %1599 = vmatpush1.bf16.msra.mxu0 %v1010
        %1600 = vmatprep.subr.bf16.mxu0 %v1117
        %1601 = vmatpush1.bf16.msra.mxu0 %v1116
        %1602 = vmatprep.subr.bf16.mxu0 %v1119
        %1603 = vmatpush1.bf16.msra.mxu0 %v1118
        %1604 = vmatprep.subr.bf16.mxu0 %v1121
        %1605 = vmatpush1.bf16.msra.mxu0 %v1120
        %1606 = vmatprep.subr.bf16.mxu0 %v1123
        %1607 = vmatpush1.bf16.msra.mxu0 %v1122
        %1608 = vmatprep.mubr.bf16.mxu0 %v671
        %1609 = vmatmul.mubr.bf16.gmra.mrb[0].mxu0 %v670
        %v1610 = vpop.f32.mrb[0].mxu0
        %v1611 = vadd.f32 0.0, %v1610
        %v1612 = vpop.f32.mrb[0].mxu0
        %v1613 = vadd.f32 0.0, %v1612
        %v1614 = vpop.f32.mrb[0].mxu0
        %v1615 = vadd.f32 0.0, %v1614
        %v1616 = vpop.f32.mrb[0].mxu0
        %v1617 = vadd.f32 0.0, %v1616
        %1618 = vdwg.mxu0
        %1619 = vmatprep.subr.bf16.mxu0 %v1229
        %1620 = vmatpush1.bf16.msra.mxu0 %v1228
        %1621 = vmatprep.subr.bf16.mxu0 %v1231
        %1622 = vmatpush1.bf16.msra.mxu0 %v1230
        %1623 = vmatprep.subr.bf16.mxu0 %v1233
        %1624 = vmatpush1.bf16.msra.mxu0 %v1232
        %1625 = vmatprep.subr.bf16.mxu0 %v1235
        %1626 = vmatpush1.bf16.msra.mxu0 %v1234
        %1627 = vmatprep.subr.bf16.mxu0 %v1341
        %1628 = vmatpush1.bf16.msra.mxu0 %v1340
        %1629 = vmatprep.subr.bf16.mxu0 %v1343
        %1630 = vmatpush1.bf16.msra.mxu0 %v1342
        %1631 = vmatprep.subr.bf16.mxu0 %v1345
        %1632 = vmatpush1.bf16.msra.mxu0 %v1344
        %1633 = vmatprep.subr.bf16.mxu0 %v1347
        %1634 = vmatpush1.bf16.msra.mxu0 %v1346
        %1635 = vmatprep.subr.bf16.mxu0 %v1453
        %1636 = vmatpush1.bf16.msra.mxu0 %v1452
        %1637 = vmatprep.subr.bf16.mxu0 %v1455
        %1638 = vmatpush1.bf16.msra.mxu0 %v1454
        %1639 = vmatprep.subr.bf16.mxu0 %v1457
        %1640 = vmatpush1.bf16.msra.mxu0 %v1456
        %1641 = vmatprep.subr.bf16.mxu0 %v1459
        %1642 = vmatpush1.bf16.msra.mxu0 %v1458
        %1643 = vmatprep.subr.bf16.mxu0 %v1565
        %1644 = vmatpush1.bf16.msra.mxu0 %v1564
        %1645 = vmatprep.subr.bf16.mxu0 %v1567
        %1646 = vmatpush1.bf16.msra.mxu0 %v1566
        %1647 = vmatprep.subr.bf16.mxu0 %v1569
        %1648 = vmatpush1.bf16.msra.mxu0 %v1568
        %1649 = vmatprep.subr.bf16.mxu0 %v1571
        %1650 = vmatpush1.bf16.msra.mxu0 %v1570
        %1651 = vmatprep.mubr.bf16.mxu0 %v673
        %1652 = vmatmul.mubr.bf16.gmra.mrb[0].mxu0 %v672
        %v1653 = vpop.f32.mrb[0].mxu0
        %v1654 = vadd.f32 %v1611, %v1653
        %v1655 = vpop.f32.mrb[0].mxu0
        %v1656 = vadd.f32 %v1613, %v1655
        %v1657 = vpop.f32.mrb[0].mxu0
        %v1658 = vadd.f32 %v1615, %v1657
        %v1659 = vpop.f32.mrb[0].mxu0
        %v1660 = vadd.f32 %v1617, %v1659
        %1661 = vdwg.mxu0
        %v1662 = vadd.f32 %v1572, %v1654
        %v1663 = vadd.f32 %v1573, %v1656
        %v1664 = vadd.f32 %v1574, %v1658
        %v1665 = vadd.f32 %v1575, %v1660
        %1666 = vst [vmem:[#allocation2] sm:$0xff] %v1662
        %1667 = vst [vmem:[#allocation2 + $0x8] sm:$0xff] %v1663
        %1668 = vst [vmem:[#allocation2 + $0x10] sm:$0xff] %v1664
        %1669 = vst [vmem:[#allocation2 + $0x18] sm:$0xff] %v1665
        %p1670 = scmp.eq.s32.totalorder %s26, 3
        // Predicated region
        $region133: #{fused_llama_mlp_i4fp8.3} parent=111 // pred_check
          %p1671 = pneg %p1670
        $region134: #{fused_llama_mlp_i4fp8.3} parent=111 // pred_check_branch
          %1673 = sbr.rel (%p1671) target = $region136
        $region135: #{fused_llama_mlp_i4fp8.3} parent=111 // pred_region
          %v1674 = vld [vmem:[#allocation2] sm:$0xff]
          %v1675 = vld [vmem:[#allocation2 + $0x8] sm:$0xff]
          %v1676 = vld [vmem:[#allocation2 + $0x10] sm:$0xff]
          %v1677 = vld [vmem:[#allocation2 + $0x18] sm:$0xff]
          %v1678 = vld [vmem:[%s470] sm:$0xff]
          %v1679 = vld [vmem:[%s470 + $0x8] sm:$0xff]
          %1681 = vset.pattern.permute.xlu0 0
          %1682 = vperm.xlu0 %1681, %v1678
          %v1683 = vpop.permute.xlu0 %1682
          %1686 = vset.pattern.permute.xlu0 0
          %1687 = vperm.xlu0 %1686, %v1679
          %v1688 = vpop.permute.xlu0 %1687
          %v1690 = vmul.f32 %v1674, %v1683
          %v1691 = vmul.f32 %v1675, %v1683
          %v1692 = vmul.f32 %v1676, %v1688
          %v1693 = vmul.f32 %v1677, %v1688
          %v1694 = vld [vmem:[%s415] sm:$0xff]
          %v1695 = vld [vmem:[%s415 + $0x8] sm:$0xff]
          %v1696 = vunpack.c.l.bf16 %v1694
          %v1697 = vunpack.c.h.bf16 %v1694
          %v1698 = vunpack.c.l.bf16 %v1695
          %v1699 = vunpack.c.h.bf16 %v1695
          %v1700 = vadd.f32 %v1690, %v1696
          %v1701 = vadd.f32 %v1691, %v1697
          %v1702 = vadd.f32 %v1692, %v1698
          %v1703 = vadd.f32 %v1693, %v1699
          %v1704 = vpack.c.bf16 %v1702, %v1700
          %v1705 = vpack.c.bf16 %v1703, %v1701
          %v1708 = vunpack.c.l.b16 %v1704
          %v1709 = vunpack.c.l.b16 %v1705
          %v1710 = vunpack.c.h.b16 %v1704
          %v1711 = vunpack.c.h.b16 %v1705
          %v1712 = vpack.c.b16 %v1709, %v1708
          %v1713 = vpack.c.b16 %v1711, %v1710
          %1716 = vst [vmem:[%s461] sm:$0xff] %v1712
          %1717 = vst [vmem:[%s461 + $0x8] sm:$0xff] %v1713
        $region136: #{fused_llama_mlp_i4fp8.3} parent=111 // pred_fallthru
          _
        %s1718 = sand.u32 %s190, 1
        %s1719 = scalar_lea.sflag [#allocation8], %s1718
        %s1720 = sand.u32 %s190, 1
        %s1721 = smul.addr %s1720, 16
        %s1722 = scalar_lea.vmem [#allocation7], %s1721
        // Predicated region
        $region137: #{fused_llama_mlp_i4fp8.3} parent=111 // pred_check
          %p1723 = pneg %p200
        $region138: #{fused_llama_mlp_i4fp8.3} parent=111 // pred_check_branch
          %1725 = sbr.rel (%p1723) target = $region140
        $region139: #{fused_llama_mlp_i4fp8.3} parent=111 // pred_region
          %s1726 = smul.u32 2, %s24
          %s1727 = smul.u32 2, %s25
          %s1729 = ssub.s32 256, 256
          %1730 = vsyncadd %s1719, %s1729
          %s1731 = smul.addr %s1726, 8
          %s1732 = sadd.s32 %s1727, %s1731
          %s1733 = smul.addr %s1732, 64
          %s1734 = scalar_lea.hbm %s5, %s1733
          %s1735 = sshll.u32 %s1722, 4
          %s1736 = int_to_ptr.vmem [resolvable:$true] %s1735
          %1741 = dma.vmem_to_hbm [thread:$0]  %s1736, 256, %s1734, %s1719, 128, 512, 8
        $region140: #{fused_llama_mlp_i4fp8.3} parent=111 // pred_fallthru
          _
      $region112: #{fused_llama_mlp_i4fp8.3} parent=5 // pred_fallthru
        _
      %p1742 = scmp.le.s32.totalorder 2, %s14
      // Predicated region
      $region141: #{fused_llama_mlp_i4fp8.3} parent=5 // pred_check
        %p1743 = pneg %p1742
      $region142: #{fused_llama_mlp_i4fp8.3} parent=5 // pred_check_branch
        %1745 = sbr.rel (%p1743) target = $region144
      $region143: #{fused_llama_mlp_i4fp8.3} parent=5 // pred_region
        %s1746 = ssub.s32 %s14, 2
        // Predicated region
        $region145: #{fused_llama_mlp_i4fp8.3} parent=143 // pred_check
          %p1747 = pneg %p206
        $region146: #{fused_llama_mlp_i4fp8.3} parent=143 // pred_check_branch
          %1749 = sbr.rel (%p1747) target = $region148
        $region147: #{fused_llama_mlp_i4fp8.3} parent=143 // pred_region
          %s1750 = sand.u32 %s191, 1
          %s1751 = scalar_lea.sflag [#allocation8], %s1750
          %s1752 = sand.u32 %s191, 1
          %s1753 = smul.addr %s1752, 16
          %s1754 = scalar_lea.vmem [#allocation7], %s1753
          %1755 = dma.done %s1751, 256
        $region148: #{fused_llama_mlp_i4fp8.3} parent=143 // pred_fallthru
          _
      $region144: #{fused_llama_mlp_i4fp8.3} parent=5 // pred_fallthru
        _
    $region6: #{fused_llama_mlp_i4fp8.3} parent=1 // loop_footer
      %s18 = sadd.s32 1, %s14
    $region7: #{fused_llama_mlp_i4fp8.3} parent=1 // loop_footer_branch
      %13 = sbr.rel target = $region3
    $region8: #{fused_llama_mlp_i4fp8.3} parent=1 // loop_exit
      _
    %1756 = vsyncpa [#allocation8], 1
    %s1757 = scalar_lea.sflag [#allocation8], 1
    %1758 = vsyncpa %s1757, 1

// kernel: fused_llama_mlp_i4fp8.2
$region0: #{fused_llama_mlp_i4fp8.2}
  #allocation0 [shape = 'u32[]', space=smem, size = 0x4, offset = 0x4, fixed_abs, tag = 'smem constant byte address 0x4 - core index']
  #allocation1 [shape = 'u32[144,128]{1,0:T(1,128)}', space=vmem, size = 0x12000, scoped, tag = 'internal scratch']
  #allocation2 [shape = 'f32[16,256]{1,0:T(8,128)}', space=vmem, size = 0x4000, scoped, tag = 'scratch operand']
  #allocation3 [shape = 'f32[16,256]{1,0:T(8,128)}', space=vmem, size = 0x4000, scoped, tag = 'scratch operand']
  %s0 = inlined_call_operand.vmem [shape: bf16[32,1024], index: 0, kind: input, shape index: {}]
  %s1 = inlined_call_operand.vmem [shape: f32[32,1], index: 1, kind: input, shape index: {}]
  %s2 = inlined_call_operand.hbm [shape: u32[128,2048], index: 2, kind: input, shape index: {}]
  %s3 = inlined_call_operand.vmem [shape: f32[16,2048], index: 3, kind: input, shape index: {}]
  %s4 = inlined_call_operand.hbm [shape: u32[128,2048], index: 4, kind: input, shape index: {}]
  %s5 = inlined_call_operand.vmem [shape: f32[16,2048], index: 5, kind: input, shape index: {}]
  %s6 = inlined_call_operand.vmem [shape: bf16[32,2048], index: 6, kind: output, shape index: {0}]
  %s7 = inlined_call_operand.vmem [shape: f32[8,32,1], index: 7, kind: output, shape index: {1}]
  %8 = xla_tuple %s6, %s7
  %s9 = sld [smem:[#allocation0]]
  $region138: #{fused_llama_mlp_i4fp8.2} parent=0
    _
  %s11 = ssub.s32 1, %s9
  %s12 = scalar_select 0, %s11, %s9
  $region1: #{fused_llama_mlp_i4fp8.2} parent=0
    #allocation4 [shape = 'u8[32768]{0}', space=vmem, size = 0x8000, scoped, tag = 'input window, operand 0']
    #allocation5 [shape = 'u8[131072]{0}', space=vmem, size = 0x20000, scoped, tag = 'input window, operand 2']
    #allocation6 [shape = 's32[2]{0}', space=sflag, size = 0x8, scoped, tag = 'scoped memory for fused_llama_mlp_i4fp8.2']
    #allocation7 [shape = 'u8[131072]{0}', space=vmem, size = 0x20000, scoped, tag = 'input window, operand 4']
    #allocation8 [shape = 's32[2]{0}', space=sflag, size = 0x8, scoped, tag = 'scoped memory for fused_llama_mlp_i4fp8.2']
    #allocation9 [shape = 'u8[16384]{0}', space=vmem, size = 0x4000, scoped, tag = 'output window, operand 0']
    %13 = vsyncpa [#allocation6], 0
    %s14 = scalar_lea.sflag [#allocation6], 1
    %15 = vsyncpa %s14, 0
    %16 = vsyncpa [#allocation8], 0
    %s17 = scalar_lea.sflag [#allocation8], 1
    %18 = vsyncpa %s17, 0
    loop: start=0, step=1, limit=34
    $region2: #{fused_llama_mlp_i4fp8.2} parent=1 // loop_pre_header
      _
    $region3: #{fused_llama_mlp_i4fp8.2} parent=1 // loop_header
      %s20 = sphi 0, %s24
      %p21 = scmp.ge.s32.totalorder %s20, 34
      %s27 = sphi 0, %s46
      %s28 = sphi 0, %s42
      %s29 = sphi 0, %s38
      %s30 = sphi 0, %s27
      %s31 = sphi 0, %s28
      %s32 = sphi 0, %s29
      %s33 = sphi 0, %s30
      %s34 = sphi 0, %s31
      %s35 = sphi 0, %s32
      %s51 = sphi 0, %s53
      %s54 = sphi 0, %s51
      %s55 = sphi 0, %s54
      %s71 = sphi 0, %s55
      %s77 = sphi 0, %s79
      %s80 = sphi 0, %s77
      %s81 = sphi 0, %s80
      %s97 = sphi 0, %s81
      %s105 = sphi 0, %s107
      %s108 = sphi 0, %s105
      %s109 = sphi 0, %s108
      %s125 = sphi 0, %s109
      %s133 = sphi 0, %s135
      %s136 = sphi 0, %s133
      %s137 = sphi 0, %s136
      %s153 = sphi 0, %s137
      %s161 = sphi 0, %s163
      %s164 = sphi 0, %s161
      %s165 = sphi 0, %s164
      %s181 = sphi 0, %s165
      %s189 = sphi 0, %s191
      %s192 = sphi 0, %s189
      %s193 = sphi 0, %s192
      %s209 = sphi 0, %s193
      %s217 = sphi 0, %s219
      %s220 = sphi 0, %s217
      %s221 = sphi 0, %s220
      %s237 = sphi 0, %s221
      %s245 = sphi 0, %s247
      %s248 = sphi 0, %s245
      %s249 = sphi 0, %s248
      %s265 = sphi 0, %s249
    $region4: #{fused_llama_mlp_i4fp8.2} parent=1 // loop_header_branch
      %23 = sbr.rel (%p21) target = $region8
    $region5: #{fused_llama_mlp_i4fp8.2} parent=1 // loop_body
      %s25 = ssub.s32 %s20, 1
      %s26 = ssub.s32 %s20, 2
      %s36 = sadd.s32 1, %s29
      %p37 = scmp.ge.s32.totalorder %s36, 2
      %s38 = scalar_select %p37, 0, %s36
      %s39 = sadd.s32 1, %s28
      %s40 = scalar_select %p37, %s39, %s28
      %p41 = scmp.ge.s32.totalorder %s40, 8
      %s42 = scalar_select %p41, 0, %s40
      %s43 = sadd.s32 1, %s27
      %s44 = scalar_select %p41, %s43, %s27
      %p45 = scmp.ge.s32.totalorder %s44, 2
      %s46 = scalar_select %p45, 0, %s44
      %s47 = ssub.s32 %s27, %s46
      %s48 = ssub.s32 %s29, %s38
      %s49 = sor.u32 %s47, %s48
      %p50 = scmp.eq.s32.totalorder %s49, 0
      %s52 = sadd.s32 %s51, 1
      %s53 = scalar_select %p50, %s51, %s52
      %p56 = pneg %p50
      %p57 = scmp.eq.s32.totalorder %s20, 31
      %p58 = por %p56, %p57
      %p59 = scmp.ne.s32.totalorder %s51, %s54
      %p60 = scmp.eq.s32.totalorder %s20, 0
      %p61 = por %p59, %p60
      %p62 = scmp.ne.s32.totalorder %s51, %s54
      %p63 = scmp.eq.s32.totalorder %s25, 31
      %p64 = por %p62, %p63
      %p65 = scmp.ne.s32.totalorder %s54, %s55
      %p66 = scmp.eq.s32.totalorder %s25, 0
      %p67 = por %p65, %p66
      %p68 = scmp.ne.s32.totalorder %s54, %s55
      %p69 = scmp.eq.s32.totalorder %s26, 31
      %p70 = por %p68, %p69
      %p72 = scmp.ne.s32.totalorder %s55, %s71
      %p73 = scmp.eq.s32.totalorder %s26, 0
      %p74 = por %p72, %p73
      %s75 = ssub.s32 %s27, %s46
      %p76 = scmp.eq.s32.totalorder %s75, 0
      %s78 = sadd.s32 %s77, 1
      %s79 = scalar_select %p76, %s77, %s78
      %p82 = pneg %p76
      %p83 = scmp.eq.s32.totalorder %s20, 31
      %p84 = por %p82, %p83
      %p85 = scmp.ne.s32.totalorder %s77, %s80
      %p86 = scmp.eq.s32.totalorder %s20, 0
      %p87 = por %p85, %p86
      %p88 = scmp.ne.s32.totalorder %s77, %s80
      %p89 = scmp.eq.s32.totalorder %s25, 31
      %p90 = por %p88, %p89
      %p91 = scmp.ne.s32.totalorder %s80, %s81
      %p92 = scmp.eq.s32.totalorder %s25, 0
      %p93 = por %p91, %p92
      %p94 = scmp.ne.s32.totalorder %s80, %s81
      %p95 = scmp.eq.s32.totalorder %s26, 31
      %p96 = por %p94, %p95
      %p98 = scmp.ne.s32.totalorder %s81, %s97
      %p99 = scmp.eq.s32.totalorder %s26, 0
      %p100 = por %p98, %p99
      %s101 = ssub.s32 %s29, %s38
      %s102 = ssub.s32 %s28, %s42
      %s103 = sor.u32 %s101, %s102
      %p104 = scmp.eq.s32.totalorder %s103, 0
      %s106 = sadd.s32 %s105, 1
      %s107 = scalar_select %p104, %s105, %s106
      %p110 = pneg %p104
      %p111 = scmp.eq.s32.totalorder %s20, 31
      %p112 = por %p110, %p111
      %p113 = scmp.ne.s32.totalorder %s105, %s108
      %p114 = scmp.eq.s32.totalorder %s20, 0
      %p115 = por %p113, %p114
      %p116 = scmp.ne.s32.totalorder %s105, %s108
      %p117 = scmp.eq.s32.totalorder %s25, 31
      %p118 = por %p116, %p117
      %p119 = scmp.ne.s32.totalorder %s108, %s109
      %p120 = scmp.eq.s32.totalorder %s25, 0
      %p121 = por %p119, %p120
      %p122 = scmp.ne.s32.totalorder %s108, %s109
      %p123 = scmp.eq.s32.totalorder %s26, 31
      %p124 = por %p122, %p123
      %p126 = scmp.ne.s32.totalorder %s109, %s125
      %p127 = scmp.eq.s32.totalorder %s26, 0
      %p128 = por %p126, %p127
      %s129 = ssub.s32 %s29, %s38
      %s130 = ssub.s32 %s28, %s42
      %s131 = sor.u32 %s129, %s130
      %p132 = scmp.eq.s32.totalorder %s131, 0
      %s134 = sadd.s32 %s133, 1
      %s135 = scalar_select %p132, %s133, %s134
      %p138 = pneg %p132
      %p139 = scmp.eq.s32.totalorder %s20, 31
      %p140 = por %p138, %p139
      %p141 = scmp.ne.s32.totalorder %s133, %s136
      %p142 = scmp.eq.s32.totalorder %s20, 0
      %p143 = por %p141, %p142
      %p144 = scmp.ne.s32.totalorder %s133, %s136
      %p145 = scmp.eq.s32.totalorder %s25, 31
      %p146 = por %p144, %p145
      %p147 = scmp.ne.s32.totalorder %s136, %s137
      %p148 = scmp.eq.s32.totalorder %s25, 0
      %p149 = por %p147, %p148
      %p150 = scmp.ne.s32.totalorder %s136, %s137
      %p151 = scmp.eq.s32.totalorder %s26, 31
      %p152 = por %p150, %p151
      %p154 = scmp.ne.s32.totalorder %s137, %s153
      %p155 = scmp.eq.s32.totalorder %s26, 0
      %p156 = por %p154, %p155
      %s157 = ssub.s32 %s29, %s38
      %s158 = ssub.s32 %s28, %s42
      %s159 = sor.u32 %s157, %s158
      %p160 = scmp.eq.s32.totalorder %s159, 0
      %s162 = sadd.s32 %s161, 1
      %s163 = scalar_select %p160, %s161, %s162
      %p166 = pneg %p160
      %p167 = scmp.eq.s32.totalorder %s20, 31
      %p168 = por %p166, %p167
      %p169 = scmp.ne.s32.totalorder %s161, %s164
      %p170 = scmp.eq.s32.totalorder %s20, 0
      %p171 = por %p169, %p170
      %p172 = scmp.ne.s32.totalorder %s161, %s164
      %p173 = scmp.eq.s32.totalorder %s25, 31
      %p174 = por %p172, %p173
      %p175 = scmp.ne.s32.totalorder %s164, %s165
      %p176 = scmp.eq.s32.totalorder %s25, 0
      %p177 = por %p175, %p176
      %p178 = scmp.ne.s32.totalorder %s164, %s165
      %p179 = scmp.eq.s32.totalorder %s26, 31
      %p180 = por %p178, %p179
      %p182 = scmp.ne.s32.totalorder %s165, %s181
      %p183 = scmp.eq.s32.totalorder %s26, 0
      %p184 = por %p182, %p183
      %s185 = ssub.s32 %s29, %s38
      %s186 = ssub.s32 %s28, %s42
      %s187 = sor.u32 %s185, %s186
      %p188 = scmp.eq.s32.totalorder %s187, 0
      %s190 = sadd.s32 %s189, 1
      %s191 = scalar_select %p188, %s189, %s190
      %p194 = pneg %p188
      %p195 = scmp.eq.s32.totalorder %s20, 31
      %p196 = por %p194, %p195
      %p197 = scmp.ne.s32.totalorder %s189, %s192
      %p198 = scmp.eq.s32.totalorder %s20, 0
      %p199 = por %p197, %p198
      %p200 = scmp.ne.s32.totalorder %s189, %s192
      %p201 = scmp.eq.s32.totalorder %s25, 31
      %p202 = por %p200, %p201
      %p203 = scmp.ne.s32.totalorder %s192, %s193
      %p204 = scmp.eq.s32.totalorder %s25, 0
      %p205 = por %p203, %p204
      %p206 = scmp.ne.s32.totalorder %s192, %s193
      %p207 = scmp.eq.s32.totalorder %s26, 31
      %p208 = por %p206, %p207
      %p210 = scmp.ne.s32.totalorder %s193, %s209
      %p211 = scmp.eq.s32.totalorder %s26, 0
      %p212 = por %p210, %p211
      %s213 = ssub.s32 %s27, %s46
      %s214 = ssub.s32 %s28, %s42
      %s215 = sor.u32 %s213, %s214
      %p216 = scmp.eq.s32.totalorder %s215, 0
      %s218 = sadd.s32 %s217, 1
      %s219 = scalar_select %p216, %s217, %s218
      %p222 = pneg %p216
      %p223 = scmp.eq.s32.totalorder %s20, 31
      %p224 = por %p222, %p223
      %p225 = scmp.ne.s32.totalorder %s217, %s220
      %p226 = scmp.eq.s32.totalorder %s20, 0
      %p227 = por %p225, %p226
      %p228 = scmp.ne.s32.totalorder %s217, %s220
      %p229 = scmp.eq.s32.totalorder %s25, 31
      %p230 = por %p228, %p229
      %p231 = scmp.ne.s32.totalorder %s220, %s221
      %p232 = scmp.eq.s32.totalorder %s25, 0
      %p233 = por %p231, %p232
      %p234 = scmp.ne.s32.totalorder %s220, %s221
      %p235 = scmp.eq.s32.totalorder %s26, 31
      %p236 = por %p234, %p235
      %p238 = scmp.ne.s32.totalorder %s221, %s237
      %p239 = scmp.eq.s32.totalorder %s26, 0
      %p240 = por %p238, %p239
      %s241 = ssub.s32 %s28, %s42
      %s242 = ssub.s32 %s27, %s46
      %s243 = sor.u32 %s241, %s242
      %p244 = scmp.eq.s32.totalorder %s243, 0
      %s246 = sadd.s32 %s245, 1
      %s247 = scalar_select %p244, %s245, %s246
      %p250 = pneg %p244
      %p251 = scmp.eq.s32.totalorder %s20, 31
      %p252 = por %p250, %p251
      %p253 = scmp.ne.s32.totalorder %s245, %s248
      %p254 = scmp.eq.s32.totalorder %s20, 0
      %p255 = por %p253, %p254
      %p256 = scmp.ne.s32.totalorder %s245, %s248
      %p257 = scmp.eq.s32.totalorder %s25, 31
      %p258 = por %p256, %p257
      %p259 = scmp.ne.s32.totalorder %s248, %s249
      %p260 = scmp.eq.s32.totalorder %s25, 0
      %p261 = por %p259, %p260
      %p262 = scmp.ne.s32.totalorder %s248, %s249
      %p263 = scmp.eq.s32.totalorder %s26, 31
      %p264 = por %p262, %p263
      %p266 = scmp.ne.s32.totalorder %s249, %s265
      %p267 = scmp.eq.s32.totalorder %s26, 0
      %p268 = por %p266, %p267
      %p269 = scmp.le.s32.totalorder 1, %s20
      %p270 = scmp.lt.s32.totalorder %s20, 33
      %p271 = pnand %p269, %p270
      %p272 = pneg %p271
      // Predicated region
      $region9: #{fused_llama_mlp_i4fp8.2} parent=5 // pred_check
        _
      $region10: #{fused_llama_mlp_i4fp8.2} parent=5 // pred_check_branch
        %274 = sbr.rel (%p271) target = $region12
      $region11: #{fused_llama_mlp_i4fp8.2} parent=5 // pred_region
        %s275 = ssub.s32 %s20, 1
      $region12: #{fused_llama_mlp_i4fp8.2} parent=5 // pred_fallthru
        _
      %p276 = scmp.lt.s32.totalorder %s20, 32
      // Predicated region
      $region13: #{fused_llama_mlp_i4fp8.2} parent=5 // pred_check
        %p277 = pneg %p276
      $region14: #{fused_llama_mlp_i4fp8.2} parent=5 // pred_check_branch
        %279 = sbr.rel (%p277) target = $region16
      $region15: #{fused_llama_mlp_i4fp8.2} parent=5 // pred_region
        // Predicated region
        $region17: #{fused_llama_mlp_i4fp8.2} parent=15 // pred_check
          %p280 = pneg %p61
        $region18: #{fused_llama_mlp_i4fp8.2} parent=15 // pred_check_branch
          %282 = sbr.rel (%p280) target = $region20
        $region19: #{fused_llama_mlp_i4fp8.2} parent=15 // pred_region
          %s283 = sand.u32 %s51, 1
          %s284 = sand.u32 %s51, 1
          %s285 = smul.addr %s284, 32
          %s286 = scalar_lea.vmem [#allocation4], %s285
          %s287 = smul.u32 2, %s27
          %s288 = smul.u32 4, %s29
          %s289 = smul.addr %s287, 8
          %s290 = sadd.s32 %s288, %s289
          %s291 = smul.addr %s290, 4
          %s292 = scalar_lea.vmem %s0, %s291
          // Predicated region
          $region21: #{fused_llama_mlp_i4fp8.2} parent=19 // pred_check
            _
          $region22: #{fused_llama_mlp_i4fp8.2} parent=19 // pred_check_branch
            %294 = sbr.rel (0) target = $region24
          $region23: #{fused_llama_mlp_i4fp8.2} parent=19 // pred_region
            // Predicated region
            $region25: #{fused_llama_mlp_i4fp8.2} parent=23 // pred_check
              _
            $region26: #{fused_llama_mlp_i4fp8.2} parent=23 // pred_check_branch
              %296 = sbr.rel (0) target = $region28
            $region27: #{fused_llama_mlp_i4fp8.2} parent=23 // pred_region
              loop: start=0, step=1, limit=1
              $region29: #{fused_llama_mlp_i4fp8.2} parent=27 // loop_pre_header
                _
              $region30: #{fused_llama_mlp_i4fp8.2} parent=27 // loop_header
                %s298 = sphi 0, %s302
                %p299 = scmp.ge.s32.totalorder %s298, 1
                %s303 = sphi %s292, %s292
                %s304 = sphi %s286, %s286
              $region31: #{fused_llama_mlp_i4fp8.2} parent=27 // loop_header_branch
                %301 = sbr.rel (%p299) target = $region35
              $region32: #{fused_llama_mlp_i4fp8.2} parent=27 // loop_body
                %v305 = vld [vmem:[%s303] sm:$0xff]
                %306 = vst [vmem:[%s304] sm:$0xff] %v305
                %v307 = vld [vmem:[%s303 + $0x8] sm:$0xff]
                %308 = vst [vmem:[%s304 + $0x8] sm:$0xff] %v307
                %v309 = vld [vmem:[%s303 + $0x20] sm:$0xff]
                %310 = vst [vmem:[%s304 + $0x10] sm:$0xff] %v309
                %v311 = vld [vmem:[%s303 + $0x28] sm:$0xff]
                %312 = vst [vmem:[%s304 + $0x18] sm:$0xff] %v311
              $region33: #{fused_llama_mlp_i4fp8.2} parent=27 // loop_footer
                %s302 = sadd.s32 1, %s298
              $region34: #{fused_llama_mlp_i4fp8.2} parent=27 // loop_footer_branch
                %297 = sbr.rel target = $region30
              $region35: #{fused_llama_mlp_i4fp8.2} parent=27 // loop_exit
                _
            $region28: #{fused_llama_mlp_i4fp8.2} parent=23 // pred_fallthru
              _
            // Predicated region
            $region36: #{fused_llama_mlp_i4fp8.2} parent=23 // pred_check
              _
            $region37: #{fused_llama_mlp_i4fp8.2} parent=23 // pred_check_branch
              %314 = sbr.rel target = $region39
            $region38: #{fused_llama_mlp_i4fp8.2} parent=23 // pred_region
              _
            $region39: #{fused_llama_mlp_i4fp8.2} parent=23 // pred_fallthru
              _
          $region24: #{fused_llama_mlp_i4fp8.2} parent=19 // pred_fallthru
            _
          %315 = vnop
        $region20: #{fused_llama_mlp_i4fp8.2} parent=15 // pred_fallthru
          _
        // Predicated region
        $region40: #{fused_llama_mlp_i4fp8.2} parent=15 // pred_check
          %p316 = pneg %p87
        $region41: #{fused_llama_mlp_i4fp8.2} parent=15 // pred_check_branch
          %318 = sbr.rel (%p316) target = $region43
        $region42: #{fused_llama_mlp_i4fp8.2} parent=15 // pred_region
          %s319 = smul.u32 2, %s27
          %p320 = scmp.lt.s32.totalorder %s319, 3
          %s321 = scalar_select %p320, %s319, 3
          %s322 = smul.addr %s321, 8
          %s323 = scalar_lea.vmem %s1, %s322
          %s324 = smul.u32 2, %s27
        $region43: #{fused_llama_mlp_i4fp8.2} parent=15 // pred_fallthru
          _
        // Predicated region
        $region44: #{fused_llama_mlp_i4fp8.2} parent=15 // pred_check
          %p325 = pneg %p115
        $region45: #{fused_llama_mlp_i4fp8.2} parent=15 // pred_check_branch
          %327 = sbr.rel (%p325) target = $region47
        $region46: #{fused_llama_mlp_i4fp8.2} parent=15 // pred_region
          %s328 = sand.u32 %s105, 1
          %s329 = scalar_lea.sflag [#allocation6], %s328
          %s330 = sand.u32 %s105, 1
          %s331 = smul.addr %s330, 128
          %s332 = scalar_lea.vmem [#allocation5], %s331
          %s333 = smul.u32 8, %s29
          %s334 = smul.u32 2, %s28
          %s336 = ssub.s32 2048, 2048
          %337 = vsyncadd %s329, %s336
          %s338 = smul.addr %s333, 16
          %s339 = sadd.s32 %s334, %s338
          %s340 = smul.addr %s339, 128
          %s341 = scalar_lea.hbm %s2, %s340
          %s342 = sshll.u32 %s332, 4
          %s343 = int_to_ptr.vmem [resolvable:$true] %s342
          %348 = dma.hbm_to_vmem [thread:$0]  %s341, 2048, %s343, %s329, 2048, 256, 16
        $region47: #{fused_llama_mlp_i4fp8.2} parent=15 // pred_fallthru
          _
        // Predicated region
        $region48: #{fused_llama_mlp_i4fp8.2} parent=15 // pred_check
          %p349 = pneg %p143
        $region49: #{fused_llama_mlp_i4fp8.2} parent=15 // pred_check_branch
          %351 = sbr.rel (%p349) target = $region51
        $region50: #{fused_llama_mlp_i4fp8.2} parent=15 // pred_region
          %s352 = smul.u32 2, %s28
          %p353 = scmp.lt.s32.totalorder %s29, 1
          %s354 = scalar_select %p353, %s29, 1
          %p355 = scmp.lt.s32.totalorder %s352, 15
          %s356 = scalar_select %p355, %s352, 15
          %s357 = smul.addr %s354, 16
          %s358 = sadd.s32 %s356, %s357
          %s359 = smul.addr %s358, 8
          %s360 = scalar_lea.vmem %s3, %s359
          %s361 = smul.u32 2, %s28
        $region51: #{fused_llama_mlp_i4fp8.2} parent=15 // pred_fallthru
          _
        // Predicated region
        $region52: #{fused_llama_mlp_i4fp8.2} parent=15 // pred_check
          %p362 = pneg %p171
        $region53: #{fused_llama_mlp_i4fp8.2} parent=15 // pred_check_branch
          %364 = sbr.rel (%p362) target = $region55
        $region54: #{fused_llama_mlp_i4fp8.2} parent=15 // pred_region
          %s365 = sand.u32 %s161, 1
          %s366 = scalar_lea.sflag [#allocation8], %s365
          %s367 = sand.u32 %s161, 1
          %s368 = smul.addr %s367, 128
          %s369 = scalar_lea.vmem [#allocation7], %s368
          %s370 = smul.u32 8, %s29
          %s371 = smul.u32 2, %s28
          %s373 = ssub.s32 2048, 2048
          %374 = vsyncadd %s366, %s373
          %s375 = smul.addr %s370, 16
          %s376 = sadd.s32 %s371, %s375
          %s377 = smul.addr %s376, 128
          %s378 = scalar_lea.hbm %s4, %s377
          %s379 = sshll.u32 %s369, 4
          %s380 = int_to_ptr.vmem [resolvable:$true] %s379
          %385 = dma.hbm_to_vmem [thread:$0]  %s378, 2048, %s380, %s366, 2048, 256, 16
        $region55: #{fused_llama_mlp_i4fp8.2} parent=15 // pred_fallthru
          _
        // Predicated region
        $region56: #{fused_llama_mlp_i4fp8.2} parent=15 // pred_check
          %p386 = pneg %p199
        $region57: #{fused_llama_mlp_i4fp8.2} parent=15 // pred_check_branch
          %388 = sbr.rel (%p386) target = $region59
        $region58: #{fused_llama_mlp_i4fp8.2} parent=15 // pred_region
          %s389 = smul.u32 2, %s28
          %p390 = scmp.lt.s32.totalorder %s29, 1
          %s391 = scalar_select %p390, %s29, 1
          %p392 = scmp.lt.s32.totalorder %s389, 15
          %s393 = scalar_select %p392, %s389, 15
          %s394 = smul.addr %s391, 16
          %s395 = sadd.s32 %s393, %s394
          %s396 = smul.addr %s395, 8
          %s397 = scalar_lea.vmem %s5, %s396
          %s398 = smul.u32 2, %s28
        $region59: #{fused_llama_mlp_i4fp8.2} parent=15 // pred_fallthru
          _
      $region16: #{fused_llama_mlp_i4fp8.2} parent=5 // pred_fallthru
        _
      %p399 = scmp.le.s32.totalorder 1, %s20
      %p400 = scmp.lt.s32.totalorder %s20, 33
      %p401 = pnand %p399, %p400
      %p402 = pneg %p401
      // Predicated region
      $region60: #{fused_llama_mlp_i4fp8.2} parent=5 // pred_check
        _
      $region61: #{fused_llama_mlp_i4fp8.2} parent=5 // pred_check_branch
        %404 = sbr.rel (%p401) target = $region63
      $region62: #{fused_llama_mlp_i4fp8.2} parent=5 // pred_region
        %s405 = ssub.s32 %s20, 1
        %s406 = sand.u32 %s54, 1
        %s407 = sand.u32 %s54, 1
        %s408 = smul.addr %s407, 32
        %s409 = scalar_lea.vmem [#allocation4], %s408
        // Predicated region
        $region64: #{fused_llama_mlp_i4fp8.2} parent=62 // pred_check
          %p410 = pneg %p67
        $region65: #{fused_llama_mlp_i4fp8.2} parent=62 // pred_check_branch
          %412 = sbr.rel (%p410) target = $region67
        $region66: #{fused_llama_mlp_i4fp8.2} parent=62 // pred_region
          _
        $region67: #{fused_llama_mlp_i4fp8.2} parent=62 // pred_fallthru
          _
        %s413 = sand.u32 %s108, 1
        %s414 = scalar_lea.sflag [#allocation6], %s413
        %s415 = sand.u32 %s108, 1
        %s416 = smul.addr %s415, 128
        %s417 = scalar_lea.vmem [#allocation5], %s416
        // Predicated region
        $region68: #{fused_llama_mlp_i4fp8.2} parent=62 // pred_check
          %p418 = pneg %p121
        $region69: #{fused_llama_mlp_i4fp8.2} parent=62 // pred_check_branch
          %420 = sbr.rel (%p418) target = $region71
        $region70: #{fused_llama_mlp_i4fp8.2} parent=62 // pred_region
          %421 = dma.done %s414, 2048
        $region71: #{fused_llama_mlp_i4fp8.2} parent=62 // pred_fallthru
          _
        %s422 = sand.u32 %s164, 1
        %s423 = scalar_lea.sflag [#allocation8], %s422
        %s424 = sand.u32 %s164, 1
        %s425 = smul.addr %s424, 128
        %s426 = scalar_lea.vmem [#allocation7], %s425
        // Predicated region
        $region72: #{fused_llama_mlp_i4fp8.2} parent=62 // pred_check
          %p427 = pneg %p177
        $region73: #{fused_llama_mlp_i4fp8.2} parent=62 // pred_check_branch
          %429 = sbr.rel (%p427) target = $region75
        $region74: #{fused_llama_mlp_i4fp8.2} parent=62 // pred_region
          %430 = dma.done %s423, 2048
        $region75: #{fused_llama_mlp_i4fp8.2} parent=62 // pred_fallthru
          _
        %s431 = sand.u32 %s54, 1
        %s432 = sand.u32 %s54, 1
        %s433 = smul.addr %s432, 32
        %s434 = scalar_lea.vmem [#allocation4], %s433
        %p435 = pneg %p67
        %p436 = pneg %p64
        %s437 = smul.u32 2, %s30
        %p438 = scmp.lt.s32.totalorder %s437, 3
        %s439 = scalar_select %p438, %s437, 3
        %s440 = smul.addr %s439, 8
        %s441 = scalar_lea.vmem %s1, %s440
        %p442 = pneg %p93
        %p443 = pneg %p90
        %s444 = sand.u32 %s108, 1
        %s445 = scalar_lea.sflag [#allocation6], %s444
        %s446 = sand.u32 %s108, 1
        %s447 = smul.addr %s446, 128
        %s448 = scalar_lea.vmem [#allocation5], %s447
        %p449 = pneg %p121
        %p450 = pneg %p118
        %s451 = smul.u32 2, %s31
        %p452 = scmp.lt.s32.totalorder %s32, 1
        %s453 = scalar_select %p452, %s32, 1
        %p454 = scmp.lt.s32.totalorder %s451, 15
        %s455 = scalar_select %p454, %s451, 15
        %s456 = smul.addr %s453, 16
        %s457 = sadd.s32 %s455, %s456
        %s458 = smul.addr %s457, 8
        %s459 = scalar_lea.vmem %s3, %s458
        %p460 = pneg %p149
        %p461 = pneg %p146
        %s462 = sand.u32 %s164, 1
        %s463 = scalar_lea.sflag [#allocation8], %s462
        %s464 = sand.u32 %s164, 1
        %s465 = smul.addr %s464, 128
        %s466 = scalar_lea.vmem [#allocation7], %s465
        %p467 = pneg %p177
        %p468 = pneg %p174
        %s469 = smul.u32 2, %s31
        %p470 = scmp.lt.s32.totalorder %s32, 1
        %s471 = scalar_select %p470, %s32, 1
        %p472 = scmp.lt.s32.totalorder %s469, 15
        %s473 = scalar_select %p472, %s469, 15
        %s474 = smul.addr %s471, 16
        %s475 = sadd.s32 %s473, %s474
        %s476 = smul.addr %s475, 8
        %s477 = scalar_lea.vmem %s5, %s476
        %p478 = pneg %p205
        %p479 = pneg %p202
        %p480 = pneg %p233
        %p481 = pneg %p230
        %s482 = sand.u32 %s220, 1
        %s483 = sand.u32 %s220, 1
        %s484 = smul.addr %s483, 16
        %s485 = scalar_lea.vmem [#allocation9], %s484
        %p486 = pneg %p261
        %p487 = pneg %p258
        %s488 = smul.u32 2, %s30
        %p489 = scmp.lt.s32.totalorder %s31, 7
        %s490 = scalar_select %p489, %s31, 7
        %p491 = scmp.lt.s32.totalorder %s488, 3
        %s492 = scalar_select %p491, %s488, 3
        %s493 = smul.addr %s490, 4
        %s494 = sadd.s32 %s492, %s493
        %s495 = smul.addr %s494, 8
        %s496 = scalar_lea.vmem %s7, %s495
        %s497 = smul.u32 2, %s30
        %s498 = smul.u32 4, %s32
        %s499 = smul.u32 2, %s30
        %p500 = scmp.lt.s32.totalorder %s499, 3
        %s501 = scalar_select %p500, %s499, 3
        %s502 = smul.addr %s501, 8
        %s503 = scalar_lea.vmem %s1, %s502
        %s504 = smul.u32 2, %s30
        %s505 = smul.u32 8, %s32
        %s506 = smul.u32 2, %s31
        %s507 = smul.u32 2, %s31
        %p508 = scmp.lt.s32.totalorder %s32, 1
        %s509 = scalar_select %p508, %s32, 1
        %p510 = scmp.lt.s32.totalorder %s507, 15
        %s511 = scalar_select %p510, %s507, 15
        %s512 = smul.addr %s509, 16
        %s513 = sadd.s32 %s511, %s512
        %s514 = smul.addr %s513, 8
        %s515 = scalar_lea.vmem %s3, %s514
        %s516 = smul.u32 2, %s31
        %s517 = smul.u32 8, %s32
        %s518 = smul.u32 2, %s31
        %s519 = smul.u32 2, %s31
        %p520 = scmp.lt.s32.totalorder %s32, 1
        %s521 = scalar_select %p520, %s32, 1
        %p522 = scmp.lt.s32.totalorder %s519, 15
        %s523 = scalar_select %p522, %s519, 15
        %s524 = smul.addr %s521, 16
        %s525 = sadd.s32 %s523, %s524
        %s526 = smul.addr %s525, 8
        %s527 = scalar_lea.vmem %s5, %s526
        %s528 = smul.u32 2, %s31
        %s529 = smul.u32 2, %s30
        %s530 = smul.u32 2, %s31
        %s531 = smul.u32 2, %s30
        %p532 = scmp.lt.s32.totalorder %s31, 7
        %s533 = scalar_select %p532, %s31, 7
        %p534 = scmp.lt.s32.totalorder %s531, 3
        %s535 = scalar_select %p534, %s531, 3
        %s536 = smul.addr %s533, 4
        %s537 = sadd.s32 %s535, %s536
        %s538 = smul.addr %s537, 8
        %s539 = scalar_lea.vmem %s7, %s538
        %s540 = smul.u32 2, %s30
        %p541 = scmp.eq.s32.totalorder %s32, 0
        // Predicated region
        $region76: #{fused_llama_mlp_i4fp8.2} parent=62 // pred_check
          %p542 = pneg %p541
        $region77: #{fused_llama_mlp_i4fp8.2} parent=62 // pred_check_branch
          %544 = sbr.rel (%p542) target = $region79
        $region78: #{fused_llama_mlp_i4fp8.2} parent=62 // pred_region
          %545 = vst [vmem:[#allocation2] sm:$0xff] 0.0
          %546 = vst [vmem:[#allocation2 + $0x8] sm:$0xff] 0.0
          %547 = vst [vmem:[#allocation2 + $0x10] sm:$0xff] 0.0
          %548 = vst [vmem:[#allocation2 + $0x18] sm:$0xff] 0.0
          %549 = vst [vmem:[#allocation3] sm:$0xff] 0.0
          %550 = vst [vmem:[#allocation3 + $0x8] sm:$0xff] 0.0
          %551 = vst [vmem:[#allocation3 + $0x10] sm:$0xff] 0.0
          %552 = vst [vmem:[#allocation3 + $0x18] sm:$0xff] 0.0
        $region79: #{fused_llama_mlp_i4fp8.2} parent=62 // pred_fallthru
          _
        %v553 = vld [vmem:[%s409] sm:$0xff]
        %v554 = vld [vmem:[%s409 + $0x8] sm:$0xff]
        %v555 = vld [vmem:[%s409 + $0x10] sm:$0xff]
        %v556 = vld [vmem:[%s409 + $0x18] sm:$0xff]
        %v557 = vld [vmem:[%s417] sm:$0xff]
        %v558 = vld [vmem:[%s417 + $0x8] sm:$0xff]
        %v559 = vld [vmem:[%s417 + $0x10] sm:$0xff]
        %v560 = vld [vmem:[%s417 + $0x18] sm:$0xff]
        %v561 = vld [vmem:[%s417 + $0x20] sm:$0xff]
        %v562 = vld [vmem:[%s417 + $0x28] sm:$0xff]
        %v563 = vld [vmem:[%s417 + $0x30] sm:$0xff]
        %v564 = vld [vmem:[%s417 + $0x38] sm:$0xff]
        %v565 = vld [vmem:[%s417 + $0x40] sm:$0xff]
        %v566 = vld [vmem:[%s417 + $0x48] sm:$0xff]
        %v567 = vld [vmem:[%s417 + $0x50] sm:$0xff]
        %v568 = vld [vmem:[%s417 + $0x58] sm:$0xff]
        %v569 = vld [vmem:[%s417 + $0x60] sm:$0xff]
        %v570 = vld [vmem:[%s417 + $0x68] sm:$0xff]
        %v571 = vld [vmem:[%s417 + $0x70] sm:$0xff]
        %v572 = vld [vmem:[%s417 + $0x78] sm:$0xff]
        %v573 = vld [vmem:[%s515] sm:$0xff]
        %v574 = vld [vmem:[%s515 + $0x8] sm:$0xff]
        %v575 = vand.u32 %v557, 15
        %v576 = vand.u32 %v558, 15
        %v577 = vand.u32 %v559, 15
        %v578 = vand.u32 %v560, 15
        %v579 = vand.u32 %v561, 15
        %v580 = vand.u32 %v562, 15
        %v581 = vand.u32 %v563, 15
        %v582 = vand.u32 %v564, 15
        %v583 = vand.u32 %v565, 15
        %v584 = vand.u32 %v566, 15
        %v585 = vand.u32 %v567, 15
        %v586 = vand.u32 %v568, 15
        %v587 = vand.u32 %v569, 15
        %v588 = vand.u32 %v570, 15
        %v589 = vand.u32 %v571, 15
        %v590 = vand.u32 %v572, 15
        %v591 = vxor.u32 %v575, 8
        %v592 = vxor.u32 %v576, 8
        %v593 = vxor.u32 %v577, 8
        %v594 = vxor.u32 %v578, 8
        %v595 = vxor.u32 %v579, 8
        %v596 = vxor.u32 %v580, 8
        %v597 = vxor.u32 %v581, 8
        %v598 = vxor.u32 %v582, 8
        %v599 = vxor.u32 %v583, 8
        %v600 = vxor.u32 %v584, 8
        %v601 = vxor.u32 %v585, 8
        %v602 = vxor.u32 %v586, 8
        %v603 = vxor.u32 %v587, 8
        %v604 = vxor.u32 %v588, 8
        %v605 = vxor.u32 %v589, 8
        %v606 = vxor.u32 %v590, 8
        %v607 = vsub.s32 %v591, 8
        %v608 = vsub.s32 %v592, 8
        %v609 = vsub.s32 %v593, 8
        %v610 = vsub.s32 %v594, 8
        %v611 = vsub.s32 %v595, 8
        %v612 = vsub.s32 %v596, 8
        %v613 = vsub.s32 %v597, 8
        %v614 = vsub.s32 %v598, 8
        %v615 = vsub.s32 %v599, 8
        %v616 = vsub.s32 %v600, 8
        %v617 = vsub.s32 %v601, 8
        %v618 = vsub.s32 %v602, 8
        %v619 = vsub.s32 %v603, 8
        %v620 = vsub.s32 %v604, 8
        %v621 = vsub.s32 %v605, 8
        %v622 = vsub.s32 %v606, 8
        %v623 = vcvt.s32.f32 %v607
        %v624 = vcvt.s32.f32 %v608
        %v625 = vcvt.s32.f32 %v609
        %v626 = vcvt.s32.f32 %v610
        %v627 = vcvt.s32.f32 %v611
        %v628 = vcvt.s32.f32 %v612
        %v629 = vcvt.s32.f32 %v613
        %v630 = vcvt.s32.f32 %v614
        %v631 = vcvt.s32.f32 %v615
        %v632 = vcvt.s32.f32 %v616
        %v633 = vcvt.s32.f32 %v617
        %v634 = vcvt.s32.f32 %v618
        %v635 = vcvt.s32.f32 %v619
        %v636 = vcvt.s32.f32 %v620
        %v637 = vcvt.s32.f32 %v621
        %v638 = vcvt.s32.f32 %v622
        %v639 = vlaneseq
        %v640 = vshrl.u32 %v639, 7
        %v641 = vsub.s32 0, %v640
        %v642 = vrot.slane %v573, %v641
        %v643 = vlaneseq
        %v644 = vshrl.u32 %v643, 7
        %v645 = vsub.s32 0, %v644
        %v646 = vrot.slane %v574, %v645
        %v647 = vmul.f32 %v623, %v642
        %v648 = vmul.f32 %v624, %v646
        %v649 = vmul.f32 %v625, %v642
        %v650 = vmul.f32 %v626, %v646
        %v651 = vmul.f32 %v627, %v642
        %v652 = vmul.f32 %v628, %v646
        %v653 = vmul.f32 %v629, %v642
        %v654 = vmul.f32 %v630, %v646
        %v655 = vmul.f32 %v631, %v642
        %v656 = vmul.f32 %v632, %v646
        %v657 = vmul.f32 %v633, %v642
        %v658 = vmul.f32 %v634, %v646
        %v659 = vmul.f32 %v635, %v642
        %v660 = vmul.f32 %v636, %v646
        %v661 = vmul.f32 %v637, %v642
        %v662 = vmul.f32 %v638, %v646
        %v663 = vpack.c.bf16 %v649, %v647
        %v664 = vpack.c.bf16 %v650, %v648
        %v665 = vpack.c.bf16 %v653, %v651
        %v666 = vpack.c.bf16 %v654, %v652
        %v667 = vpack.c.bf16 %v657, %v655
        %v668 = vpack.c.bf16 %v658, %v656
        %v669 = vpack.c.bf16 %v661, %v659
        %v670 = vpack.c.bf16 %v662, %v660
        %v671 = vshrl.u32 %v557, 4
        %v672 = vshrl.u32 %v558, 4
        %v673 = vshrl.u32 %v559, 4
        %v674 = vshrl.u32 %v560, 4
        %v675 = vshrl.u32 %v561, 4
        %v676 = vshrl.u32 %v562, 4
        %v677 = vshrl.u32 %v563, 4
        %v678 = vshrl.u32 %v564, 4
        %v679 = vshrl.u32 %v565, 4
        %v680 = vshrl.u32 %v566, 4
        %v681 = vshrl.u32 %v567, 4
        %v682 = vshrl.u32 %v568, 4
        %v683 = vshrl.u32 %v569, 4
        %v684 = vshrl.u32 %v570, 4
        %v685 = vshrl.u32 %v571, 4
        %v686 = vshrl.u32 %v572, 4
        %v687 = vand.u32 %v671, 15
        %v688 = vand.u32 %v672, 15
        %v689 = vand.u32 %v673, 15
        %v690 = vand.u32 %v674, 15
        %v691 = vand.u32 %v675, 15
        %v692 = vand.u32 %v676, 15
        %v693 = vand.u32 %v677, 15
        %v694 = vand.u32 %v678, 15
        %v695 = vand.u32 %v679, 15
        %v696 = vand.u32 %v680, 15
        %v697 = vand.u32 %v681, 15
        %v698 = vand.u32 %v682, 15
        %v699 = vand.u32 %v683, 15
        %v700 = vand.u32 %v684, 15
        %v701 = vand.u32 %v685, 15
        %v702 = vand.u32 %v686, 15
        %v703 = vxor.u32 %v687, 8
        %v704 = vxor.u32 %v688, 8
        %v705 = vxor.u32 %v689, 8
        %v706 = vxor.u32 %v690, 8
        %v707 = vxor.u32 %v691, 8
        %v708 = vxor.u32 %v692, 8
        %v709 = vxor.u32 %v693, 8
        %v710 = vxor.u32 %v694, 8
        %v711 = vxor.u32 %v695, 8
        %v712 = vxor.u32 %v696, 8
        %v713 = vxor.u32 %v697, 8
        %v714 = vxor.u32 %v698, 8
        %v715 = vxor.u32 %v699, 8
        %v716 = vxor.u32 %v700, 8
        %v717 = vxor.u32 %v701, 8
        %v718 = vxor.u32 %v702, 8
        %v719 = vsub.s32 %v703, 8
        %v720 = vsub.s32 %v704, 8
        %v721 = vsub.s32 %v705, 8
        %v722 = vsub.s32 %v706, 8
        %v723 = vsub.s32 %v707, 8
        %v724 = vsub.s32 %v708, 8
        %v725 = vsub.s32 %v709, 8
        %v726 = vsub.s32 %v710, 8
        %v727 = vsub.s32 %v711, 8
        %v728 = vsub.s32 %v712, 8
        %v729 = vsub.s32 %v713, 8
        %v730 = vsub.s32 %v714, 8
        %v731 = vsub.s32 %v715, 8
        %v732 = vsub.s32 %v716, 8
        %v733 = vsub.s32 %v717, 8
        %v734 = vsub.s32 %v718, 8
        %v735 = vcvt.s32.f32 %v719
        %v736 = vcvt.s32.f32 %v720
        %v737 = vcvt.s32.f32 %v721
        %v738 = vcvt.s32.f32 %v722
        %v739 = vcvt.s32.f32 %v723
        %v740 = vcvt.s32.f32 %v724
        %v741 = vcvt.s32.f32 %v725
        %v742 = vcvt.s32.f32 %v726
        %v743 = vcvt.s32.f32 %v727
        %v744 = vcvt.s32.f32 %v728
        %v745 = vcvt.s32.f32 %v729
        %v746 = vcvt.s32.f32 %v730
        %v747 = vcvt.s32.f32 %v731
        %v748 = vcvt.s32.f32 %v732
        %v749 = vcvt.s32.f32 %v733
        %v750 = vcvt.s32.f32 %v734
        %v751 = vlaneseq
        %v752 = vshrl.u32 %v751, 7
        %v753 = vsub.s32 1, %v752
        %v754 = vrot.slane %v573, %v753
        %v755 = vlaneseq
        %v756 = vshrl.u32 %v755, 7
        %v757 = vsub.s32 1, %v756
        %v758 = vrot.slane %v574, %v757
        %v759 = vmul.f32 %v735, %v754
        %v760 = vmul.f32 %v736, %v758
        %v761 = vmul.f32 %v737, %v754
        %v762 = vmul.f32 %v738, %v758
        %v763 = vmul.f32 %v739, %v754
        %v764 = vmul.f32 %v740, %v758
        %v765 = vmul.f32 %v741, %v754
        %v766 = vmul.f32 %v742, %v758
        %v767 = vmul.f32 %v743, %v754
        %v768 = vmul.f32 %v744, %v758
        %v769 = vmul.f32 %v745, %v754
        %v770 = vmul.f32 %v746, %v758
        %v771 = vmul.f32 %v747, %v754
        %v772 = vmul.f32 %v748, %v758
        %v773 = vmul.f32 %v749, %v754
        %v774 = vmul.f32 %v750, %v758
        %v775 = vpack.c.bf16 %v761, %v759
        %v776 = vpack.c.bf16 %v762, %v760
        %v777 = vpack.c.bf16 %v765, %v763
        %v778 = vpack.c.bf16 %v766, %v764
        %v779 = vpack.c.bf16 %v769, %v767
        %v780 = vpack.c.bf16 %v770, %v768
        %v781 = vpack.c.bf16 %v773, %v771
        %v782 = vpack.c.bf16 %v774, %v772
        %v783 = vshrl.u32 %v557, 8
        %v784 = vshrl.u32 %v558, 8
        %v785 = vshrl.u32 %v559, 8
        %v786 = vshrl.u32 %v560, 8
        %v787 = vshrl.u32 %v561, 8
        %v788 = vshrl.u32 %v562, 8
        %v789 = vshrl.u32 %v563, 8
        %v790 = vshrl.u32 %v564, 8
        %v791 = vshrl.u32 %v565, 8
        %v792 = vshrl.u32 %v566, 8
        %v793 = vshrl.u32 %v567, 8
        %v794 = vshrl.u32 %v568, 8
        %v795 = vshrl.u32 %v569, 8
        %v796 = vshrl.u32 %v570, 8
        %v797 = vshrl.u32 %v571, 8
        %v798 = vshrl.u32 %v572, 8
        %v799 = vand.u32 %v783, 15
        %v800 = vand.u32 %v784, 15
        %v801 = vand.u32 %v785, 15
        %v802 = vand.u32 %v786, 15
        %v803 = vand.u32 %v787, 15
        %v804 = vand.u32 %v788, 15
        %v805 = vand.u32 %v789, 15
        %v806 = vand.u32 %v790, 15
        %v807 = vand.u32 %v791, 15
        %v808 = vand.u32 %v792, 15
        %v809 = vand.u32 %v793, 15
        %v810 = vand.u32 %v794, 15
        %v811 = vand.u32 %v795, 15
        %v812 = vand.u32 %v796, 15
        %v813 = vand.u32 %v797, 15
        %v814 = vand.u32 %v798, 15
        %v815 = vxor.u32 %v799, 8
        %v816 = vxor.u32 %v800, 8
        %v817 = vxor.u32 %v801, 8
        %v818 = vxor.u32 %v802, 8
        %v819 = vxor.u32 %v803, 8
        %v820 = vxor.u32 %v804, 8
        %v821 = vxor.u32 %v805, 8
        %v822 = vxor.u32 %v806, 8
        %v823 = vxor.u32 %v807, 8
        %v824 = vxor.u32 %v808, 8
        %v825 = vxor.u32 %v809, 8
        %v826 = vxor.u32 %v810, 8
        %v827 = vxor.u32 %v811, 8
        %v828 = vxor.u32 %v812, 8
        %v829 = vxor.u32 %v813, 8
        %v830 = vxor.u32 %v814, 8
        %v831 = vsub.s32 %v815, 8
        %v832 = vsub.s32 %v816, 8
        %v833 = vsub.s32 %v817, 8
        %v834 = vsub.s32 %v818, 8
        %v835 = vsub.s32 %v819, 8
        %v836 = vsub.s32 %v820, 8
        %v837 = vsub.s32 %v821, 8
        %v838 = vsub.s32 %v822, 8
        %v839 = vsub.s32 %v823, 8
        %v840 = vsub.s32 %v824, 8
        %v841 = vsub.s32 %v825, 8
        %v842 = vsub.s32 %v826, 8
        %v843 = vsub.s32 %v827, 8
        %v844 = vsub.s32 %v828, 8
        %v845 = vsub.s32 %v829, 8
        %v846 = vsub.s32 %v830, 8
        %v847 = vcvt.s32.f32 %v831
        %v848 = vcvt.s32.f32 %v832
        %v849 = vcvt.s32.f32 %v833
        %v850 = vcvt.s32.f32 %v834
        %v851 = vcvt.s32.f32 %v835
        %v852 = vcvt.s32.f32 %v836
        %v853 = vcvt.s32.f32 %v837
        %v854 = vcvt.s32.f32 %v838
        %v855 = vcvt.s32.f32 %v839
        %v856 = vcvt.s32.f32 %v840
        %v857 = vcvt.s32.f32 %v841
        %v858 = vcvt.s32.f32 %v842
        %v859 = vcvt.s32.f32 %v843
        %v860 = vcvt.s32.f32 %v844
        %v861 = vcvt.s32.f32 %v845
        %v862 = vcvt.s32.f32 %v846
        %v863 = vlaneseq
        %v864 = vshrl.u32 %v863, 7
        %v865 = vsub.s32 2, %v864
        %v866 = vrot.slane %v573, %v865
        %v867 = vlaneseq
        %v868 = vshrl.u32 %v867, 7
        %v869 = vsub.s32 2, %v868
        %v870 = vrot.slane %v574, %v869
        %v871 = vmul.f32 %v847, %v866
        %v872 = vmul.f32 %v848, %v870
        %v873 = vmul.f32 %v849, %v866
        %v874 = vmul.f32 %v850, %v870
        %v875 = vmul.f32 %v851, %v866
        %v876 = vmul.f32 %v852, %v870
        %v877 = vmul.f32 %v853, %v866
        %v878 = vmul.f32 %v854, %v870
        %v879 = vmul.f32 %v855, %v866
        %v880 = vmul.f32 %v856, %v870
        %v881 = vmul.f32 %v857, %v866
        %v882 = vmul.f32 %v858, %v870
        %v883 = vmul.f32 %v859, %v866
        %v884 = vmul.f32 %v860, %v870
        %v885 = vmul.f32 %v861, %v866
        %v886 = vmul.f32 %v862, %v870
        %v887 = vpack.c.bf16 %v873, %v871
        %v888 = vpack.c.bf16 %v874, %v872
        %v889 = vpack.c.bf16 %v877, %v875
        %v890 = vpack.c.bf16 %v878, %v876
        %v891 = vpack.c.bf16 %v881, %v879
        %v892 = vpack.c.bf16 %v882, %v880
        %v893 = vpack.c.bf16 %v885, %v883
        %v894 = vpack.c.bf16 %v886, %v884
        %v895 = vshrl.u32 %v557, 12
        %v896 = vshrl.u32 %v558, 12
        %v897 = vshrl.u32 %v559, 12
        %v898 = vshrl.u32 %v560, 12
        %v899 = vshrl.u32 %v561, 12
        %v900 = vshrl.u32 %v562, 12
        %v901 = vshrl.u32 %v563, 12
        %v902 = vshrl.u32 %v564, 12
        %v903 = vshrl.u32 %v565, 12
        %v904 = vshrl.u32 %v566, 12
        %v905 = vshrl.u32 %v567, 12
        %v906 = vshrl.u32 %v568, 12
        %v907 = vshrl.u32 %v569, 12
        %v908 = vshrl.u32 %v570, 12
        %v909 = vshrl.u32 %v571, 12
        %v910 = vshrl.u32 %v572, 12
        %v911 = vand.u32 %v895, 15
        %v912 = vand.u32 %v896, 15
        %v913 = vand.u32 %v897, 15
        %v914 = vand.u32 %v898, 15
        %v915 = vand.u32 %v899, 15
        %v916 = vand.u32 %v900, 15
        %v917 = vand.u32 %v901, 15
        %v918 = vand.u32 %v902, 15
        %v919 = vand.u32 %v903, 15
        %v920 = vand.u32 %v904, 15
        %v921 = vand.u32 %v905, 15
        %v922 = vand.u32 %v906, 15
        %v923 = vand.u32 %v907, 15
        %v924 = vand.u32 %v908, 15
        %v925 = vand.u32 %v909, 15
        %v926 = vand.u32 %v910, 15
        %v927 = vxor.u32 %v911, 8
        %v928 = vxor.u32 %v912, 8
        %v929 = vxor.u32 %v913, 8
        %v930 = vxor.u32 %v914, 8
        %v931 = vxor.u32 %v915, 8
        %v932 = vxor.u32 %v916, 8
        %v933 = vxor.u32 %v917, 8
        %v934 = vxor.u32 %v918, 8
        %v935 = vxor.u32 %v919, 8
        %v936 = vxor.u32 %v920, 8
        %v937 = vxor.u32 %v921, 8
        %v938 = vxor.u32 %v922, 8
        %v939 = vxor.u32 %v923, 8
        %v940 = vxor.u32 %v924, 8
        %v941 = vxor.u32 %v925, 8
        %v942 = vxor.u32 %v926, 8
        %v943 = vsub.s32 %v927, 8
        %v944 = vsub.s32 %v928, 8
        %v945 = vsub.s32 %v929, 8
        %v946 = vsub.s32 %v930, 8
        %v947 = vsub.s32 %v931, 8
        %v948 = vsub.s32 %v932, 8
        %v949 = vsub.s32 %v933, 8
        %v950 = vsub.s32 %v934, 8
        %v951 = vsub.s32 %v935, 8
        %v952 = vsub.s32 %v936, 8
        %v953 = vsub.s32 %v937, 8
        %v954 = vsub.s32 %v938, 8
        %v955 = vsub.s32 %v939, 8
        %v956 = vsub.s32 %v940, 8
        %v957 = vsub.s32 %v941, 8
        %v958 = vsub.s32 %v942, 8
        %v959 = vcvt.s32.f32 %v943
        %v960 = vcvt.s32.f32 %v944
        %v961 = vcvt.s32.f32 %v945
        %v962 = vcvt.s32.f32 %v946
        %v963 = vcvt.s32.f32 %v947
        %v964 = vcvt.s32.f32 %v948
        %v965 = vcvt.s32.f32 %v949
        %v966 = vcvt.s32.f32 %v950
        %v967 = vcvt.s32.f32 %v951
        %v968 = vcvt.s32.f32 %v952
        %v969 = vcvt.s32.f32 %v953
        %v970 = vcvt.s32.f32 %v954
        %v971 = vcvt.s32.f32 %v955
        %v972 = vcvt.s32.f32 %v956
        %v973 = vcvt.s32.f32 %v957
        %v974 = vcvt.s32.f32 %v958
        %v975 = vlaneseq
        %v976 = vshrl.u32 %v975, 7
        %v977 = vsub.s32 3, %v976
        %v978 = vrot.slane %v573, %v977
        %v979 = vlaneseq
        %v980 = vshrl.u32 %v979, 7
        %v981 = vsub.s32 3, %v980
        %v982 = vrot.slane %v574, %v981
        %v983 = vmul.f32 %v959, %v978
        %v984 = vmul.f32 %v960, %v982
        %v985 = vmul.f32 %v961, %v978
        %v986 = vmul.f32 %v962, %v982
        %v987 = vmul.f32 %v963, %v978
        %v988 = vmul.f32 %v964, %v982
        %v989 = vmul.f32 %v965, %v978
        %v990 = vmul.f32 %v966, %v982
        %v991 = vmul.f32 %v967, %v978
        %v992 = vmul.f32 %v968, %v982
        %v993 = vmul.f32 %v969, %v978
        %v994 = vmul.f32 %v970, %v982
        %v995 = vmul.f32 %v971, %v978
        %v996 = vmul.f32 %v972, %v982
        %v997 = vmul.f32 %v973, %v978
        %v998 = vmul.f32 %v974, %v982
        %v999 = vpack.c.bf16 %v985, %v983
        %v1000 = vpack.c.bf16 %v986, %v984
        %v1001 = vpack.c.bf16 %v989, %v987
        %v1002 = vpack.c.bf16 %v990, %v988
        %v1003 = vpack.c.bf16 %v993, %v991
        %v1004 = vpack.c.bf16 %v994, %v992
        %v1005 = vpack.c.bf16 %v997, %v995
        %v1006 = vpack.c.bf16 %v998, %v996
        %v1007 = vshrl.u32 %v557, 16
        %v1008 = vshrl.u32 %v558, 16
        %v1009 = vshrl.u32 %v559, 16
        %v1010 = vshrl.u32 %v560, 16
        %v1011 = vshrl.u32 %v561, 16
        %v1012 = vshrl.u32 %v562, 16
        %v1013 = vshrl.u32 %v563, 16
        %v1014 = vshrl.u32 %v564, 16
        %v1015 = vshrl.u32 %v565, 16
        %v1016 = vshrl.u32 %v566, 16
        %v1017 = vshrl.u32 %v567, 16
        %v1018 = vshrl.u32 %v568, 16
        %v1019 = vshrl.u32 %v569, 16
        %v1020 = vshrl.u32 %v570, 16
        %v1021 = vshrl.u32 %v571, 16
        %v1022 = vshrl.u32 %v572, 16
        %v1023 = vand.u32 %v1007, 15
        %v1024 = vand.u32 %v1008, 15
        %v1025 = vand.u32 %v1009, 15
        %v1026 = vand.u32 %v1010, 15
        %v1027 = vand.u32 %v1011, 15
        %v1028 = vand.u32 %v1012, 15
        %v1029 = vand.u32 %v1013, 15
        %v1030 = vand.u32 %v1014, 15
        %v1031 = vand.u32 %v1015, 15
        %v1032 = vand.u32 %v1016, 15
        %v1033 = vand.u32 %v1017, 15
        %v1034 = vand.u32 %v1018, 15
        %v1035 = vand.u32 %v1019, 15
        %v1036 = vand.u32 %v1020, 15
        %v1037 = vand.u32 %v1021, 15
        %v1038 = vand.u32 %v1022, 15
        %v1039 = vxor.u32 %v1023, 8
        %v1040 = vxor.u32 %v1024, 8
        %v1041 = vxor.u32 %v1025, 8
        %v1042 = vxor.u32 %v1026, 8
        %v1043 = vxor.u32 %v1027, 8
        %v1044 = vxor.u32 %v1028, 8
        %v1045 = vxor.u32 %v1029, 8
        %v1046 = vxor.u32 %v1030, 8
        %v1047 = vxor.u32 %v1031, 8
        %v1048 = vxor.u32 %v1032, 8
        %v1049 = vxor.u32 %v1033, 8
        %v1050 = vxor.u32 %v1034, 8
        %v1051 = vxor.u32 %v1035, 8
        %v1052 = vxor.u32 %v1036, 8
        %v1053 = vxor.u32 %v1037, 8
        %v1054 = vxor.u32 %v1038, 8
        %v1055 = vsub.s32 %v1039, 8
        %v1056 = vsub.s32 %v1040, 8
        %v1057 = vsub.s32 %v1041, 8
        %v1058 = vsub.s32 %v1042, 8
        %v1059 = vsub.s32 %v1043, 8
        %v1060 = vsub.s32 %v1044, 8
        %v1061 = vsub.s32 %v1045, 8
        %v1062 = vsub.s32 %v1046, 8
        %v1063 = vsub.s32 %v1047, 8
        %v1064 = vsub.s32 %v1048, 8
        %v1065 = vsub.s32 %v1049, 8
        %v1066 = vsub.s32 %v1050, 8
        %v1067 = vsub.s32 %v1051, 8
        %v1068 = vsub.s32 %v1052, 8
        %v1069 = vsub.s32 %v1053, 8
        %v1070 = vsub.s32 %v1054, 8
        %v1071 = vcvt.s32.f32 %v1055
        %v1072 = vcvt.s32.f32 %v1056
        %v1073 = vcvt.s32.f32 %v1057
        %v1074 = vcvt.s32.f32 %v1058
        %v1075 = vcvt.s32.f32 %v1059
        %v1076 = vcvt.s32.f32 %v1060
        %v1077 = vcvt.s32.f32 %v1061
        %v1078 = vcvt.s32.f32 %v1062
        %v1079 = vcvt.s32.f32 %v1063
        %v1080 = vcvt.s32.f32 %v1064
        %v1081 = vcvt.s32.f32 %v1065
        %v1082 = vcvt.s32.f32 %v1066
        %v1083 = vcvt.s32.f32 %v1067
        %v1084 = vcvt.s32.f32 %v1068
        %v1085 = vcvt.s32.f32 %v1069
        %v1086 = vcvt.s32.f32 %v1070
        %v1087 = vlaneseq
        %v1088 = vshrl.u32 %v1087, 7
        %v1089 = vsub.s32 4, %v1088
        %v1090 = vrot.slane %v573, %v1089
        %v1091 = vlaneseq
        %v1092 = vshrl.u32 %v1091, 7
        %v1093 = vsub.s32 4, %v1092
        %v1094 = vrot.slane %v574, %v1093
        %v1095 = vmul.f32 %v1071, %v1090
        %v1096 = vmul.f32 %v1072, %v1094
        %v1097 = vmul.f32 %v1073, %v1090
        %v1098 = vmul.f32 %v1074, %v1094
        %v1099 = vmul.f32 %v1075, %v1090
        %v1100 = vmul.f32 %v1076, %v1094
        %v1101 = vmul.f32 %v1077, %v1090
        %v1102 = vmul.f32 %v1078, %v1094
        %v1103 = vmul.f32 %v1079, %v1090
        %v1104 = vmul.f32 %v1080, %v1094
        %v1105 = vmul.f32 %v1081, %v1090
        %v1106 = vmul.f32 %v1082, %v1094
        %v1107 = vmul.f32 %v1083, %v1090
        %v1108 = vmul.f32 %v1084, %v1094
        %v1109 = vmul.f32 %v1085, %v1090
        %v1110 = vmul.f32 %v1086, %v1094
        %v1111 = vpack.c.bf16 %v1097, %v1095
        %v1112 = vpack.c.bf16 %v1098, %v1096
        %v1113 = vpack.c.bf16 %v1101, %v1099
        %v1114 = vpack.c.bf16 %v1102, %v1100
        %v1115 = vpack.c.bf16 %v1105, %v1103
        %v1116 = vpack.c.bf16 %v1106, %v1104
        %v1117 = vpack.c.bf16 %v1109, %v1107
        %v1118 = vpack.c.bf16 %v1110, %v1108
        %v1119 = vshrl.u32 %v557, 20
        %v1120 = vshrl.u32 %v558, 20
        %v1121 = vshrl.u32 %v559, 20
        %v1122 = vshrl.u32 %v560, 20
        %v1123 = vshrl.u32 %v561, 20
        %v1124 = vshrl.u32 %v562, 20
        %v1125 = vshrl.u32 %v563, 20
        %v1126 = vshrl.u32 %v564, 20
        %v1127 = vshrl.u32 %v565, 20
        %v1128 = vshrl.u32 %v566, 20
        %v1129 = vshrl.u32 %v567, 20
        %v1130 = vshrl.u32 %v568, 20
        %v1131 = vshrl.u32 %v569, 20
        %v1132 = vshrl.u32 %v570, 20
        %v1133 = vshrl.u32 %v571, 20
        %v1134 = vshrl.u32 %v572, 20
        %v1135 = vand.u32 %v1119, 15
        %v1136 = vand.u32 %v1120, 15
        %v1137 = vand.u32 %v1121, 15
        %v1138 = vand.u32 %v1122, 15
        %v1139 = vand.u32 %v1123, 15
        %v1140 = vand.u32 %v1124, 15
        %v1141 = vand.u32 %v1125, 15
        %v1142 = vand.u32 %v1126, 15
        %v1143 = vand.u32 %v1127, 15
        %v1144 = vand.u32 %v1128, 15
        %v1145 = vand.u32 %v1129, 15
        %v1146 = vand.u32 %v1130, 15
        %v1147 = vand.u32 %v1131, 15
        %v1148 = vand.u32 %v1132, 15
        %v1149 = vand.u32 %v1133, 15
        %v1150 = vand.u32 %v1134, 15
        %v1151 = vxor.u32 %v1135, 8
        %v1152 = vxor.u32 %v1136, 8
        %v1153 = vxor.u32 %v1137, 8
        %v1154 = vxor.u32 %v1138, 8
        %v1155 = vxor.u32 %v1139, 8
        %v1156 = vxor.u32 %v1140, 8
        %v1157 = vxor.u32 %v1141, 8
        %v1158 = vxor.u32 %v1142, 8
        %v1159 = vxor.u32 %v1143, 8
        %v1160 = vxor.u32 %v1144, 8
        %v1161 = vxor.u32 %v1145, 8
        %v1162 = vxor.u32 %v1146, 8
        %v1163 = vxor.u32 %v1147, 8
        %v1164 = vxor.u32 %v1148, 8
        %v1165 = vxor.u32 %v1149, 8
        %v1166 = vxor.u32 %v1150, 8
        %v1167 = vsub.s32 %v1151, 8
        %v1168 = vsub.s32 %v1152, 8
        %v1169 = vsub.s32 %v1153, 8
        %v1170 = vsub.s32 %v1154, 8
        %v1171 = vsub.s32 %v1155, 8
        %v1172 = vsub.s32 %v1156, 8
        %v1173 = vsub.s32 %v1157, 8
        %v1174 = vsub.s32 %v1158, 8
        %v1175 = vsub.s32 %v1159, 8
        %v1176 = vsub.s32 %v1160, 8
        %v1177 = vsub.s32 %v1161, 8
        %v1178 = vsub.s32 %v1162, 8
        %v1179 = vsub.s32 %v1163, 8
        %v1180 = vsub.s32 %v1164, 8
        %v1181 = vsub.s32 %v1165, 8
        %v1182 = vsub.s32 %v1166, 8
        %v1183 = vcvt.s32.f32 %v1167
        %v1184 = vcvt.s32.f32 %v1168
        %v1185 = vcvt.s32.f32 %v1169
        %v1186 = vcvt.s32.f32 %v1170
        %v1187 = vcvt.s32.f32 %v1171
        %v1188 = vcvt.s32.f32 %v1172
        %v1189 = vcvt.s32.f32 %v1173
        %v1190 = vcvt.s32.f32 %v1174
        %v1191 = vcvt.s32.f32 %v1175
        %v1192 = vcvt.s32.f32 %v1176
        %v1193 = vcvt.s32.f32 %v1177
        %v1194 = vcvt.s32.f32 %v1178
        %v1195 = vcvt.s32.f32 %v1179
        %v1196 = vcvt.s32.f32 %v1180
        %v1197 = vcvt.s32.f32 %v1181
        %v1198 = vcvt.s32.f32 %v1182
        %v1199 = vlaneseq
        %v1200 = vshrl.u32 %v1199, 7
        %v1201 = vsub.s32 5, %v1200
        %v1202 = vrot.slane %v573, %v1201
        %v1203 = vlaneseq
        %v1204 = vshrl.u32 %v1203, 7
        %v1205 = vsub.s32 5, %v1204
        %v1206 = vrot.slane %v574, %v1205
        %v1207 = vmul.f32 %v1183, %v1202
        %v1208 = vmul.f32 %v1184, %v1206
        %v1209 = vmul.f32 %v1185, %v1202
        %v1210 = vmul.f32 %v1186, %v1206
        %v1211 = vmul.f32 %v1187, %v1202
        %v1212 = vmul.f32 %v1188, %v1206
        %v1213 = vmul.f32 %v1189, %v1202
        %v1214 = vmul.f32 %v1190, %v1206
        %v1215 = vmul.f32 %v1191, %v1202
        %v1216 = vmul.f32 %v1192, %v1206
        %v1217 = vmul.f32 %v1193, %v1202
        %v1218 = vmul.f32 %v1194, %v1206
        %v1219 = vmul.f32 %v1195, %v1202
        %v1220 = vmul.f32 %v1196, %v1206
        %v1221 = vmul.f32 %v1197, %v1202
        %v1222 = vmul.f32 %v1198, %v1206
        %v1223 = vpack.c.bf16 %v1209, %v1207
        %v1224 = vpack.c.bf16 %v1210, %v1208
        %v1225 = vpack.c.bf16 %v1213, %v1211
        %v1226 = vpack.c.bf16 %v1214, %v1212
        %v1227 = vpack.c.bf16 %v1217, %v1215
        %v1228 = vpack.c.bf16 %v1218, %v1216
        %v1229 = vpack.c.bf16 %v1221, %v1219
        %v1230 = vpack.c.bf16 %v1222, %v1220
        %v1231 = vshrl.u32 %v557, 24
        %v1232 = vshrl.u32 %v558, 24
        %v1233 = vshrl.u32 %v559, 24
        %v1234 = vshrl.u32 %v560, 24
        %v1235 = vshrl.u32 %v561, 24
        %v1236 = vshrl.u32 %v562, 24
        %v1237 = vshrl.u32 %v563, 24
        %v1238 = vshrl.u32 %v564, 24
        %v1239 = vshrl.u32 %v565, 24
        %v1240 = vshrl.u32 %v566, 24
        %v1241 = vshrl.u32 %v567, 24
        %v1242 = vshrl.u32 %v568, 24
        %v1243 = vshrl.u32 %v569, 24
        %v1244 = vshrl.u32 %v570, 24
        %v1245 = vshrl.u32 %v571, 24
        %v1246 = vshrl.u32 %v572, 24
        %v1247 = vand.u32 %v1231, 15
        %v1248 = vand.u32 %v1232, 15
        %v1249 = vand.u32 %v1233, 15
        %v1250 = vand.u32 %v1234, 15
        %v1251 = vand.u32 %v1235, 15
        %v1252 = vand.u32 %v1236, 15
        %v1253 = vand.u32 %v1237, 15
        %v1254 = vand.u32 %v1238, 15
        %v1255 = vand.u32 %v1239, 15
        %v1256 = vand.u32 %v1240, 15
        %v1257 = vand.u32 %v1241, 15
        %v1258 = vand.u32 %v1242, 15
        %v1259 = vand.u32 %v1243, 15
        %v1260 = vand.u32 %v1244, 15
        %v1261 = vand.u32 %v1245, 15
        %v1262 = vand.u32 %v1246, 15
        %v1263 = vxor.u32 %v1247, 8
        %v1264 = vxor.u32 %v1248, 8
        %v1265 = vxor.u32 %v1249, 8
        %v1266 = vxor.u32 %v1250, 8
        %v1267 = vxor.u32 %v1251, 8
        %v1268 = vxor.u32 %v1252, 8
        %v1269 = vxor.u32 %v1253, 8
        %v1270 = vxor.u32 %v1254, 8
        %v1271 = vxor.u32 %v1255, 8
        %v1272 = vxor.u32 %v1256, 8
        %v1273 = vxor.u32 %v1257, 8
        %v1274 = vxor.u32 %v1258, 8
        %v1275 = vxor.u32 %v1259, 8
        %v1276 = vxor.u32 %v1260, 8
        %v1277 = vxor.u32 %v1261, 8
        %v1278 = vxor.u32 %v1262, 8
        %v1279 = vsub.s32 %v1263, 8
        %v1280 = vsub.s32 %v1264, 8
        %v1281 = vsub.s32 %v1265, 8
        %v1282 = vsub.s32 %v1266, 8
        %v1283 = vsub.s32 %v1267, 8
        %v1284 = vsub.s32 %v1268, 8
        %v1285 = vsub.s32 %v1269, 8
        %v1286 = vsub.s32 %v1270, 8
        %v1287 = vsub.s32 %v1271, 8
        %v1288 = vsub.s32 %v1272, 8
        %v1289 = vsub.s32 %v1273, 8
        %v1290 = vsub.s32 %v1274, 8
        %v1291 = vsub.s32 %v1275, 8
        %v1292 = vsub.s32 %v1276, 8
        %v1293 = vsub.s32 %v1277, 8
        %v1294 = vsub.s32 %v1278, 8
        %v1295 = vcvt.s32.f32 %v1279
        %v1296 = vcvt.s32.f32 %v1280
        %v1297 = vcvt.s32.f32 %v1281
        %v1298 = vcvt.s32.f32 %v1282
        %v1299 = vcvt.s32.f32 %v1283
        %v1300 = vcvt.s32.f32 %v1284
        %v1301 = vcvt.s32.f32 %v1285
        %v1302 = vcvt.s32.f32 %v1286
        %v1303 = vcvt.s32.f32 %v1287
        %v1304 = vcvt.s32.f32 %v1288
        %v1305 = vcvt.s32.f32 %v1289
        %v1306 = vcvt.s32.f32 %v1290
        %v1307 = vcvt.s32.f32 %v1291
        %v1308 = vcvt.s32.f32 %v1292
        %v1309 = vcvt.s32.f32 %v1293
        %v1310 = vcvt.s32.f32 %v1294
        %v1311 = vlaneseq
        %v1312 = vshrl.u32 %v1311, 7
        %v1313 = vsub.s32 6, %v1312
        %v1314 = vrot.slane %v573, %v1313
        %v1315 = vlaneseq
        %v1316 = vshrl.u32 %v1315, 7
        %v1317 = vsub.s32 6, %v1316
        %v1318 = vrot.slane %v574, %v1317
        %v1319 = vmul.f32 %v1295, %v1314
        %v1320 = vmul.f32 %v1296, %v1318
        %v1321 = vmul.f32 %v1297, %v1314
        %v1322 = vmul.f32 %v1298, %v1318
        %v1323 = vmul.f32 %v1299, %v1314
        %v1324 = vmul.f32 %v1300, %v1318
        %v1325 = vmul.f32 %v1301, %v1314
        %v1326 = vmul.f32 %v1302, %v1318
        %v1327 = vmul.f32 %v1303, %v1314
        %v1328 = vmul.f32 %v1304, %v1318
        %v1329 = vmul.f32 %v1305, %v1314
        %v1330 = vmul.f32 %v1306, %v1318
        %v1331 = vmul.f32 %v1307, %v1314
        %v1332 = vmul.f32 %v1308, %v1318
        %v1333 = vmul.f32 %v1309, %v1314
        %v1334 = vmul.f32 %v1310, %v1318
        %v1335 = vpack.c.bf16 %v1321, %v1319
        %v1336 = vpack.c.bf16 %v1322, %v1320
        %v1337 = vpack.c.bf16 %v1325, %v1323
        %v1338 = vpack.c.bf16 %v1326, %v1324
        %v1339 = vpack.c.bf16 %v1329, %v1327
        %v1340 = vpack.c.bf16 %v1330, %v1328
        %v1341 = vpack.c.bf16 %v1333, %v1331
        %v1342 = vpack.c.bf16 %v1334, %v1332
        %v1343 = vshrl.u32 %v557, 28
        %v1344 = vshrl.u32 %v558, 28
        %v1345 = vshrl.u32 %v559, 28
        %v1346 = vshrl.u32 %v560, 28
        %v1347 = vshrl.u32 %v561, 28
        %v1348 = vshrl.u32 %v562, 28
        %v1349 = vshrl.u32 %v563, 28
        %v1350 = vshrl.u32 %v564, 28
        %v1351 = vshrl.u32 %v565, 28
        %v1352 = vshrl.u32 %v566, 28
        %v1353 = vshrl.u32 %v567, 28
        %v1354 = vshrl.u32 %v568, 28
        %v1355 = vshrl.u32 %v569, 28
        %v1356 = vshrl.u32 %v570, 28
        %v1357 = vshrl.u32 %v571, 28
        %v1358 = vshrl.u32 %v572, 28
        %v1359 = vand.u32 %v1343, 15
        %v1360 = vand.u32 %v1344, 15
        %v1361 = vand.u32 %v1345, 15
        %v1362 = vand.u32 %v1346, 15
        %v1363 = vand.u32 %v1347, 15
        %v1364 = vand.u32 %v1348, 15
        %v1365 = vand.u32 %v1349, 15
        %v1366 = vand.u32 %v1350, 15
        %v1367 = vand.u32 %v1351, 15
        %v1368 = vand.u32 %v1352, 15
        %v1369 = vand.u32 %v1353, 15
        %v1370 = vand.u32 %v1354, 15
        %v1371 = vand.u32 %v1355, 15
        %v1372 = vand.u32 %v1356, 15
        %v1373 = vand.u32 %v1357, 15
        %v1374 = vand.u32 %v1358, 15
        %v1375 = vxor.u32 %v1359, 8
        %v1376 = vxor.u32 %v1360, 8
        %v1377 = vxor.u32 %v1361, 8
        %v1378 = vxor.u32 %v1362, 8
        %v1379 = vxor.u32 %v1363, 8
        %v1380 = vxor.u32 %v1364, 8
        %v1381 = vxor.u32 %v1365, 8
        %v1382 = vxor.u32 %v1366, 8
        %v1383 = vxor.u32 %v1367, 8
        %v1384 = vxor.u32 %v1368, 8
        %v1385 = vxor.u32 %v1369, 8
        %v1386 = vxor.u32 %v1370, 8
        %v1387 = vxor.u32 %v1371, 8
        %v1388 = vxor.u32 %v1372, 8
        %v1389 = vxor.u32 %v1373, 8
        %v1390 = vxor.u32 %v1374, 8
        %v1391 = vsub.s32 %v1375, 8
        %v1392 = vsub.s32 %v1376, 8
        %v1393 = vsub.s32 %v1377, 8
        %v1394 = vsub.s32 %v1378, 8
        %v1395 = vsub.s32 %v1379, 8
        %v1396 = vsub.s32 %v1380, 8
        %v1397 = vsub.s32 %v1381, 8
        %v1398 = vsub.s32 %v1382, 8
        %v1399 = vsub.s32 %v1383, 8
        %v1400 = vsub.s32 %v1384, 8
        %v1401 = vsub.s32 %v1385, 8
        %v1402 = vsub.s32 %v1386, 8
        %v1403 = vsub.s32 %v1387, 8
        %v1404 = vsub.s32 %v1388, 8
        %v1405 = vsub.s32 %v1389, 8
        %v1406 = vsub.s32 %v1390, 8
        %v1407 = vcvt.s32.f32 %v1391
        %v1408 = vcvt.s32.f32 %v1392
        %v1409 = vcvt.s32.f32 %v1393
        %v1410 = vcvt.s32.f32 %v1394
        %v1411 = vcvt.s32.f32 %v1395
        %v1412 = vcvt.s32.f32 %v1396
        %v1413 = vcvt.s32.f32 %v1397
        %v1414 = vcvt.s32.f32 %v1398
        %v1415 = vcvt.s32.f32 %v1399
        %v1416 = vcvt.s32.f32 %v1400
        %v1417 = vcvt.s32.f32 %v1401
        %v1418 = vcvt.s32.f32 %v1402
        %v1419 = vcvt.s32.f32 %v1403
        %v1420 = vcvt.s32.f32 %v1404
        %v1421 = vcvt.s32.f32 %v1405
        %v1422 = vcvt.s32.f32 %v1406
        %v1423 = vlaneseq
        %v1424 = vshrl.u32 %v1423, 7
        %v1425 = vsub.s32 7, %v1424
        %v1426 = vrot.slane %v573, %v1425
        %v1427 = vlaneseq
        %v1428 = vshrl.u32 %v1427, 7
        %v1429 = vsub.s32 7, %v1428
        %v1430 = vrot.slane %v574, %v1429
        %v1431 = vmul.f32 %v1407, %v1426
        %v1432 = vmul.f32 %v1408, %v1430
        %v1433 = vmul.f32 %v1409, %v1426
        %v1434 = vmul.f32 %v1410, %v1430
        %v1435 = vmul.f32 %v1411, %v1426
        %v1436 = vmul.f32 %v1412, %v1430
        %v1437 = vmul.f32 %v1413, %v1426
        %v1438 = vmul.f32 %v1414, %v1430
        %v1439 = vmul.f32 %v1415, %v1426
        %v1440 = vmul.f32 %v1416, %v1430
        %v1441 = vmul.f32 %v1417, %v1426
        %v1442 = vmul.f32 %v1418, %v1430
        %v1443 = vmul.f32 %v1419, %v1426
        %v1444 = vmul.f32 %v1420, %v1430
        %v1445 = vmul.f32 %v1421, %v1426
        %v1446 = vmul.f32 %v1422, %v1430
        %v1447 = vpack.c.bf16 %v1433, %v1431
        %v1448 = vpack.c.bf16 %v1434, %v1432
        %v1449 = vpack.c.bf16 %v1437, %v1435
        %v1450 = vpack.c.bf16 %v1438, %v1436
        %v1451 = vpack.c.bf16 %v1441, %v1439
        %v1452 = vpack.c.bf16 %v1442, %v1440
        %v1453 = vpack.c.bf16 %v1445, %v1443
        %v1454 = vpack.c.bf16 %v1446, %v1444
        %v1455 = vld [vmem:[%s426] sm:$0xff]
        %v1456 = vld [vmem:[%s426 + $0x8] sm:$0xff]
        %v1457 = vld [vmem:[%s426 + $0x10] sm:$0xff]
        %v1458 = vld [vmem:[%s426 + $0x18] sm:$0xff]
        %v1459 = vld [vmem:[%s426 + $0x20] sm:$0xff]
        %v1460 = vld [vmem:[%s426 + $0x28] sm:$0xff]
        %v1461 = vld [vmem:[%s426 + $0x30] sm:$0xff]
        %v1462 = vld [vmem:[%s426 + $0x38] sm:$0xff]
        %v1463 = vld [vmem:[%s426 + $0x40] sm:$0xff]
        %v1464 = vld [vmem:[%s426 + $0x48] sm:$0xff]
        %v1465 = vld [vmem:[%s426 + $0x50] sm:$0xff]
        %v1466 = vld [vmem:[%s426 + $0x58] sm:$0xff]
        %v1467 = vld [vmem:[%s426 + $0x60] sm:$0xff]
        %v1468 = vld [vmem:[%s426 + $0x68] sm:$0xff]
        %v1469 = vld [vmem:[%s426 + $0x70] sm:$0xff]
        %v1470 = vld [vmem:[%s426 + $0x78] sm:$0xff]
        %v1471 = vld [vmem:[%s527] sm:$0xff]
        %v1472 = vld [vmem:[%s527 + $0x8] sm:$0xff]
        %v1473 = vand.u32 %v1455, 15
        %v1474 = vand.u32 %v1456, 15
        %v1475 = vand.u32 %v1457, 15
        %v1476 = vand.u32 %v1458, 15
        %v1477 = vand.u32 %v1459, 15
        %v1478 = vand.u32 %v1460, 15
        %v1479 = vand.u32 %v1461, 15
        %v1480 = vand.u32 %v1462, 15
        %v1481 = vand.u32 %v1463, 15
        %v1482 = vand.u32 %v1464, 15
        %v1483 = vand.u32 %v1465, 15
        %v1484 = vand.u32 %v1466, 15
        %v1485 = vand.u32 %v1467, 15
        %v1486 = vand.u32 %v1468, 15
        %v1487 = vand.u32 %v1469, 15
        %v1488 = vand.u32 %v1470, 15
        %v1489 = vxor.u32 %v1473, 8
        %v1490 = vxor.u32 %v1474, 8
        %v1491 = vxor.u32 %v1475, 8
        %v1492 = vxor.u32 %v1476, 8
        %v1493 = vxor.u32 %v1477, 8
        %v1494 = vxor.u32 %v1478, 8
        %v1495 = vxor.u32 %v1479, 8
        %v1496 = vxor.u32 %v1480, 8
        %v1497 = vxor.u32 %v1481, 8
        %v1498 = vxor.u32 %v1482, 8
        %v1499 = vxor.u32 %v1483, 8
        %v1500 = vxor.u32 %v1484, 8
        %v1501 = vxor.u32 %v1485, 8
        %v1502 = vxor.u32 %v1486, 8
        %v1503 = vxor.u32 %v1487, 8
        %v1504 = vxor.u32 %v1488, 8
        %v1505 = vsub.s32 %v1489, 8
        %v1506 = vsub.s32 %v1490, 8
        %v1507 = vsub.s32 %v1491, 8
        %v1508 = vsub.s32 %v1492, 8
        %v1509 = vsub.s32 %v1493, 8
        %v1510 = vsub.s32 %v1494, 8
        %v1511 = vsub.s32 %v1495, 8
        %v1512 = vsub.s32 %v1496, 8
        %v1513 = vsub.s32 %v1497, 8
        %v1514 = vsub.s32 %v1498, 8
        %v1515 = vsub.s32 %v1499, 8
        %v1516 = vsub.s32 %v1500, 8
        %v1517 = vsub.s32 %v1501, 8
        %v1518 = vsub.s32 %v1502, 8
        %v1519 = vsub.s32 %v1503, 8
        %v1520 = vsub.s32 %v1504, 8
        %v1521 = vcvt.s32.f32 %v1505
        %v1522 = vcvt.s32.f32 %v1506
        %v1523 = vcvt.s32.f32 %v1507
        %v1524 = vcvt.s32.f32 %v1508
        %v1525 = vcvt.s32.f32 %v1509
        %v1526 = vcvt.s32.f32 %v1510
        %v1527 = vcvt.s32.f32 %v1511
        %v1528 = vcvt.s32.f32 %v1512
        %v1529 = vcvt.s32.f32 %v1513
        %v1530 = vcvt.s32.f32 %v1514
        %v1531 = vcvt.s32.f32 %v1515
        %v1532 = vcvt.s32.f32 %v1516
        %v1533 = vcvt.s32.f32 %v1517
        %v1534 = vcvt.s32.f32 %v1518
        %v1535 = vcvt.s32.f32 %v1519
        %v1536 = vcvt.s32.f32 %v1520
        %v1537 = vlaneseq
        %v1538 = vshrl.u32 %v1537, 7
        %v1539 = vsub.s32 0, %v1538
        %v1540 = vrot.slane %v1471, %v1539
        %v1541 = vlaneseq
        %v1542 = vshrl.u32 %v1541, 7
        %v1543 = vsub.s32 0, %v1542
        %v1544 = vrot.slane %v1472, %v1543
        %v1545 = vmul.f32 %v1521, %v1540
        %v1546 = vmul.f32 %v1522, %v1544
        %v1547 = vmul.f32 %v1523, %v1540
        %v1548 = vmul.f32 %v1524, %v1544
        %v1549 = vmul.f32 %v1525, %v1540
        %v1550 = vmul.f32 %v1526, %v1544
        %v1551 = vmul.f32 %v1527, %v1540
        %v1552 = vmul.f32 %v1528, %v1544
        %v1553 = vmul.f32 %v1529, %v1540
        %v1554 = vmul.f32 %v1530, %v1544
        %v1555 = vmul.f32 %v1531, %v1540
        %v1556 = vmul.f32 %v1532, %v1544
        %v1557 = vmul.f32 %v1533, %v1540
        %v1558 = vmul.f32 %v1534, %v1544
        %v1559 = vmul.f32 %v1535, %v1540
        %v1560 = vmul.f32 %v1536, %v1544
        %v1561 = vpack.c.bf16 %v1547, %v1545
        %v1562 = vpack.c.bf16 %v1548, %v1546
        %v1563 = vpack.c.bf16 %v1551, %v1549
        %v1564 = vpack.c.bf16 %v1552, %v1550
        %v1565 = vpack.c.bf16 %v1555, %v1553
        %v1566 = vpack.c.bf16 %v1556, %v1554
        %v1567 = vpack.c.bf16 %v1559, %v1557
        %v1568 = vpack.c.bf16 %v1560, %v1558
        %v1569 = vshrl.u32 %v1455, 4
        %v1570 = vshrl.u32 %v1456, 4
        %v1571 = vshrl.u32 %v1457, 4
        %v1572 = vshrl.u32 %v1458, 4
        %v1573 = vshrl.u32 %v1459, 4
        %v1574 = vshrl.u32 %v1460, 4
        %v1575 = vshrl.u32 %v1461, 4
        %v1576 = vshrl.u32 %v1462, 4
        %v1577 = vshrl.u32 %v1463, 4
        %v1578 = vshrl.u32 %v1464, 4
        %v1579 = vshrl.u32 %v1465, 4
        %v1580 = vshrl.u32 %v1466, 4
        %v1581 = vshrl.u32 %v1467, 4
        %v1582 = vshrl.u32 %v1468, 4
        %v1583 = vshrl.u32 %v1469, 4
        %v1584 = vshrl.u32 %v1470, 4
        %v1585 = vand.u32 %v1569, 15
        %v1586 = vand.u32 %v1570, 15
        %v1587 = vand.u32 %v1571, 15
        %v1588 = vand.u32 %v1572, 15
        %v1589 = vand.u32 %v1573, 15
        %v1590 = vand.u32 %v1574, 15
        %v1591 = vand.u32 %v1575, 15
        %v1592 = vand.u32 %v1576, 15
        %v1593 = vand.u32 %v1577, 15
        %v1594 = vand.u32 %v1578, 15
        %v1595 = vand.u32 %v1579, 15
        %v1596 = vand.u32 %v1580, 15
        %v1597 = vand.u32 %v1581, 15
        %v1598 = vand.u32 %v1582, 15
        %v1599 = vand.u32 %v1583, 15
        %v1600 = vand.u32 %v1584, 15
        %v1601 = vxor.u32 %v1585, 8
        %v1602 = vxor.u32 %v1586, 8
        %v1603 = vxor.u32 %v1587, 8
        %v1604 = vxor.u32 %v1588, 8
        %v1605 = vxor.u32 %v1589, 8
        %v1606 = vxor.u32 %v1590, 8
        %v1607 = vxor.u32 %v1591, 8
        %v1608 = vxor.u32 %v1592, 8
        %v1609 = vxor.u32 %v1593, 8
        %v1610 = vxor.u32 %v1594, 8
        %v1611 = vxor.u32 %v1595, 8
        %v1612 = vxor.u32 %v1596, 8
        %v1613 = vxor.u32 %v1597, 8
        %v1614 = vxor.u32 %v1598, 8
        %v1615 = vxor.u32 %v1599, 8
        %v1616 = vxor.u32 %v1600, 8
        %v1617 = vsub.s32 %v1601, 8
        %v1618 = vsub.s32 %v1602, 8
        %v1619 = vsub.s32 %v1603, 8
        %v1620 = vsub.s32 %v1604, 8
        %v1621 = vsub.s32 %v1605, 8
        %v1622 = vsub.s32 %v1606, 8
        %v1623 = vsub.s32 %v1607, 8
        %v1624 = vsub.s32 %v1608, 8
        %v1625 = vsub.s32 %v1609, 8
        %v1626 = vsub.s32 %v1610, 8
        %v1627 = vsub.s32 %v1611, 8
        %v1628 = vsub.s32 %v1612, 8
        %v1629 = vsub.s32 %v1613, 8
        %v1630 = vsub.s32 %v1614, 8
        %v1631 = vsub.s32 %v1615, 8
        %v1632 = vsub.s32 %v1616, 8
        %v1633 = vcvt.s32.f32 %v1617
        %v1634 = vcvt.s32.f32 %v1618
        %v1635 = vcvt.s32.f32 %v1619
        %v1636 = vcvt.s32.f32 %v1620
        %v1637 = vcvt.s32.f32 %v1621
        %v1638 = vcvt.s32.f32 %v1622
        %v1639 = vcvt.s32.f32 %v1623
        %v1640 = vcvt.s32.f32 %v1624
        %v1641 = vcvt.s32.f32 %v1625
        %v1642 = vcvt.s32.f32 %v1626
        %v1643 = vcvt.s32.f32 %v1627
        %v1644 = vcvt.s32.f32 %v1628
        %v1645 = vcvt.s32.f32 %v1629
        %v1646 = vcvt.s32.f32 %v1630
        %v1647 = vcvt.s32.f32 %v1631
        %v1648 = vcvt.s32.f32 %v1632
        %v1649 = vlaneseq
        %v1650 = vshrl.u32 %v1649, 7
        %v1651 = vsub.s32 1, %v1650
        %v1652 = vrot.slane %v1471, %v1651
        %v1653 = vlaneseq
        %v1654 = vshrl.u32 %v1653, 7
        %v1655 = vsub.s32 1, %v1654
        %v1656 = vrot.slane %v1472, %v1655
        %v1657 = vmul.f32 %v1633, %v1652
        %v1658 = vmul.f32 %v1634, %v1656
        %v1659 = vmul.f32 %v1635, %v1652
        %v1660 = vmul.f32 %v1636, %v1656
        %v1661 = vmul.f32 %v1637, %v1652
        %v1662 = vmul.f32 %v1638, %v1656
        %v1663 = vmul.f32 %v1639, %v1652
        %v1664 = vmul.f32 %v1640, %v1656
        %v1665 = vmul.f32 %v1641, %v1652
        %v1666 = vmul.f32 %v1642, %v1656
        %v1667 = vmul.f32 %v1643, %v1652
        %v1668 = vmul.f32 %v1644, %v1656
        %v1669 = vmul.f32 %v1645, %v1652
        %v1670 = vmul.f32 %v1646, %v1656
        %v1671 = vmul.f32 %v1647, %v1652
        %v1672 = vmul.f32 %v1648, %v1656
        %v1673 = vpack.c.bf16 %v1659, %v1657
        %v1674 = vpack.c.bf16 %v1660, %v1658
        %v1675 = vpack.c.bf16 %v1663, %v1661
        %v1676 = vpack.c.bf16 %v1664, %v1662
        %v1677 = vpack.c.bf16 %v1667, %v1665
        %v1678 = vpack.c.bf16 %v1668, %v1666
        %v1679 = vpack.c.bf16 %v1671, %v1669
        %v1680 = vpack.c.bf16 %v1672, %v1670
        %v1681 = vshrl.u32 %v1455, 8
        %v1682 = vshrl.u32 %v1456, 8
        %v1683 = vshrl.u32 %v1457, 8
        %v1684 = vshrl.u32 %v1458, 8
        %v1685 = vshrl.u32 %v1459, 8
        %v1686 = vshrl.u32 %v1460, 8
        %v1687 = vshrl.u32 %v1461, 8
        %v1688 = vshrl.u32 %v1462, 8
        %v1689 = vshrl.u32 %v1463, 8
        %v1690 = vshrl.u32 %v1464, 8
        %v1691 = vshrl.u32 %v1465, 8
        %v1692 = vshrl.u32 %v1466, 8
        %v1693 = vshrl.u32 %v1467, 8
        %v1694 = vshrl.u32 %v1468, 8
        %v1695 = vshrl.u32 %v1469, 8
        %v1696 = vshrl.u32 %v1470, 8
        %v1697 = vand.u32 %v1681, 15
        %v1698 = vand.u32 %v1682, 15
        %v1699 = vand.u32 %v1683, 15
        %v1700 = vand.u32 %v1684, 15
        %v1701 = vand.u32 %v1685, 15
        %v1702 = vand.u32 %v1686, 15
        %v1703 = vand.u32 %v1687, 15
        %v1704 = vand.u32 %v1688, 15
        %v1705 = vand.u32 %v1689, 15
        %v1706 = vand.u32 %v1690, 15
        %v1707 = vand.u32 %v1691, 15
        %v1708 = vand.u32 %v1692, 15
        %v1709 = vand.u32 %v1693, 15
        %v1710 = vand.u32 %v1694, 15
        %v1711 = vand.u32 %v1695, 15
        %v1712 = vand.u32 %v1696, 15
        %v1713 = vxor.u32 %v1697, 8
        %v1714 = vxor.u32 %v1698, 8
        %v1715 = vxor.u32 %v1699, 8
        %v1716 = vxor.u32 %v1700, 8
        %v1717 = vxor.u32 %v1701, 8
        %v1718 = vxor.u32 %v1702, 8
        %v1719 = vxor.u32 %v1703, 8
        %v1720 = vxor.u32 %v1704, 8
        %v1721 = vxor.u32 %v1705, 8
        %v1722 = vxor.u32 %v1706, 8
        %v1723 = vxor.u32 %v1707, 8
        %v1724 = vxor.u32 %v1708, 8
        %v1725 = vxor.u32 %v1709, 8
        %v1726 = vxor.u32 %v1710, 8
        %v1727 = vxor.u32 %v1711, 8
        %v1728 = vxor.u32 %v1712, 8
        %v1729 = vsub.s32 %v1713, 8
        %v1730 = vsub.s32 %v1714, 8
        %v1731 = vsub.s32 %v1715, 8
        %v1732 = vsub.s32 %v1716, 8
        %v1733 = vsub.s32 %v1717, 8
        %v1734 = vsub.s32 %v1718, 8
        %v1735 = vsub.s32 %v1719, 8
        %v1736 = vsub.s32 %v1720, 8
        %v1737 = vsub.s32 %v1721, 8
        %v1738 = vsub.s32 %v1722, 8
        %v1739 = vsub.s32 %v1723, 8
        %v1740 = vsub.s32 %v1724, 8
        %v1741 = vsub.s32 %v1725, 8
        %v1742 = vsub.s32 %v1726, 8
        %v1743 = vsub.s32 %v1727, 8
        %v1744 = vsub.s32 %v1728, 8
        %v1745 = vcvt.s32.f32 %v1729
        %v1746 = vcvt.s32.f32 %v1730
        %v1747 = vcvt.s32.f32 %v1731
        %v1748 = vcvt.s32.f32 %v1732
        %v1749 = vcvt.s32.f32 %v1733
        %v1750 = vcvt.s32.f32 %v1734
        %v1751 = vcvt.s32.f32 %v1735
        %v1752 = vcvt.s32.f32 %v1736
        %v1753 = vcvt.s32.f32 %v1737
        %v1754 = vcvt.s32.f32 %v1738
        %v1755 = vcvt.s32.f32 %v1739
        %v1756 = vcvt.s32.f32 %v1740
        %v1757 = vcvt.s32.f32 %v1741
        %v1758 = vcvt.s32.f32 %v1742
        %v1759 = vcvt.s32.f32 %v1743
        %v1760 = vcvt.s32.f32 %v1744
        %v1761 = vlaneseq
        %v1762 = vshrl.u32 %v1761, 7
        %v1763 = vsub.s32 2, %v1762
        %v1764 = vrot.slane %v1471, %v1763
        %v1765 = vlaneseq
        %v1766 = vshrl.u32 %v1765, 7
        %v1767 = vsub.s32 2, %v1766
        %v1768 = vrot.slane %v1472, %v1767
        %v1769 = vmul.f32 %v1745, %v1764
        %v1770 = vmul.f32 %v1746, %v1768
        %v1771 = vmul.f32 %v1747, %v1764
        %v1772 = vmul.f32 %v1748, %v1768
        %v1773 = vmul.f32 %v1749, %v1764
        %v1774 = vmul.f32 %v1750, %v1768
        %v1775 = vmul.f32 %v1751, %v1764
        %v1776 = vmul.f32 %v1752, %v1768
        %v1777 = vmul.f32 %v1753, %v1764
        %v1778 = vmul.f32 %v1754, %v1768
        %v1779 = vmul.f32 %v1755, %v1764
        %v1780 = vmul.f32 %v1756, %v1768
        %v1781 = vmul.f32 %v1757, %v1764
        %v1782 = vmul.f32 %v1758, %v1768
        %v1783 = vmul.f32 %v1759, %v1764
        %v1784 = vmul.f32 %v1760, %v1768
        %v1785 = vpack.c.bf16 %v1771, %v1769
        %v1786 = vpack.c.bf16 %v1772, %v1770
        %v1787 = vpack.c.bf16 %v1775, %v1773
        %v1788 = vpack.c.bf16 %v1776, %v1774
        %v1789 = vpack.c.bf16 %v1779, %v1777
        %v1790 = vpack.c.bf16 %v1780, %v1778
        %v1791 = vpack.c.bf16 %v1783, %v1781
        %v1792 = vpack.c.bf16 %v1784, %v1782
        %v1793 = vshrl.u32 %v1455, 12
        %v1794 = vshrl.u32 %v1456, 12
        %v1795 = vshrl.u32 %v1457, 12
        %v1796 = vshrl.u32 %v1458, 12
        %v1797 = vshrl.u32 %v1459, 12
        %v1798 = vshrl.u32 %v1460, 12
        %v1799 = vshrl.u32 %v1461, 12
        %v1800 = vshrl.u32 %v1462, 12
        %v1801 = vshrl.u32 %v1463, 12
        %v1802 = vshrl.u32 %v1464, 12
        %v1803 = vshrl.u32 %v1465, 12
        %v1804 = vshrl.u32 %v1466, 12
        %v1805 = vshrl.u32 %v1467, 12
        %v1806 = vshrl.u32 %v1468, 12
        %v1807 = vshrl.u32 %v1469, 12
        %v1808 = vshrl.u32 %v1470, 12
        %v1809 = vand.u32 %v1793, 15
        %v1810 = vand.u32 %v1794, 15
        %v1811 = vand.u32 %v1795, 15
        %v1812 = vand.u32 %v1796, 15
        %v1813 = vand.u32 %v1797, 15
        %v1814 = vand.u32 %v1798, 15
        %v1815 = vand.u32 %v1799, 15
        %v1816 = vand.u32 %v1800, 15
        %v1817 = vand.u32 %v1801, 15
        %v1818 = vand.u32 %v1802, 15
        %v1819 = vand.u32 %v1803, 15
        %v1820 = vand.u32 %v1804, 15
        %v1821 = vand.u32 %v1805, 15
        %v1822 = vand.u32 %v1806, 15
        %v1823 = vand.u32 %v1807, 15
        %v1824 = vand.u32 %v1808, 15
        %v1825 = vxor.u32 %v1809, 8
        %v1826 = vxor.u32 %v1810, 8
        %v1827 = vxor.u32 %v1811, 8
        %v1828 = vxor.u32 %v1812, 8
        %v1829 = vxor.u32 %v1813, 8
        %v1830 = vxor.u32 %v1814, 8
        %v1831 = vxor.u32 %v1815, 8
        %v1832 = vxor.u32 %v1816, 8
        %v1833 = vxor.u32 %v1817, 8
        %v1834 = vxor.u32 %v1818, 8
        %v1835 = vxor.u32 %v1819, 8
        %v1836 = vxor.u32 %v1820, 8
        %v1837 = vxor.u32 %v1821, 8
        %v1838 = vxor.u32 %v1822, 8
        %v1839 = vxor.u32 %v1823, 8
        %v1840 = vxor.u32 %v1824, 8
        %v1841 = vsub.s32 %v1825, 8
        %v1842 = vsub.s32 %v1826, 8
        %v1843 = vsub.s32 %v1827, 8
        %v1844 = vsub.s32 %v1828, 8
        %v1845 = vsub.s32 %v1829, 8
        %v1846 = vsub.s32 %v1830, 8
        %v1847 = vsub.s32 %v1831, 8
        %v1848 = vsub.s32 %v1832, 8
        %v1849 = vsub.s32 %v1833, 8
        %v1850 = vsub.s32 %v1834, 8
        %v1851 = vsub.s32 %v1835, 8
        %v1852 = vsub.s32 %v1836, 8
        %v1853 = vsub.s32 %v1837, 8
        %v1854 = vsub.s32 %v1838, 8
        %v1855 = vsub.s32 %v1839, 8
        %v1856 = vsub.s32 %v1840, 8
        %v1857 = vcvt.s32.f32 %v1841
        %v1858 = vcvt.s32.f32 %v1842
        %v1859 = vcvt.s32.f32 %v1843
        %v1860 = vcvt.s32.f32 %v1844
        %v1861 = vcvt.s32.f32 %v1845
        %v1862 = vcvt.s32.f32 %v1846
        %v1863 = vcvt.s32.f32 %v1847
        %v1864 = vcvt.s32.f32 %v1848
        %v1865 = vcvt.s32.f32 %v1849
        %v1866 = vcvt.s32.f32 %v1850
        %v1867 = vcvt.s32.f32 %v1851
        %v1868 = vcvt.s32.f32 %v1852
        %v1869 = vcvt.s32.f32 %v1853
        %v1870 = vcvt.s32.f32 %v1854
        %v1871 = vcvt.s32.f32 %v1855
        %v1872 = vcvt.s32.f32 %v1856
        %v1873 = vlaneseq
        %v1874 = vshrl.u32 %v1873, 7
        %v1875 = vsub.s32 3, %v1874
        %v1876 = vrot.slane %v1471, %v1875
        %v1877 = vlaneseq
        %v1878 = vshrl.u32 %v1877, 7
        %v1879 = vsub.s32 3, %v1878
        %v1880 = vrot.slane %v1472, %v1879
        %v1881 = vmul.f32 %v1857, %v1876
        %v1882 = vmul.f32 %v1858, %v1880
        %v1883 = vmul.f32 %v1859, %v1876
        %v1884 = vmul.f32 %v1860, %v1880
        %v1885 = vmul.f32 %v1861, %v1876
        %v1886 = vmul.f32 %v1862, %v1880
        %v1887 = vmul.f32 %v1863, %v1876
        %v1888 = vmul.f32 %v1864, %v1880
        %v1889 = vmul.f32 %v1865, %v1876
        %v1890 = vmul.f32 %v1866, %v1880
        %v1891 = vmul.f32 %v1867, %v1876
        %v1892 = vmul.f32 %v1868, %v1880
        %v1893 = vmul.f32 %v1869, %v1876
        %v1894 = vmul.f32 %v1870, %v1880
        %v1895 = vmul.f32 %v1871, %v1876
        %v1896 = vmul.f32 %v1872, %v1880
        %v1897 = vpack.c.bf16 %v1883, %v1881
        %v1898 = vpack.c.bf16 %v1884, %v1882
        %v1899 = vpack.c.bf16 %v1887, %v1885
        %v1900 = vpack.c.bf16 %v1888, %v1886
        %v1901 = vpack.c.bf16 %v1891, %v1889
        %v1902 = vpack.c.bf16 %v1892, %v1890
        %v1903 = vpack.c.bf16 %v1895, %v1893
        %v1904 = vpack.c.bf16 %v1896, %v1894
        %v1905 = vshrl.u32 %v1455, 16
        %v1906 = vshrl.u32 %v1456, 16
        %v1907 = vshrl.u32 %v1457, 16
        %v1908 = vshrl.u32 %v1458, 16
        %v1909 = vshrl.u32 %v1459, 16
        %v1910 = vshrl.u32 %v1460, 16
        %v1911 = vshrl.u32 %v1461, 16
        %v1912 = vshrl.u32 %v1462, 16
        %v1913 = vshrl.u32 %v1463, 16
        %v1914 = vshrl.u32 %v1464, 16
        %v1915 = vshrl.u32 %v1465, 16
        %v1916 = vshrl.u32 %v1466, 16
        %v1917 = vshrl.u32 %v1467, 16
        %v1918 = vshrl.u32 %v1468, 16
        %v1919 = vshrl.u32 %v1469, 16
        %v1920 = vshrl.u32 %v1470, 16
        %v1921 = vand.u32 %v1905, 15
        %v1922 = vand.u32 %v1906, 15
        %v1923 = vand.u32 %v1907, 15
        %v1924 = vand.u32 %v1908, 15
        %v1925 = vand.u32 %v1909, 15
        %v1926 = vand.u32 %v1910, 15
        %v1927 = vand.u32 %v1911, 15
        %v1928 = vand.u32 %v1912, 15
        %v1929 = vand.u32 %v1913, 15
        %v1930 = vand.u32 %v1914, 15
        %v1931 = vand.u32 %v1915, 15
        %v1932 = vand.u32 %v1916, 15
        %v1933 = vand.u32 %v1917, 15
        %v1934 = vand.u32 %v1918, 15
        %v1935 = vand.u32 %v1919, 15
        %v1936 = vand.u32 %v1920, 15
        %v1937 = vxor.u32 %v1921, 8
        %v1938 = vxor.u32 %v1922, 8
        %v1939 = vxor.u32 %v1923, 8
        %v1940 = vxor.u32 %v1924, 8
        %v1941 = vxor.u32 %v1925, 8
        %v1942 = vxor.u32 %v1926, 8
        %v1943 = vxor.u32 %v1927, 8
        %v1944 = vxor.u32 %v1928, 8
        %v1945 = vxor.u32 %v1929, 8
        %v1946 = vxor.u32 %v1930, 8
        %v1947 = vxor.u32 %v1931, 8
        %v1948 = vxor.u32 %v1932, 8
        %v1949 = vxor.u32 %v1933, 8
        %v1950 = vxor.u32 %v1934, 8
        %v1951 = vxor.u32 %v1935, 8
        %v1952 = vxor.u32 %v1936, 8
        %v1953 = vsub.s32 %v1937, 8
        %v1954 = vsub.s32 %v1938, 8
        %v1955 = vsub.s32 %v1939, 8
        %v1956 = vsub.s32 %v1940, 8
        %v1957 = vsub.s32 %v1941, 8
        %v1958 = vsub.s32 %v1942, 8
        %v1959 = vsub.s32 %v1943, 8
        %v1960 = vsub.s32 %v1944, 8
        %v1961 = vsub.s32 %v1945, 8
        %v1962 = vsub.s32 %v1946, 8
        %v1963 = vsub.s32 %v1947, 8
        %v1964 = vsub.s32 %v1948, 8
        %v1965 = vsub.s32 %v1949, 8
        %v1966 = vsub.s32 %v1950, 8
        %v1967 = vsub.s32 %v1951, 8
        %v1968 = vsub.s32 %v1952, 8
        %v1969 = vcvt.s32.f32 %v1953
        %v1970 = vcvt.s32.f32 %v1954
        %v1971 = vcvt.s32.f32 %v1955
        %v1972 = vcvt.s32.f32 %v1956
        %v1973 = vcvt.s32.f32 %v1957
        %v1974 = vcvt.s32.f32 %v1958
        %v1975 = vcvt.s32.f32 %v1959
        %v1976 = vcvt.s32.f32 %v1960
        %v1977 = vcvt.s32.f32 %v1961
        %v1978 = vcvt.s32.f32 %v1962
        %v1979 = vcvt.s32.f32 %v1963
        %v1980 = vcvt.s32.f32 %v1964
        %v1981 = vcvt.s32.f32 %v1965
        %v1982 = vcvt.s32.f32 %v1966
        %v1983 = vcvt.s32.f32 %v1967
        %v1984 = vcvt.s32.f32 %v1968
        %v1985 = vlaneseq
        %v1986 = vshrl.u32 %v1985, 7
        %v1987 = vsub.s32 4, %v1986
        %v1988 = vrot.slane %v1471, %v1987
        %v1989 = vlaneseq
        %v1990 = vshrl.u32 %v1989, 7
        %v1991 = vsub.s32 4, %v1990
        %v1992 = vrot.slane %v1472, %v1991
        %v1993 = vmul.f32 %v1969, %v1988
        %v1994 = vmul.f32 %v1970, %v1992
        %v1995 = vmul.f32 %v1971, %v1988
        %v1996 = vmul.f32 %v1972, %v1992
        %v1997 = vmul.f32 %v1973, %v1988
        %v1998 = vmul.f32 %v1974, %v1992
        %v1999 = vmul.f32 %v1975, %v1988
        %v2000 = vmul.f32 %v1976, %v1992
        %v2001 = vmul.f32 %v1977, %v1988
        %v2002 = vmul.f32 %v1978, %v1992
        %v2003 = vmul.f32 %v1979, %v1988
        %v2004 = vmul.f32 %v1980, %v1992
        %v2005 = vmul.f32 %v1981, %v1988
        %v2006 = vmul.f32 %v1982, %v1992
        %v2007 = vmul.f32 %v1983, %v1988
        %v2008 = vmul.f32 %v1984, %v1992
        %v2009 = vpack.c.bf16 %v1995, %v1993
        %v2010 = vpack.c.bf16 %v1996, %v1994
        %v2011 = vpack.c.bf16 %v1999, %v1997
        %v2012 = vpack.c.bf16 %v2000, %v1998
        %v2013 = vpack.c.bf16 %v2003, %v2001
        %v2014 = vpack.c.bf16 %v2004, %v2002
        %v2015 = vpack.c.bf16 %v2007, %v2005
        %v2016 = vpack.c.bf16 %v2008, %v2006
        %v2017 = vshrl.u32 %v1455, 20
        %v2018 = vshrl.u32 %v1456, 20
        %v2019 = vshrl.u32 %v1457, 20
        %v2020 = vshrl.u32 %v1458, 20
        %v2021 = vshrl.u32 %v1459, 20
        %v2022 = vshrl.u32 %v1460, 20
        %v2023 = vshrl.u32 %v1461, 20
        %v2024 = vshrl.u32 %v1462, 20
        %v2025 = vshrl.u32 %v1463, 20
        %v2026 = vshrl.u32 %v1464, 20
        %v2027 = vshrl.u32 %v1465, 20
        %v2028 = vshrl.u32 %v1466, 20
        %v2029 = vshrl.u32 %v1467, 20
        %v2030 = vshrl.u32 %v1468, 20
        %v2031 = vshrl.u32 %v1469, 20
        %v2032 = vshrl.u32 %v1470, 20
        %v2033 = vand.u32 %v2017, 15
        %v2034 = vand.u32 %v2018, 15
        %v2035 = vand.u32 %v2019, 15
        %v2036 = vand.u32 %v2020, 15
        %v2037 = vand.u32 %v2021, 15
        %v2038 = vand.u32 %v2022, 15
        %v2039 = vand.u32 %v2023, 15
        %v2040 = vand.u32 %v2024, 15
        %v2041 = vand.u32 %v2025, 15
        %v2042 = vand.u32 %v2026, 15
        %v2043 = vand.u32 %v2027, 15
        %v2044 = vand.u32 %v2028, 15
        %v2045 = vand.u32 %v2029, 15
        %v2046 = vand.u32 %v2030, 15
        %v2047 = vand.u32 %v2031, 15
        %v2048 = vand.u32 %v2032, 15
        %v2049 = vxor.u32 %v2033, 8
        %v2050 = vxor.u32 %v2034, 8
        %v2051 = vxor.u32 %v2035, 8
        %v2052 = vxor.u32 %v2036, 8
        %v2053 = vxor.u32 %v2037, 8
        %v2054 = vxor.u32 %v2038, 8
        %v2055 = vxor.u32 %v2039, 8
        %v2056 = vxor.u32 %v2040, 8
        %v2057 = vxor.u32 %v2041, 8
        %v2058 = vxor.u32 %v2042, 8
        %v2059 = vxor.u32 %v2043, 8
        %v2060 = vxor.u32 %v2044, 8
        %v2061 = vxor.u32 %v2045, 8
        %v2062 = vxor.u32 %v2046, 8
        %v2063 = vxor.u32 %v2047, 8
        %v2064 = vxor.u32 %v2048, 8
        %v2065 = vsub.s32 %v2049, 8
        %v2066 = vsub.s32 %v2050, 8
        %v2067 = vsub.s32 %v2051, 8
        %v2068 = vsub.s32 %v2052, 8
        %v2069 = vsub.s32 %v2053, 8
        %v2070 = vsub.s32 %v2054, 8
        %v2071 = vsub.s32 %v2055, 8
        %v2072 = vsub.s32 %v2056, 8
        %v2073 = vsub.s32 %v2057, 8
        %v2074 = vsub.s32 %v2058, 8
        %v2075 = vsub.s32 %v2059, 8
        %v2076 = vsub.s32 %v2060, 8
        %v2077 = vsub.s32 %v2061, 8
        %v2078 = vsub.s32 %v2062, 8
        %v2079 = vsub.s32 %v2063, 8
        %v2080 = vsub.s32 %v2064, 8
        %v2081 = vcvt.s32.f32 %v2065
        %v2082 = vcvt.s32.f32 %v2066
        %v2083 = vcvt.s32.f32 %v2067
        %v2084 = vcvt.s32.f32 %v2068
        %v2085 = vcvt.s32.f32 %v2069
        %v2086 = vcvt.s32.f32 %v2070
        %v2087 = vcvt.s32.f32 %v2071
        %v2088 = vcvt.s32.f32 %v2072
        %v2089 = vcvt.s32.f32 %v2073
        %v2090 = vcvt.s32.f32 %v2074
        %v2091 = vcvt.s32.f32 %v2075
        %v2092 = vcvt.s32.f32 %v2076
        %v2093 = vcvt.s32.f32 %v2077
        %v2094 = vcvt.s32.f32 %v2078
        %v2095 = vcvt.s32.f32 %v2079
        %v2096 = vcvt.s32.f32 %v2080
        %v2097 = vlaneseq
        %v2098 = vshrl.u32 %v2097, 7
        %v2099 = vsub.s32 5, %v2098
        %v2100 = vrot.slane %v1471, %v2099
        %v2101 = vlaneseq
        %v2102 = vshrl.u32 %v2101, 7
        %v2103 = vsub.s32 5, %v2102
        %v2104 = vrot.slane %v1472, %v2103
        %v2105 = vmul.f32 %v2081, %v2100
        %v2106 = vmul.f32 %v2082, %v2104
        %v2107 = vmul.f32 %v2083, %v2100
        %v2108 = vmul.f32 %v2084, %v2104
        %v2109 = vmul.f32 %v2085, %v2100
        %v2110 = vmul.f32 %v2086, %v2104
        %v2111 = vmul.f32 %v2087, %v2100
        %v2112 = vmul.f32 %v2088, %v2104
        %v2113 = vmul.f32 %v2089, %v2100
        %v2114 = vmul.f32 %v2090, %v2104
        %v2115 = vmul.f32 %v2091, %v2100
        %v2116 = vmul.f32 %v2092, %v2104
        %v2117 = vmul.f32 %v2093, %v2100
        %v2118 = vmul.f32 %v2094, %v2104
        %v2119 = vmul.f32 %v2095, %v2100
        %v2120 = vmul.f32 %v2096, %v2104
        %v2121 = vpack.c.bf16 %v2107, %v2105
        %v2122 = vpack.c.bf16 %v2108, %v2106
        %v2123 = vpack.c.bf16 %v2111, %v2109
        %v2124 = vpack.c.bf16 %v2112, %v2110
        %v2125 = vpack.c.bf16 %v2115, %v2113
        %v2126 = vpack.c.bf16 %v2116, %v2114
        %v2127 = vpack.c.bf16 %v2119, %v2117
        %v2128 = vpack.c.bf16 %v2120, %v2118
        %v2129 = vshrl.u32 %v1455, 24
        %v2130 = vshrl.u32 %v1456, 24
        %v2131 = vshrl.u32 %v1457, 24
        %v2132 = vshrl.u32 %v1458, 24
        %v2133 = vshrl.u32 %v1459, 24
        %v2134 = vshrl.u32 %v1460, 24
        %v2135 = vshrl.u32 %v1461, 24
        %v2136 = vshrl.u32 %v1462, 24
        %v2137 = vshrl.u32 %v1463, 24
        %v2138 = vshrl.u32 %v1464, 24
        %v2139 = vshrl.u32 %v1465, 24
        %v2140 = vshrl.u32 %v1466, 24
        %v2141 = vshrl.u32 %v1467, 24
        %v2142 = vshrl.u32 %v1468, 24
        %v2143 = vshrl.u32 %v1469, 24
        %v2144 = vshrl.u32 %v1470, 24
        %v2145 = vand.u32 %v2129, 15
        %v2146 = vand.u32 %v2130, 15
        %v2147 = vand.u32 %v2131, 15
        %v2148 = vand.u32 %v2132, 15
        %v2149 = vand.u32 %v2133, 15
        %v2150 = vand.u32 %v2134, 15
        %v2151 = vand.u32 %v2135, 15
        %v2152 = vand.u32 %v2136, 15
        %v2153 = vand.u32 %v2137, 15
        %v2154 = vand.u32 %v2138, 15
        %v2155 = vand.u32 %v2139, 15
        %v2156 = vand.u32 %v2140, 15
        %v2157 = vand.u32 %v2141, 15
        %v2158 = vand.u32 %v2142, 15
        %v2159 = vand.u32 %v2143, 15
        %v2160 = vand.u32 %v2144, 15
        %v2161 = vxor.u32 %v2145, 8
        %v2162 = vxor.u32 %v2146, 8
        %v2163 = vxor.u32 %v2147, 8
        %v2164 = vxor.u32 %v2148, 8
        %v2165 = vxor.u32 %v2149, 8
        %v2166 = vxor.u32 %v2150, 8
        %v2167 = vxor.u32 %v2151, 8
        %v2168 = vxor.u32 %v2152, 8
        %v2169 = vxor.u32 %v2153, 8
        %v2170 = vxor.u32 %v2154, 8
        %v2171 = vxor.u32 %v2155, 8
        %v2172 = vxor.u32 %v2156, 8
        %v2173 = vxor.u32 %v2157, 8
        %v2174 = vxor.u32 %v2158, 8
        %v2175 = vxor.u32 %v2159, 8
        %v2176 = vxor.u32 %v2160, 8
        %v2177 = vsub.s32 %v2161, 8
        %v2178 = vsub.s32 %v2162, 8
        %v2179 = vsub.s32 %v2163, 8
        %v2180 = vsub.s32 %v2164, 8
        %v2181 = vsub.s32 %v2165, 8
        %v2182 = vsub.s32 %v2166, 8
        %v2183 = vsub.s32 %v2167, 8
        %v2184 = vsub.s32 %v2168, 8
        %v2185 = vsub.s32 %v2169, 8
        %v2186 = vsub.s32 %v2170, 8
        %v2187 = vsub.s32 %v2171, 8
        %v2188 = vsub.s32 %v2172, 8
        %v2189 = vsub.s32 %v2173, 8
        %v2190 = vsub.s32 %v2174, 8
        %v2191 = vsub.s32 %v2175, 8
        %v2192 = vsub.s32 %v2176, 8
        %v2193 = vcvt.s32.f32 %v2177
        %v2194 = vcvt.s32.f32 %v2178
        %v2195 = vcvt.s32.f32 %v2179
        %v2196 = vcvt.s32.f32 %v2180
        %v2197 = vcvt.s32.f32 %v2181
        %v2198 = vcvt.s32.f32 %v2182
        %v2199 = vcvt.s32.f32 %v2183
        %v2200 = vcvt.s32.f32 %v2184
        %v2201 = vcvt.s32.f32 %v2185
        %v2202 = vcvt.s32.f32 %v2186
        %v2203 = vcvt.s32.f32 %v2187
        %v2204 = vcvt.s32.f32 %v2188
        %v2205 = vcvt.s32.f32 %v2189
        %v2206 = vcvt.s32.f32 %v2190
        %v2207 = vcvt.s32.f32 %v2191
        %v2208 = vcvt.s32.f32 %v2192
        %v2209 = vlaneseq
        %v2210 = vshrl.u32 %v2209, 7
        %v2211 = vsub.s32 6, %v2210
        %v2212 = vrot.slane %v1471, %v2211
        %v2213 = vlaneseq
        %v2214 = vshrl.u32 %v2213, 7
        %v2215 = vsub.s32 6, %v2214
        %v2216 = vrot.slane %v1472, %v2215
        %v2217 = vmul.f32 %v2193, %v2212
        %v2218 = vmul.f32 %v2194, %v2216
        %v2219 = vmul.f32 %v2195, %v2212
        %v2220 = vmul.f32 %v2196, %v2216
        %v2221 = vmul.f32 %v2197, %v2212
        %v2222 = vmul.f32 %v2198, %v2216
        %v2223 = vmul.f32 %v2199, %v2212
        %v2224 = vmul.f32 %v2200, %v2216
        %v2225 = vmul.f32 %v2201, %v2212
        %v2226 = vmul.f32 %v2202, %v2216
        %v2227 = vmul.f32 %v2203, %v2212
        %v2228 = vmul.f32 %v2204, %v2216
        %v2229 = vmul.f32 %v2205, %v2212
        %v2230 = vmul.f32 %v2206, %v2216
        %v2231 = vmul.f32 %v2207, %v2212
        %v2232 = vmul.f32 %v2208, %v2216
        %v2233 = vpack.c.bf16 %v2219, %v2217
        %v2234 = vpack.c.bf16 %v2220, %v2218
        %v2235 = vpack.c.bf16 %v2223, %v2221
        %v2236 = vpack.c.bf16 %v2224, %v2222
        %v2237 = vpack.c.bf16 %v2227, %v2225
        %v2238 = vpack.c.bf16 %v2228, %v2226
        %v2239 = vpack.c.bf16 %v2231, %v2229
        %v2240 = vpack.c.bf16 %v2232, %v2230
        %v2241 = vshrl.u32 %v1455, 28
        %v2242 = vshrl.u32 %v1456, 28
        %v2243 = vshrl.u32 %v1457, 28
        %v2244 = vshrl.u32 %v1458, 28
        %v2245 = vshrl.u32 %v1459, 28
        %v2246 = vshrl.u32 %v1460, 28
        %v2247 = vshrl.u32 %v1461, 28
        %v2248 = vshrl.u32 %v1462, 28
        %v2249 = vshrl.u32 %v1463, 28
        %v2250 = vshrl.u32 %v1464, 28
        %v2251 = vshrl.u32 %v1465, 28
        %v2252 = vshrl.u32 %v1466, 28
        %v2253 = vshrl.u32 %v1467, 28
        %v2254 = vshrl.u32 %v1468, 28
        %v2255 = vshrl.u32 %v1469, 28
        %v2256 = vshrl.u32 %v1470, 28
        %v2257 = vand.u32 %v2241, 15
        %v2258 = vand.u32 %v2242, 15
        %v2259 = vand.u32 %v2243, 15
        %v2260 = vand.u32 %v2244, 15
        %v2261 = vand.u32 %v2245, 15
        %v2262 = vand.u32 %v2246, 15
        %v2263 = vand.u32 %v2247, 15
        %v2264 = vand.u32 %v2248, 15
        %v2265 = vand.u32 %v2249, 15
        %v2266 = vand.u32 %v2250, 15
        %v2267 = vand.u32 %v2251, 15
        %v2268 = vand.u32 %v2252, 15
        %v2269 = vand.u32 %v2253, 15
        %v2270 = vand.u32 %v2254, 15
        %v2271 = vand.u32 %v2255, 15
        %v2272 = vand.u32 %v2256, 15
        %v2273 = vxor.u32 %v2257, 8
        %v2274 = vxor.u32 %v2258, 8
        %v2275 = vxor.u32 %v2259, 8
        %v2276 = vxor.u32 %v2260, 8
        %v2277 = vxor.u32 %v2261, 8
        %v2278 = vxor.u32 %v2262, 8
        %v2279 = vxor.u32 %v2263, 8
        %v2280 = vxor.u32 %v2264, 8
        %v2281 = vxor.u32 %v2265, 8
        %v2282 = vxor.u32 %v2266, 8
        %v2283 = vxor.u32 %v2267, 8
        %v2284 = vxor.u32 %v2268, 8
        %v2285 = vxor.u32 %v2269, 8
        %v2286 = vxor.u32 %v2270, 8
        %v2287 = vxor.u32 %v2271, 8
        %v2288 = vxor.u32 %v2272, 8
        %v2289 = vsub.s32 %v2273, 8
        %v2290 = vsub.s32 %v2274, 8
        %v2291 = vsub.s32 %v2275, 8
        %v2292 = vsub.s32 %v2276, 8
        %v2293 = vsub.s32 %v2277, 8
        %v2294 = vsub.s32 %v2278, 8
        %v2295 = vsub.s32 %v2279, 8
        %v2296 = vsub.s32 %v2280, 8
        %v2297 = vsub.s32 %v2281, 8
        %v2298 = vsub.s32 %v2282, 8
        %v2299 = vsub.s32 %v2283, 8
        %v2300 = vsub.s32 %v2284, 8
        %v2301 = vsub.s32 %v2285, 8
        %v2302 = vsub.s32 %v2286, 8
        %v2303 = vsub.s32 %v2287, 8
        %v2304 = vsub.s32 %v2288, 8
        %v2305 = vcvt.s32.f32 %v2289
        %v2306 = vcvt.s32.f32 %v2290
        %v2307 = vcvt.s32.f32 %v2291
        %v2308 = vcvt.s32.f32 %v2292
        %v2309 = vcvt.s32.f32 %v2293
        %v2310 = vcvt.s32.f32 %v2294
        %v2311 = vcvt.s32.f32 %v2295
        %v2312 = vcvt.s32.f32 %v2296
        %v2313 = vcvt.s32.f32 %v2297
        %v2314 = vcvt.s32.f32 %v2298
        %v2315 = vcvt.s32.f32 %v2299
        %v2316 = vcvt.s32.f32 %v2300
        %v2317 = vcvt.s32.f32 %v2301
        %v2318 = vcvt.s32.f32 %v2302
        %v2319 = vcvt.s32.f32 %v2303
        %v2320 = vcvt.s32.f32 %v2304
        %v2321 = vlaneseq
        %v2322 = vshrl.u32 %v2321, 7
        %v2323 = vsub.s32 7, %v2322
        %v2324 = vrot.slane %v1471, %v2323
        %v2325 = vlaneseq
        %v2326 = vshrl.u32 %v2325, 7
        %v2327 = vsub.s32 7, %v2326
        %v2328 = vrot.slane %v1472, %v2327
        %v2329 = vmul.f32 %v2305, %v2324
        %v2330 = vmul.f32 %v2306, %v2328
        %v2331 = vmul.f32 %v2307, %v2324
        %v2332 = vmul.f32 %v2308, %v2328
        %v2333 = vmul.f32 %v2309, %v2324
        %v2334 = vmul.f32 %v2310, %v2328
        %v2335 = vmul.f32 %v2311, %v2324
        %v2336 = vmul.f32 %v2312, %v2328
        %v2337 = vmul.f32 %v2313, %v2324
        %v2338 = vmul.f32 %v2314, %v2328
        %v2339 = vmul.f32 %v2315, %v2324
        %v2340 = vmul.f32 %v2316, %v2328
        %v2341 = vmul.f32 %v2317, %v2324
        %v2342 = vmul.f32 %v2318, %v2328
        %v2343 = vmul.f32 %v2319, %v2324
        %v2344 = vmul.f32 %v2320, %v2328
        %v2345 = vpack.c.bf16 %v2331, %v2329
        %v2346 = vpack.c.bf16 %v2332, %v2330
        %v2347 = vpack.c.bf16 %v2335, %v2333
        %v2348 = vpack.c.bf16 %v2336, %v2334
        %v2349 = vpack.c.bf16 %v2339, %v2337
        %v2350 = vpack.c.bf16 %v2340, %v2338
        %v2351 = vpack.c.bf16 %v2343, %v2341
        %v2352 = vpack.c.bf16 %v2344, %v2342
        %v2353 = vld [vmem:[#allocation2] sm:$0xff]
        %v2354 = vld [vmem:[#allocation2 + $0x8] sm:$0xff]
        %v2355 = vld [vmem:[#allocation2 + $0x10] sm:$0xff]
        %v2356 = vld [vmem:[#allocation2 + $0x18] sm:$0xff]
        %v2361 = vunpack.c.l.b16 %v553
        %v2362 = vunpack.c.h.b16 %v553
        %v2363 = vunpack.c.l.b16 %v554
        %v2364 = vunpack.c.h.b16 %v554
        %v2365 = vunpack.c.l.b16 %v555
        %v2366 = vunpack.c.h.b16 %v555
        %v2367 = vunpack.c.l.b16 %v556
        %v2368 = vunpack.c.h.b16 %v556
        %v2369 = vpack.c.b16 %v2365, %v2361
        %v2370 = vpack.c.b16 %v2366, %v2362
        %v2371 = vpack.c.b16 %v2367, %v2363
        %v2372 = vpack.c.b16 %v2368, %v2364
        %2377 = vmatprep.subr.bf16.mxu0 %v664
        %2378 = vmatpush1.bf16.msra.mxu0 %v663
        %2379 = vmatprep.subr.bf16.mxu0 %v666
        %2380 = vmatpush1.bf16.msra.mxu0 %v665
        %2381 = vmatprep.subr.bf16.mxu0 %v668
        %2382 = vmatpush1.bf16.msra.mxu0 %v667
        %2383 = vmatprep.subr.bf16.mxu0 %v670
        %2384 = vmatpush1.bf16.msra.mxu0 %v669
        %2385 = vmatprep.subr.bf16.mxu0 %v776
        %2386 = vmatpush1.bf16.msra.mxu0 %v775
        %2387 = vmatprep.subr.bf16.mxu0 %v778
        %2388 = vmatpush1.bf16.msra.mxu0 %v777
        %2389 = vmatprep.subr.bf16.mxu0 %v780
        %2390 = vmatpush1.bf16.msra.mxu0 %v779
        %2391 = vmatprep.subr.bf16.mxu0 %v782
        %2392 = vmatpush1.bf16.msra.mxu0 %v781
        %2393 = vmatprep.subr.bf16.mxu0 %v888
        %2394 = vmatpush1.bf16.msra.mxu0 %v887
        %2395 = vmatprep.subr.bf16.mxu0 %v890
        %2396 = vmatpush1.bf16.msra.mxu0 %v889
        %2397 = vmatprep.subr.bf16.mxu0 %v892
        %2398 = vmatpush1.bf16.msra.mxu0 %v891
        %2399 = vmatprep.subr.bf16.mxu0 %v894
        %2400 = vmatpush1.bf16.msra.mxu0 %v893
        %2401 = vmatprep.subr.bf16.mxu0 %v1000
        %2402 = vmatpush1.bf16.msra.mxu0 %v999
        %2403 = vmatprep.subr.bf16.mxu0 %v1002
        %2404 = vmatpush1.bf16.msra.mxu0 %v1001
        %2405 = vmatprep.subr.bf16.mxu0 %v1004
        %2406 = vmatpush1.bf16.msra.mxu0 %v1003
        %2407 = vmatprep.subr.bf16.mxu0 %v1006
        %2408 = vmatpush1.bf16.msra.mxu0 %v1005
        %2409 = vmatprep.mubr.bf16.mxu0 %v2370
        %2410 = vmatmul.mubr.bf16.gmra.mrb[0].mxu0 %v2369
        %v2411 = vpop.f32.mrb[0].mxu0
        %v2412 = vadd.f32 0.0, %v2411
        %v2413 = vpop.f32.mrb[0].mxu0
        %v2414 = vadd.f32 0.0, %v2413
        %v2415 = vpop.f32.mrb[0].mxu0
        %v2416 = vadd.f32 0.0, %v2415
        %v2417 = vpop.f32.mrb[0].mxu0
        %v2418 = vadd.f32 0.0, %v2417
        %2419 = vdwg.mxu0
        %2420 = vmatprep.subr.bf16.mxu0 %v1112
        %2421 = vmatpush1.bf16.msra.mxu0 %v1111
        %2422 = vmatprep.subr.bf16.mxu0 %v1114
        %2423 = vmatpush1.bf16.msra.mxu0 %v1113
        %2424 = vmatprep.subr.bf16.mxu0 %v1116
        %2425 = vmatpush1.bf16.msra.mxu0 %v1115
        %2426 = vmatprep.subr.bf16.mxu0 %v1118
        %2427 = vmatpush1.bf16.msra.mxu0 %v1117
        %2428 = vmatprep.subr.bf16.mxu0 %v1224
        %2429 = vmatpush1.bf16.msra.mxu0 %v1223
        %2430 = vmatprep.subr.bf16.mxu0 %v1226
        %2431 = vmatpush1.bf16.msra.mxu0 %v1225
        %2432 = vmatprep.subr.bf16.mxu0 %v1228
        %2433 = vmatpush1.bf16.msra.mxu0 %v1227
        %2434 = vmatprep.subr.bf16.mxu0 %v1230
        %2435 = vmatpush1.bf16.msra.mxu0 %v1229
        %2436 = vmatprep.subr.bf16.mxu0 %v1336
        %2437 = vmatpush1.bf16.msra.mxu0 %v1335
        %2438 = vmatprep.subr.bf16.mxu0 %v1338
        %2439 = vmatpush1.bf16.msra.mxu0 %v1337
        %2440 = vmatprep.subr.bf16.mxu0 %v1340
        %2441 = vmatpush1.bf16.msra.mxu0 %v1339
        %2442 = vmatprep.subr.bf16.mxu0 %v1342
        %2443 = vmatpush1.bf16.msra.mxu0 %v1341
        %2444 = vmatprep.subr.bf16.mxu0 %v1448
        %2445 = vmatpush1.bf16.msra.mxu0 %v1447
        %2446 = vmatprep.subr.bf16.mxu0 %v1450
        %2447 = vmatpush1.bf16.msra.mxu0 %v1449
        %2448 = vmatprep.subr.bf16.mxu0 %v1452
        %2449 = vmatpush1.bf16.msra.mxu0 %v1451
        %2450 = vmatprep.subr.bf16.mxu0 %v1454
        %2451 = vmatpush1.bf16.msra.mxu0 %v1453
        %2452 = vmatprep.mubr.bf16.mxu0 %v2372
        %2453 = vmatmul.mubr.bf16.gmra.mrb[0].mxu0 %v2371
        %v2454 = vpop.f32.mrb[0].mxu0
        %v2455 = vadd.f32 %v2412, %v2454
        %v2456 = vpop.f32.mrb[0].mxu0
        %v2457 = vadd.f32 %v2414, %v2456
        %v2458 = vpop.f32.mrb[0].mxu0
        %v2459 = vadd.f32 %v2416, %v2458
        %v2460 = vpop.f32.mrb[0].mxu0
        %v2461 = vadd.f32 %v2418, %v2460
        %2462 = vdwg.mxu0
        %v2463 = vadd.f32 %v2353, %v2455
        %v2464 = vadd.f32 %v2354, %v2457
        %v2465 = vadd.f32 %v2355, %v2459
        %v2466 = vadd.f32 %v2356, %v2461
        %2467 = vst [vmem:[#allocation2] sm:$0xff] %v2463
        %2468 = vst [vmem:[#allocation2 + $0x8] sm:$0xff] %v2464
        %2469 = vst [vmem:[#allocation2 + $0x10] sm:$0xff] %v2465
        %2470 = vst [vmem:[#allocation2 + $0x18] sm:$0xff] %v2466
        %v2471 = vld [vmem:[#allocation3] sm:$0xff]
        %v2472 = vld [vmem:[#allocation3 + $0x8] sm:$0xff]
        %v2473 = vld [vmem:[#allocation3 + $0x10] sm:$0xff]
        %v2474 = vld [vmem:[#allocation3 + $0x18] sm:$0xff]
        %2475 = vmatprep.subr.bf16.mxu0 %v1562
        %2476 = vmatpush1.bf16.msra.mxu0 %v1561
        %2477 = vmatprep.subr.bf16.mxu0 %v1564
        %2478 = vmatpush1.bf16.msra.mxu0 %v1563
        %2479 = vmatprep.subr.bf16.mxu0 %v1566
        %2480 = vmatpush1.bf16.msra.mxu0 %v1565
        %2481 = vmatprep.subr.bf16.mxu0 %v1568
        %2482 = vmatpush1.bf16.msra.mxu0 %v1567
        %2483 = vmatprep.subr.bf16.mxu0 %v1674
        %2484 = vmatpush1.bf16.msra.mxu0 %v1673
        %2485 = vmatprep.subr.bf16.mxu0 %v1676
        %2486 = vmatpush1.bf16.msra.mxu0 %v1675
        %2487 = vmatprep.subr.bf16.mxu0 %v1678
        %2488 = vmatpush1.bf16.msra.mxu0 %v1677
        %2489 = vmatprep.subr.bf16.mxu0 %v1680
        %2490 = vmatpush1.bf16.msra.mxu0 %v1679
        %2491 = vmatprep.subr.bf16.mxu0 %v1786
        %2492 = vmatpush1.bf16.msra.mxu0 %v1785
        %2493 = vmatprep.subr.bf16.mxu0 %v1788
        %2494 = vmatpush1.bf16.msra.mxu0 %v1787
        %2495 = vmatprep.subr.bf16.mxu0 %v1790
        %2496 = vmatpush1.bf16.msra.mxu0 %v1789
        %2497 = vmatprep.subr.bf16.mxu0 %v1792
        %2498 = vmatpush1.bf16.msra.mxu0 %v1791
        %2499 = vmatprep.subr.bf16.mxu0 %v1898
        %2500 = vmatpush1.bf16.msra.mxu0 %v1897
        %2501 = vmatprep.subr.bf16.mxu0 %v1900
        %2502 = vmatpush1.bf16.msra.mxu0 %v1899
        %2503 = vmatprep.subr.bf16.mxu0 %v1902
        %2504 = vmatpush1.bf16.msra.mxu0 %v1901
        %2505 = vmatprep.subr.bf16.mxu0 %v1904
        %2506 = vmatpush1.bf16.msra.mxu0 %v1903
        %2507 = vmatprep.mubr.bf16.mxu0 %v2370
        %2508 = vmatmul.mubr.bf16.gmra.mrb[0].mxu0 %v2369
        %v2509 = vpop.f32.mrb[0].mxu0
        %v2510 = vadd.f32 0.0, %v2509
        %v2511 = vpop.f32.mrb[0].mxu0
        %v2512 = vadd.f32 0.0, %v2511
        %v2513 = vpop.f32.mrb[0].mxu0
        %v2514 = vadd.f32 0.0, %v2513
        %v2515 = vpop.f32.mrb[0].mxu0
        %v2516 = vadd.f32 0.0, %v2515
        %2517 = vdwg.mxu0
        %2518 = vmatprep.subr.bf16.mxu0 %v2010
        %2519 = vmatpush1.bf16.msra.mxu0 %v2009
        %2520 = vmatprep.subr.bf16.mxu0 %v2012
        %2521 = vmatpush1.bf16.msra.mxu0 %v2011
        %2522 = vmatprep.subr.bf16.mxu0 %v2014
        %2523 = vmatpush1.bf16.msra.mxu0 %v2013
        %2524 = vmatprep.subr.bf16.mxu0 %v2016
        %2525 = vmatpush1.bf16.msra.mxu0 %v2015
        %2526 = vmatprep.subr.bf16.mxu0 %v2122
        %2527 = vmatpush1.bf16.msra.mxu0 %v2121
        %2528 = vmatprep.subr.bf16.mxu0 %v2124
        %2529 = vmatpush1.bf16.msra.mxu0 %v2123
        %2530 = vmatprep.subr.bf16.mxu0 %v2126
        %2531 = vmatpush1.bf16.msra.mxu0 %v2125
        %2532 = vmatprep.subr.bf16.mxu0 %v2128
        %2533 = vmatpush1.bf16.msra.mxu0 %v2127
        %2534 = vmatprep.subr.bf16.mxu0 %v2234
        %2535 = vmatpush1.bf16.msra.mxu0 %v2233
        %2536 = vmatprep.subr.bf16.mxu0 %v2236
        %2537 = vmatpush1.bf16.msra.mxu0 %v2235
        %2538 = vmatprep.subr.bf16.mxu0 %v2238
        %2539 = vmatpush1.bf16.msra.mxu0 %v2237
        %2540 = vmatprep.subr.bf16.mxu0 %v2240
        %2541 = vmatpush1.bf16.msra.mxu0 %v2239
        %2542 = vmatprep.subr.bf16.mxu0 %v2346
        %2543 = vmatpush1.bf16.msra.mxu0 %v2345
        %2544 = vmatprep.subr.bf16.mxu0 %v2348
        %2545 = vmatpush1.bf16.msra.mxu0 %v2347
        %2546 = vmatprep.subr.bf16.mxu0 %v2350
        %2547 = vmatpush1.bf16.msra.mxu0 %v2349
        %2548 = vmatprep.subr.bf16.mxu0 %v2352
        %2549 = vmatpush1.bf16.msra.mxu0 %v2351
        %2550 = vmatprep.mubr.bf16.mxu0 %v2372
        %2551 = vmatmul.mubr.bf16.gmra.mrb[0].mxu0 %v2371
        %v2552 = vpop.f32.mrb[0].mxu0
        %v2553 = vadd.f32 %v2510, %v2552
        %v2554 = vpop.f32.mrb[0].mxu0
        %v2555 = vadd.f32 %v2512, %v2554
        %v2556 = vpop.f32.mrb[0].mxu0
        %v2557 = vadd.f32 %v2514, %v2556
        %v2558 = vpop.f32.mrb[0].mxu0
        %v2559 = vadd.f32 %v2516, %v2558
        %2560 = vdwg.mxu0
        %v2561 = vadd.f32 %v2471, %v2553
        %v2562 = vadd.f32 %v2472, %v2555
        %v2563 = vadd.f32 %v2473, %v2557
        %v2564 = vadd.f32 %v2474, %v2559
        %2565 = vst [vmem:[#allocation3] sm:$0xff] %v2561
        %2566 = vst [vmem:[#allocation3 + $0x8] sm:$0xff] %v2562
        %2567 = vst [vmem:[#allocation3 + $0x10] sm:$0xff] %v2563
        %2568 = vst [vmem:[#allocation3 + $0x18] sm:$0xff] %v2564
        %p2569 = scmp.eq.s32.totalorder %s32, 1
        // Predicated region
        $region80: #{fused_llama_mlp_i4fp8.2} parent=62 // pred_check
          %p2570 = pneg %p2569
        $region81: #{fused_llama_mlp_i4fp8.2} parent=62 // pred_check_branch
          %2572 = sbr.rel (%p2570) target = $region83
        $region82: #{fused_llama_mlp_i4fp8.2} parent=62 // pred_region
          %v2573 = vld [vmem:[%s503] sm:$0xff]
          %v2574 = vld [vmem:[%s503 + $0x8] sm:$0xff]
          %v2575 = vld [vmem:[#allocation2] sm:$0xff]
          %v2576 = vld [vmem:[#allocation2 + $0x8] sm:$0xff]
          %v2577 = vld [vmem:[#allocation2 + $0x10] sm:$0xff]
          %v2578 = vld [vmem:[#allocation2 + $0x18] sm:$0xff]
          %2580 = vset.pattern.permute.xlu0 0
          %2581 = vperm.xlu0 %2580, %v2573
          %v2582 = vpop.permute.xlu0 %2581
          %2585 = vset.pattern.permute.xlu0 0
          %2586 = vperm.xlu0 %2585, %v2574
          %v2587 = vpop.permute.xlu0 %2586
          %v2589 = vmul.f32 %v2575, %v2582
          %v2590 = vmul.f32 %v2576, %v2582
          %v2591 = vmul.f32 %v2577, %v2587
          %v2592 = vmul.f32 %v2578, %v2587
          %v2593 = vld [vmem:[#allocation3] sm:$0xff]
          %v2594 = vld [vmem:[#allocation3 + $0x8] sm:$0xff]
          %v2595 = vld [vmem:[#allocation3 + $0x10] sm:$0xff]
          %v2596 = vld [vmem:[#allocation3 + $0x18] sm:$0xff]
          %v2597 = vmul.f32 %v2593, %v2582
          %v2598 = vmul.f32 %v2594, %v2582
          %v2599 = vmul.f32 %v2595, %v2587
          %v2600 = vmul.f32 %v2596, %v2587
          %v2601 = vxor.u32 %v2589, 2147483648
          %v2602 = vxor.u32 %v2590, 2147483648
          %v2603 = vxor.u32 %v2591, 2147483648
          %v2604 = vxor.u32 %v2592, 2147483648
          %v2605 = vmul.f32 %v2601, 1.442695
          %v2606 = vpow.pop %v2605
          %v2607 = vmul.f32 %v2602, 1.442695
          %v2608 = vpow.pop %v2607
          %v2609 = vmul.f32 %v2603, 1.442695
          %v2610 = vpow.pop %v2609
          %v2611 = vmul.f32 %v2604, 1.442695
          %v2612 = vpow.pop %v2611
          %v2613 = vadd.f32 %v2606, 1.0
          %v2614 = vadd.f32 %v2608, 1.0
          %v2615 = vadd.f32 %v2610, 1.0
          %v2616 = vadd.f32 %v2612, 1.0
          %v2617 = vrcp.pop %v2613
          %v2618 = vmul.f32 1.0, %v2617
          %v2619 = vrcp.pop %v2614
          %v2620 = vmul.f32 1.0, %v2619
          %v2621 = vrcp.pop %v2615
          %v2622 = vmul.f32 1.0, %v2621
          %v2623 = vrcp.pop %v2616
          %v2624 = vmul.f32 1.0, %v2623
          %v2625 = vmul.f32 %v2589, %v2618
          %v2626 = vmul.f32 %v2590, %v2620
          %v2627 = vmul.f32 %v2591, %v2622
          %v2628 = vmul.f32 %v2592, %v2624
          %v2629 = vmul.f32 %v2597, %v2625
          %v2630 = vmul.f32 %v2598, %v2626
          %v2631 = vmul.f32 %v2599, %v2627
          %v2632 = vmul.f32 %v2600, %v2628
          %v2633 = vpack.c.bf16 %v2631, %v2629
          %v2634 = vpack.c.bf16 %v2632, %v2630
          %v2637 = vunpack.c.l.b16 %v2633
          %v2638 = vunpack.c.l.b16 %v2634
          %v2639 = vunpack.c.h.b16 %v2633
          %v2640 = vunpack.c.h.b16 %v2634
          %v2641 = vpack.c.b16 %v2638, %v2637
          %v2642 = vpack.c.b16 %v2640, %v2639
          %2645 = vst [vmem:[%s485] sm:$0xff] %v2641
          %2646 = vst [vmem:[%s485 + $0x8] sm:$0xff] %v2642
          %v2647 = vunpack.c.l.bf16 %v2633
          %v2648 = vunpack.c.l.bf16 %v2634
          %v2649 = vunpack.c.h.bf16 %v2633
          %v2650 = vunpack.c.h.bf16 %v2634
          %v2651 = vand.u32 2147483647, %v2647
          %v2652 = vand.u32 2147483647, %v2648
          %v2653 = vand.u32 2147483647, %v2649
          %v2654 = vand.u32 2147483647, %v2650
          %v2655 = vmax.f32 %v2651, %v2652
          %2656 = vmax.xlane.f32.xlu0 %v2655
          %v2657 = vpop.xlane.xlu0 %2656
          %v2658 = vmax.f32 %v2653, %v2654
          %2659 = vmax.xlane.f32.xlu0 %v2658
          %v2660 = vpop.xlane.xlu0 %2659
          %vm2661 = vcmask 7168
          %2662 = vst.msk [vmem:[%s539] sm:$0xff] %vm2661, %v2657
          %2663 = vst.msk [vmem:[%s539 + $0x8] sm:$0xff] %vm2661, %v2660
        $region83: #{fused_llama_mlp_i4fp8.2} parent=62 // pred_fallthru
          _
        %s2664 = sand.u32 %s220, 1
        %s2665 = sand.u32 %s220, 1
        %s2666 = smul.addr %s2665, 16
        %s2667 = scalar_lea.vmem [#allocation9], %s2666
        %s2668 = smul.u32 2, %s30
        %p2669 = scmp.lt.s32.totalorder %s31, 7
        %s2670 = scalar_select %p2669, %s31, 7
        %p2671 = scmp.lt.s32.totalorder %s2668, 3
        %s2672 = scalar_select %p2671, %s2668, 3
        %s2673 = smul.addr %s2670, 4
        %s2674 = sadd.s32 %s2672, %s2673
        %s2675 = smul.addr %s2674, 8
        %s2676 = scalar_lea.vmem %s7, %s2675
        // Predicated region
        $region84: #{fused_llama_mlp_i4fp8.2} parent=62 // pred_check
          %p2677 = pneg %p230
        $region85: #{fused_llama_mlp_i4fp8.2} parent=62 // pred_check_branch
          %2679 = sbr.rel (%p2677) target = $region87
        $region86: #{fused_llama_mlp_i4fp8.2} parent=62 // pred_region
          %s2680 = smul.u32 2, %s30
          %s2681 = smul.u32 2, %s31
          %s2682 = smul.addr %s2680, 16
          %s2683 = sadd.s32 %s2681, %s2682
          %s2684 = smul.addr %s2683, 4
          %s2685 = scalar_lea.vmem %s6, %s2684
          // Predicated region
          $region88: #{fused_llama_mlp_i4fp8.2} parent=86 // pred_check
            _
          $region89: #{fused_llama_mlp_i4fp8.2} parent=86 // pred_check_branch
            %2687 = sbr.rel (0) target = $region91
          $region90: #{fused_llama_mlp_i4fp8.2} parent=86 // pred_region
            // Predicated region
            $region92: #{fused_llama_mlp_i4fp8.2} parent=90 // pred_check
              _
            $region93: #{fused_llama_mlp_i4fp8.2} parent=90 // pred_check_branch
              %2689 = sbr.rel (0) target = $region95
            $region94: #{fused_llama_mlp_i4fp8.2} parent=90 // pred_region
              // Predicated region
              $region107: #{fused_llama_mlp_i4fp8.2} parent=94 // pred_check
                _
              $region108: #{fused_llama_mlp_i4fp8.2} parent=94 // pred_check_branch
                %2706 = sbr.rel (0) target = $region110
              $region109: #{fused_llama_mlp_i4fp8.2} parent=94 // pred_region
                loop: start=0, step=1, limit=1
                $region111: #{fused_llama_mlp_i4fp8.2} parent=109 // loop_pre_header
                  _
                $region112: #{fused_llama_mlp_i4fp8.2} parent=109 // loop_header
                  %s2708 = sphi 0, %s2712
                  %p2709 = scmp.ge.s32.totalorder %s2708, 1
                  %s2713 = sphi %s2667, %s2667
                  %s2714 = sphi %s2685, %s2685
                $region113: #{fused_llama_mlp_i4fp8.2} parent=109 // loop_header_branch
                  %2711 = sbr.rel (%p2709) target = $region117
                $region114: #{fused_llama_mlp_i4fp8.2} parent=109 // loop_body
                  %v2715 = vld [vmem:[%s2713] sm:$0xff]
                  %2716 = vst [vmem:[%s2714] sm:$0xff] %v2715
                  %v2717 = vld [vmem:[%s2713 + $0x8] sm:$0xff]
                  %2718 = vst [vmem:[%s2714 + $0x40] sm:$0xff] %v2717
                $region115: #{fused_llama_mlp_i4fp8.2} parent=109 // loop_footer
                  %s2712 = sadd.s32 1, %s2708
                $region116: #{fused_llama_mlp_i4fp8.2} parent=109 // loop_footer_branch
                  %2707 = sbr.rel target = $region112
                $region117: #{fused_llama_mlp_i4fp8.2} parent=109 // loop_exit
                  _
              $region110: #{fused_llama_mlp_i4fp8.2} parent=94 // pred_fallthru
                _
              // Predicated region
              $region118: #{fused_llama_mlp_i4fp8.2} parent=94 // pred_check
                _
              $region119: #{fused_llama_mlp_i4fp8.2} parent=94 // pred_check_branch
                %2720 = sbr.rel target = $region121
              $region120: #{fused_llama_mlp_i4fp8.2} parent=94 // pred_region
                _
              $region121: #{fused_llama_mlp_i4fp8.2} parent=94 // pred_fallthru
                _
            $region95: #{fused_llama_mlp_i4fp8.2} parent=90 // pred_fallthru
              _
            // Predicated region
            $region96: #{fused_llama_mlp_i4fp8.2} parent=90 // pred_check
              _
            $region97: #{fused_llama_mlp_i4fp8.2} parent=90 // pred_check_branch
              %2691 = sbr.rel target = $region99
            $region98: #{fused_llama_mlp_i4fp8.2} parent=90 // pred_region
              loop: start=0, step=1, limit=1
              $region100: #{fused_llama_mlp_i4fp8.2} parent=98 // loop_pre_header
                _
              $region101: #{fused_llama_mlp_i4fp8.2} parent=98 // loop_header
                %s2694 = sphi 0, %s2698
                %p2695 = scmp.ge.s32.totalorder %s2694, 1
                %s2699 = sphi %s2667, %s2667
                %s2700 = sphi %s2685, %s2685
              $region102: #{fused_llama_mlp_i4fp8.2} parent=98 // loop_header_branch
                %2697 = sbr.rel (%p2695) target = $region106
              $region103: #{fused_llama_mlp_i4fp8.2} parent=98 // loop_body
                %v2701 = vld [vmem:[%s2699] sm:$0xff]
                %2702 = vst [vmem:[%s2700] sm:$0xff] %v2701
                %v2703 = vld [vmem:[%s2699 + $0x8] sm:$0xff]
                %2704 = vst [vmem:[%s2700 + $0x40] sm:$0xff] %v2703
              $region104: #{fused_llama_mlp_i4fp8.2} parent=98 // loop_footer
                %s2698 = sadd.s32 1, %s2694
              $region105: #{fused_llama_mlp_i4fp8.2} parent=98 // loop_footer_branch
                %2693 = sbr.rel target = $region101
              $region106: #{fused_llama_mlp_i4fp8.2} parent=98 // loop_exit
                _
            $region99: #{fused_llama_mlp_i4fp8.2} parent=90 // pred_fallthru
              _
          $region91: #{fused_llama_mlp_i4fp8.2} parent=86 // pred_fallthru
            _
          %2721 = vnop
        $region87: #{fused_llama_mlp_i4fp8.2} parent=62 // pred_fallthru
          _
        // Predicated region
        $region122: #{fused_llama_mlp_i4fp8.2} parent=62 // pred_check
          %p2722 = pneg %p258
        $region123: #{fused_llama_mlp_i4fp8.2} parent=62 // pred_check_branch
          %2724 = sbr.rel (%p2722) target = $region125
        $region124: #{fused_llama_mlp_i4fp8.2} parent=62 // pred_region
          %s2725 = smul.u32 2, %s30
        $region125: #{fused_llama_mlp_i4fp8.2} parent=62 // pred_fallthru
          _
      $region63: #{fused_llama_mlp_i4fp8.2} parent=5 // pred_fallthru
        _
      %p2726 = scmp.le.s32.totalorder 2, %s20
      // Predicated region
      $region126: #{fused_llama_mlp_i4fp8.2} parent=5 // pred_check
        %p2727 = pneg %p2726
      $region127: #{fused_llama_mlp_i4fp8.2} parent=5 // pred_check_branch
        %2729 = sbr.rel (%p2727) target = $region129
      $region128: #{fused_llama_mlp_i4fp8.2} parent=5 // pred_region
        %s2730 = ssub.s32 %s20, 2
        // Predicated region
        $region130: #{fused_llama_mlp_i4fp8.2} parent=128 // pred_check
          %p2731 = pneg %p236
        $region131: #{fused_llama_mlp_i4fp8.2} parent=128 // pred_check_branch
          %2733 = sbr.rel (%p2731) target = $region133
        $region132: #{fused_llama_mlp_i4fp8.2} parent=128 // pred_region
          %s2734 = sand.u32 %s221, 1
          %s2735 = sand.u32 %s221, 1
          %s2736 = smul.addr %s2735, 16
          %s2737 = scalar_lea.vmem [#allocation9], %s2736
        $region133: #{fused_llama_mlp_i4fp8.2} parent=128 // pred_fallthru
          _
        // Predicated region
        $region134: #{fused_llama_mlp_i4fp8.2} parent=128 // pred_check
          %p2738 = pneg %p264
        $region135: #{fused_llama_mlp_i4fp8.2} parent=128 // pred_check_branch
          %2740 = sbr.rel (%p2738) target = $region137
        $region136: #{fused_llama_mlp_i4fp8.2} parent=128 // pred_region
          %s2741 = smul.u32 2, %s33
          %p2742 = scmp.lt.s32.totalorder %s34, 7
          %s2743 = scalar_select %p2742, %s34, 7
          %p2744 = scmp.lt.s32.totalorder %s2741, 3
          %s2745 = scalar_select %p2744, %s2741, 3
          %s2746 = smul.addr %s2743, 4
          %s2747 = sadd.s32 %s2745, %s2746
          %s2748 = smul.addr %s2747, 8
          %s2749 = scalar_lea.vmem %s7, %s2748
        $region137: #{fused_llama_mlp_i4fp8.2} parent=128 // pred_fallthru
          _
      $region129: #{fused_llama_mlp_i4fp8.2} parent=5 // pred_fallthru
        _
    $region6: #{fused_llama_mlp_i4fp8.2} parent=1 // loop_footer
      %s24 = sadd.s32 1, %s20
    $region7: #{fused_llama_mlp_i4fp8.2} parent=1 // loop_footer_branch
      %19 = sbr.rel target = $region3
    $region8: #{fused_llama_mlp_i4fp8.2} parent=1 // loop_exit
      _
    %2750 = vsyncpa [#allocation6], 1
    %s2751 = scalar_lea.sflag [#allocation6], 1
    %2752 = vsyncpa %s2751, 1
    %2753 = vsyncpa [#allocation8], 1
    %s2754 = scalar_lea.sflag [#allocation8], 1
    %2755 = vsyncpa %s2754, 1

</llo_original>
